<compile_context>
chip_gen: v6e
topology: v6e:2x2x1
jax: 0.10.0
libtpu: 0.0.40
codegen_flags: <defaults>
</compile_context>

<pallas_src>
import functools

import jax
import jax.numpy as jnp
from jax.experimental import pallas as pl
from jax.experimental.pallas import tpu as pltpu


# ------------------------------ tiling helpers ------------------------------ #

def _pick_tile(dim, pref, align):
    """Largest multiple of `align` that divides `dim` and is <= `pref`.

    Falls back to the full dimension (block == array dim is always legal).
    """
    if dim <= pref:
        return dim
    t = (pref // align) * align
    while t >= align:
        if dim % t == 0:
            return t
        t -= align
    # TODO(synk): pad ragged graphs to a multiple of `align` instead of
    #             falling back to a single full-axis block.
    return dim


# ------------------------------ Pallas kernels ------------------------------ #

def _linear_kernel(x_ref, w_ref, b_ref, o_ref, acc_ref, *, activation):
    """Tiled o = act(x @ w + b); grid = (M/tm, N/tn, K/tk), K innermost."""
    k = pl.program_id(2)

    @pl.when(k == 0)
    def _():
        acc_ref[...] = jnp.zeros_like(acc_ref)

    acc_ref[...] += jnp.dot(x_ref[...], w_ref[...],
                            preferred_element_type=jnp.float32)

    @pl.when(k == pl.num_programs(2) - 1)
    def _():
        y = acc_ref[...] + b_ref[...]
        if activation == "sigmoid":
            y = jax.nn.sigmoid(y)
        o_ref[...] = y


def _gat_proj_kernel(x_ref, w_ref, b_ref, o_ref):
    """Fused lin_l | lin_r projection written in head-major layout.

    grid = (2*heads, node_tiles, h_in); the last (arbitrary) axis reduces over
    input heads, accumulating directly in the resident output block.
      x_ref: (1, tn, c_in)      w_ref: (1, 1, c_in, c_out)
      b_ref: (1, 1, c_out)      o_ref: (1, tn, c_out)
    """
    k = pl.program_id(2)
    part = jnp.dot(x_ref[0], w_ref[0, 0], preferred_element_type=jnp.float32)

    @pl.when(k == 0)
    def _():
        o_ref[...] = (part + b_ref[0])[None]

    @pl.when(k > 0)
    def _():
        o_ref[...] += part[None]


def _gat_attn_kernel(xl_ref, xr_ref, a_ref, adj_ref, bias_ref, o_ref,
                     m_sc, l_sc, acc_sc):
    """GATv2 masked-softmax attention, flash-style over src tiles.

    grid = (heads, dst_tiles, src_tiles); src is the reduction axis.
      xl_ref:  (1, TS, C)  source (lin_l) features for this head / src tile
      xr_ref:  (1, TD, C)  target (lin_r) features for this head / dst tile
      a_ref:   (1, 1, C)   attention vector a_h
      adj_ref: (TD, TS)    adj[dst, src] > 0 iff edge src->dst (incl. self loops)
      bias_ref:(1, 1, C)   per-head slice of the GATv2 output bias
      o_ref:   (1, TD, C)  aggregated output (written at the last src tile)
      m/l/acc scratch: running max (TD,1), denom (TD,1), accumulator (TD,C)
    """
    j = pl.program_id(2)

    @pl.when(j == 0)
    def _():
        m_sc[...] = jnp.full_like(m_sc, -1e30)
        l_sc[...] = jnp.zeros_like(l_sc)
        acc_sc[...] = jnp.zeros_like(acc_sc)

    xl = xl_ref[0]                                      # (TS, C)
    xr = xr_ref[0]                                      # (TD, C)
    a = a_ref[0]                                        # (1, C)

    # e[dst, src] = a . leaky_relu(x_r[dst] + x_l[src], 0.2)
    z = xr[:, None, :] + xl[None, :, :]                 # (TD, TS, C)
    lz = 0.6 * z + 0.4 * jnp.abs(z)                     # == leaky_relu(z, 0.2)
    e = jnp.sum(lz * a[None, :, :], axis=-1)            # (TD, TS)
    e = jnp.where(adj_ref[...] > 0, e, -1e30)           # mask in f32

    # online softmax update (rows with >= 1 real edge are exact; fully masked
    # rows stay finite — no NaN — and are only possible without self-loops).
    m_prev = m_sc[...]
    m_new = jnp.maximum(m_prev, jnp.max(e, axis=1, keepdims=True))
    scale = jnp.exp(m_prev - m_new)
    p = jnp.exp(e - m_new)                               # (TD, TS)
    l_sc[...] = scale * l_sc[...] + jnp.sum(p, axis=1, keepdims=True)
    acc_sc[...] = scale * acc_sc[...] + jnp.dot(
        p, xl, preferred_element_type=jnp.float32)
    m_sc[...] = m_new

    @pl.when(j == pl.num_programs(2) - 1)
    def _():
        inv_l = pl.reciprocal(l_sc[...], approx=True)
        o_ref[0] = acc_sc[...] * inv_l + bias_ref[0]


def _graphnorm_relu_kernel(x_ref, w_ref, b_ref, ms_ref, o_ref):
    """PyG GraphNorm (single graph) + ReLU on head-major (H, N, C); grid=(H,)."""
    x = x_ref[0]                                         # (N, C)
    mean = jnp.mean(x, axis=0, keepdims=True)
    centered = x - ms_ref[0] * mean
    var = jnp.mean(centered * centered, axis=0, keepdims=True)
    y = centered * jax.lax.rsqrt(var + 1e-5) * w_ref[0] + b_ref[0]
    o_ref[0] = jnp.maximum(y, 0.0)


# ------------------------------ kernel wrappers ------------------------------ #

def pallas_linear(x, w, b, activation=None):
    """Tiled o = act(x @ w + b) with f32 accumulation."""
    M, K = x.shape
    _, Nout = w.shape
    tm = _pick_tile(M, 256, 8)
    tn = _pick_tile(Nout, 256, 128)
    tk = _pick_tile(K, 512, 128)
    kernel = functools.partial(_linear_kernel, activation=activation)
    return pl.pallas_call(
        kernel,
        out_shape=jax.ShapeDtypeStruct((M, Nout), jnp.float32),
        grid=(M // tm, Nout // tn, K // tk),
        in_specs=[
            pl.BlockSpec((tm, tk), lambda i, j, k: (i, k)),
            pl.BlockSpec((tk, tn), lambda i, j, k: (k, j)),
            pl.BlockSpec((1, tn), lambda i, j, k: (0, j)),
        ],
        out_specs=pl.BlockSpec((tm, tn), lambda i, j, k: (i, j)),
        scratch_shapes=[pltpu.VMEM((tm, tn), jnp.float32)],
        compiler_params=pltpu.CompilerParams(
            dimension_semantics=("parallel", "parallel", "arbitrary")),
    )(x, w, b.reshape(1, Nout))


def pallas_gatv2(x_hnc, Wl, bl, Wr, br, att, out_bias, adj):
    """GATv2Conv (concat=True, add_self_loops baked into `adj`).

    x_hnc: (h_in, N, c_in) head-major input; returns (heads, N, c_out).
    """
    h_in, N, c_in = x_hnc.shape
    heads, c_out = att.shape

    # Weight-layout packing (tiny, parameters only — no activation roundtrips).
    W = jnp.concatenate([Wl, Wr], axis=1)                        # (K, 2*H*c_out)
    W = W.reshape(h_in * c_in, 2 * heads, c_out)
    W = jnp.transpose(W, (1, 0, 2)).reshape(2 * heads, h_in, c_in, c_out)
    b = jnp.concatenate([bl, br]).reshape(2 * heads, 1, c_out)
    a3 = att.reshape(heads, 1, c_out)
    ob3 = out_bias.reshape(heads, 1, c_out)

    # ---- fused lin_l / lin_r projection -> (2*heads, N, c_out) ---- #
    tn = _pick_tile(N, 256, 8)
    xlr = pl.pallas_call(
        _gat_proj_kernel,
        out_shape=jax.ShapeDtypeStruct((2 * heads, N, c_out), jnp.float32),
        grid=(2 * heads, N // tn, h_in),
        in_specs=[
            pl.BlockSpec((1, tn, c_in), lambda g, i, k: (k, i, 0)),
            pl.BlockSpec((1, 1, c_in, c_out), lambda g, i, k: (g, k, 0, 0)),
            pl.BlockSpec((1, 1, c_out), lambda g, i, k: (g, 0, 0)),
        ],
        out_specs=pl.BlockSpec((1, tn, c_out), lambda g, i, k: (g, i, 0)),
        compiler_params=pltpu.CompilerParams(
            dimension_semantics=("parallel", "parallel", "arbitrary")),
    )(x_hnc, W, b)

    # ---- tiled masked-softmax attention (flash-style over src tiles) ---- #
    td = _pick_tile(N, 128, 8)     # dst tile (sublane axis of adj / output)
    ts = _pick_tile(N, 128, 128)   # src tile (lane axis of adj / score)
    y = pl.pallas_call(
        _gat_attn_kernel,
        out_shape=jax.ShapeDtypeStruct((heads, N, c_out), jnp.float32),
        grid=(heads, N // td, N // ts),
        in_specs=[
            pl.BlockSpec((1, ts, c_out), lambda h, i, j: (h, j, 0)),          # xl (src)
            pl.BlockSpec((1, td, c_out), lambda h, i, j: (heads + h, i, 0)),  # xr (dst)
            pl.BlockSpec((1, 1, c_out), lambda h, i, j: (h, 0, 0)),           # att vec
            pl.BlockSpec((td, ts), lambda h, i, j: (i, j)),                   # adj tile
            pl.BlockSpec((1, 1, c_out), lambda h, i, j: (h, 0, 0)),           # out bias
        ],
        out_specs=pl.BlockSpec((1, td, c_out), lambda h, i, j: (h, i, 0)),
        scratch_shapes=[
            pltpu.VMEM((td, 1), jnp.float32),       # running max
            pltpu.VMEM((td, 1), jnp.float32),       # running denom
            pltpu.VMEM((td, c_out), jnp.float32),   # accumulator
        ],
        compiler_params=pltpu.CompilerParams(
            dimension_semantics=("parallel", "parallel", "arbitrary")),
    )(xlr, xlr, a3, adj, ob3)
    return y


def pallas_graphnorm_relu(x_hnc, weight, bias, mean_scale):
    """GraphNorm + ReLU on head-major (H, N, C); params are flat (H*C,)."""
    H, N, C = x_hnc.shape
    # TODO(synk): GraphNorm needs whole-graph node statistics, so it stays a
    #             separate per-head call rather than fused into the attention
    #             epilogue (which only sees one dst tile at a time).
    return pl.pallas_call(
        _graphnorm_relu_kernel,
        out_shape=jax.ShapeDtypeStruct((H, N, C), jnp.float32),
        grid=(H,),
        in_specs=[
            pl.BlockSpec((1, N, C), lambda h: (h, 0, 0)),
            pl.BlockSpec((1, 1, C), lambda h: (h, 0, 0)),
            pl.BlockSpec((1, 1, C), lambda h: (h, 0, 0)),
            pl.BlockSpec((1, 1, C), lambda h: (h, 0, 0)),
        ],
        out_specs=pl.BlockSpec((1, N, C), lambda h: (h, 0, 0)),
        compiler_params=pltpu.CompilerParams(dimension_semantics=("parallel",)),
    )(x_hnc,
      weight.reshape(H, 1, C),
      bias.reshape(H, 1, C),
      mean_scale.reshape(H, 1, C))


# --------------------------------- forward ----------------------------------- #

def gat_forward(p, drug, cell, gene, adj, idx_drug, idx_cell):
    N = adj.shape[0]
    heads, hidden2 = p["att1"].shape
    _, hidden3 = p["att2"].shape
    hidden1 = p["Wd"].shape[1]

    # Input projections + node-axis concat.
    # TODO(synk): the three projections have different input dims in general,
    #             so they stay three small tiled-linear calls.
    x0 = jnp.concatenate(
        [
            pallas_linear(drug, p["Wd"], p["bd"]),
            pallas_linear(cell, p["Wc"], p["bc"]),
            pallas_linear(gene, p["Wg"], p["bg"]),
        ],
        axis=0,
    )                                           # (N, hidden1)
    x = x0.reshape(1, N, hidden1)               # head-major (h_in=1, N, c_in)

    # GAT layer 1 + GraphNorm + ReLU (dropout1: eval-mode identity)
    x = pallas_gatv2(x, p["Wl1"], p["bl1"], p["Wr1"], p["br1"],
                     p["att1"], p["bias1"], adj)             # (H, N, hidden2)
    x = pallas_graphnorm_relu(x, p["gn1_w"], p["gn1_b"], p["gn1_ms"])

    # GAT layer 2 + GraphNorm + ReLU (dropout2: eval-mode identity)
    x = pallas_gatv2(x, p["Wl2"], p["bl2"], p["Wr2"], p["br2"],
                     p["att2"], p["bias2"], adj)             # (H, N, hidden3)
    x = pallas_graphnorm_relu(x, p["gn2_w"], p["gn2_b"], p["gn2_ms"])

    # get_attention_mat: writes the scalar mean of all per-edge attention
    # values at every (src, dst) edge position. Every dst row of the per-head
    # softmax sums to exactly 1 (self-loops guarantee >= 1 incoming edge), so
    # mean(attention_weights) == N / num_edges for each layer — computed
    # analytically in-graph; no (heads, N, N) alpha is ever written to HBM.
    num_edges = jnp.sum(adj)                     # includes self-loops
    mean_per_layer = jnp.float32(N) / num_edges
    all_attention = (mean_per_layer + mean_per_layer) * adj.T  # adj is [dst, src]

    # Pairwise readout: gather only the needed rows, then fused linear+sigmoid.
    P = idx_drug.shape[0]
    xd = jnp.moveaxis(x[:, idx_drug, :], 0, 1).reshape(P, heads * hidden3)
    xc = jnp.moveaxis(x[:, idx_cell, :], 0, 1).reshape(P, heads * hidden3)
    z = jnp.concatenate([xd, xc], axis=1)        # (P, 2*heads*hidden3)
    out = pallas_linear(z, p["W1"], p["b1"], activation="sigmoid")
    return out, all_attention


# ----------------------------------- main ------------------------------------ #

if __name__ == "__main__":
    # small shapes consistent with the module
    n_drug_nodes, n_cell_nodes, n_gene_nodes = 4, 4, 8
    N = n_drug_nodes + n_cell_nodes + n_gene_nodes          # 16 nodes
    n_drug, n_cell, n_gene = 8, 8, 8                        # input feature dims
    hidden1, hidden2, hidden3, heads = 32, 16, 16, 2

    key = jax.random.PRNGKey(0)
    ks = jax.random.split(key, 24)

    def rnd(k, shape, scale=0.1):
        return (scale * jax.random.normal(k, shape)).astype(jnp.float32)

    H2, H3 = hidden2 * heads, hidden3 * heads
    params = {
        # input linears (weights stored [in, out])
        "Wd": rnd(ks[0], (n_drug, hidden1)), "bd": rnd(ks[1], (hidden1,)),
        "Wc": rnd(ks[2], (n_cell, hidden1)), "bc": rnd(ks[3], (hidden1,)),
        "Wg": rnd(ks[4], (n_gene, hidden1)), "bg": rnd(ks[5], (hidden1,)),
        # GATv2 layer 1: hidden1 -> hidden2 (heads)
        "Wl1": rnd(ks[6], (hidden1, H2)), "bl1": rnd(ks[7], (H2,)),
        "Wr1": rnd(ks[8], (hidden1, H2)), "br1": rnd(ks[9], (H2,)),
        "att1": rnd(ks[10], (heads, hidden2)), "bias1": rnd(ks[11], (H2,)),
        # GraphNorm 1 (default init)
        "gn1_w": jnp.ones((H2,), jnp.float32),
        "gn1_b": jnp.zeros((H2,), jnp.float32),
        "gn1_ms": jnp.ones((H2,), jnp.float32),
        # GATv2 layer 2: hidden2*heads -> hidden3 (heads)
        "Wl2": rnd(ks[12], (H2, H3)), "bl2": rnd(ks[13], (H3,)),
        "Wr2": rnd(ks[14], (H2, H3)), "br2": rnd(ks[15], (H3,)),
        "att2": rnd(ks[16], (heads, hidden3)), "bias2": rnd(ks[17], (H3,)),
        # GraphNorm 2
        "gn2_w": jnp.ones((H3,), jnp.float32),
        "gn2_b": jnp.zeros((H3,), jnp.float32),
        "gn2_ms": jnp.ones((H3,), jnp.float32),
        # final linear (2*H3 -> 1)
        "W1": rnd(ks[18], (H3 + H3, 1)), "b1": rnd(ks[19], (1,)),
    }

    # node features
    drug = rnd(ks[20], (n_drug_nodes, n_drug), scale=1.0)
    cell = rnd(ks[21], (n_cell_nodes, n_cell), scale=1.0)
    gene = rnd(ks[22], (n_gene_nodes, n_gene), scale=1.0)

    # edges: duplicate-free random adjacency; GATv2 default add_self_loops.
    # adj[dst, src] = 1 if edge src -> dst
    adj_rand = jax.random.bernoulli(ks[23], 0.3, (N, N)).astype(jnp.float32)
    adj = adj_rand * (1.0 - jnp.eye(N, dtype=jnp.float32)) + jnp.eye(N, dtype=jnp.float32)

    # (drug, cell) index pairs for the readout
    idx_drug = jnp.array([0, 1, 2, 3, 0, 2], dtype=jnp.int32)
    idx_cell = jnp.array([4, 5, 6, 7, 7, 5], dtype=jnp.int32)

    fwd = jax.jit(gat_forward)
    out, all_attention = fwd(params, drug, cell, gene, adj, idx_drug, idx_cell)
    jax.block_until_ready(out)
    jax.block_until_ready(all_attention)

    assert out.shape == (idx_drug.shape[0], 1)
    assert all_attention.shape == (N, N)
    assert bool(jnp.all(jnp.isfinite(out)))
    assert bool(jnp.all(jnp.isfinite(all_attention)))
    print("KERNEL_OK")
</pallas_src>

<mosaic_0001>
module attributes {stable_mosaic.version = 11 : i64} {
  func.func @_linear_kernel(%arg0: i32, %arg1: i32, %arg2: i32, %arg3: memref<8x8xf32, #tpu.memory_space<vmem>>, %arg4: memref<8x32xf32, #tpu.memory_space<vmem>>, %arg5: memref<1x32xf32, #tpu.memory_space<vmem>>, %arg6: memref<8x32xf32, #tpu.memory_space<vmem>>, %arg7: memref<8x32xf32, #tpu.memory_space<vmem>>) attributes {dimension_semantics = [#tpu.dimension_semantics<parallel>, #tpu.dimension_semantics<parallel>, #tpu.dimension_semantics<arbitrary>], iteration_bounds = array<i64: 1, 1, 1>, scalar_prefetch = 0 : i64, scratch_operands = 1 : i64, tpu.core_type = #tpu.core_type<tc>, window_params = [{transform_indices = @transform_0, window_bounds = array<i64: 8, 8>}, {transform_indices = @transform_1, window_bounds = array<i64: 8, 32>}, {transform_indices = @transform_2, window_bounds = array<i64: 1, 32>}, {transform_indices = @transform_3, window_bounds = array<i64: 8, 32>}]} {
    %c0_i32 = arith.constant 0 : i32
    %0 = arith.cmpi eq, %arg2, %c0_i32 : i32
    %1 = arith.extui %0 : i1 to i32
    %c0_i32_0 = arith.constant 0 : i32
    %2 = arith.cmpi ne, %1, %c0_i32_0 : i32
    scf.if %2 {
      %cst_10 = arith.constant 0.000000e+00 : f32
      %12 = vector.broadcast %cst_10 : f32 to vector<8x32xf32>
      %c0_11 = arith.constant 0 : index
      %c0_12 = arith.constant 0 : index
      %13 = vector.load %arg7[%c0_11, %c0_12] : memref<8x32xf32, #tpu.memory_space<vmem>>, vector<8x32xf32>
      tpu.vector_store %arg7[%c0_11, %c0_12], %12 {strides = array<i32>} : memref<8x32xf32, #tpu.memory_space<vmem>>, vector<8x32xf32>,
    } else {
    }
    %c0 = arith.constant 0 : index
    %c0_1 = arith.constant 0 : index
    %3 = vector.load %arg7[%c0, %c0_1] : memref<8x32xf32, #tpu.memory_space<vmem>>, vector<8x32xf32>
    %c0_2 = arith.constant 0 : index
    %c0_3 = arith.constant 0 : index
    %4 = vector.load %arg3[%c0_2, %c0_3] : memref<8x8xf32, #tpu.memory_space<vmem>>, vector<8x8xf32>
    %c0_4 = arith.constant 0 : index
    %c0_5 = arith.constant 0 : index
    %5 = vector.load %arg4[%c0_4, %c0_5] : memref<8x32xf32, #tpu.memory_space<vmem>>, vector<8x32xf32>
    %cst = arith.constant dense<0.000000e+00> : vector<8x32xf32>
    %6 = tpu.matmul %4, %5, %cst {dimension_numbers = #tpu.dot_dimension_numbers<[1], [0], [0], [1], [0, 0, 1, 1], [], []>} : vector<8x8xf32>, vector<8x32xf32>, vector<8x32xf32> -> vector<8x32xf32>
    %7 = arith.addf %3, %6 : vector<8x32xf32>
    %c0_6 = arith.constant 0 : index
    %c0_7 = arith.constant 0 : index
    %8 = vector.load %arg7[%c0_6, %c0_7] : memref<8x32xf32, #tpu.memory_space<vmem>>, vector<8x32xf32>
    tpu.vector_store %arg7[%c0_6, %c0_7], %7 {strides = array<i32>} : memref<8x32xf32, #tpu.memory_space<vmem>>, vector<8x32xf32>,
    %c0_i32_8 = arith.constant 0 : i32
    %9 = arith.cmpi eq, %arg2, %c0_i32_8 : i32
    %10 = arith.extui %9 : i1 to i32
    %c0_i32_9 = arith.constant 0 : i32
    %11 = arith.cmpi ne, %10, %c0_i32_9 : i32
    scf.if %11 {
      %c0_10 = arith.constant 0 : index
      %c0_11 = arith.constant 0 : index
      %12 = vector.load %arg7[%c0_10, %c0_11] : memref<8x32xf32, #tpu.memory_space<vmem>>, vector<8x32xf32>
      %c0_12 = arith.constant 0 : index
      %c0_13 = arith.constant 0 : index
      %13 = vector.load %arg5[%c0_12, %c0_13] : memref<1x32xf32, #tpu.memory_space<vmem>>, vector<1x32xf32>
      %14 = vector.broadcast %13 : vector<1x32xf32> to vector<8x32xf32>
      %15 = arith.addf %12, %14 : vector<8x32xf32>
      %c0_14 = arith.constant 0 : index
      %c0_15 = arith.constant 0 : index
      %16 = vector.load %arg6[%c0_14, %c0_15] : memref<8x32xf32, #tpu.memory_space<vmem>>, vector<8x32xf32>
      tpu.vector_store %arg6[%c0_14, %c0_15], %15 {strides = array<i32>} : memref<8x32xf32, #tpu.memory_space<vmem>>, vector<8x32xf32>,
    } else {
    }
    return
  }
  func.func @transform_0(%arg0: i32, %arg1: i32, %arg2: i32) -> (i32, i32) {
    %c0_i32 = arith.constant 0 : i32
    return %arg0, %arg2 : i32, i32
  }
  func.func @transform_1(%arg0: i32, %arg1: i32, %arg2: i32) -> (i32, i32) {
    %c0_i32 = arith.constant 0 : i32
    return %arg2, %arg1 : i32, i32
  }
  func.func @transform_2(%arg0: i32, %arg1: i32, %arg2: i32) -> (i32, i32) {
    %c0_i32 = arith.constant 0 : i32
    %c0_i32_0 = arith.constant 0 : i32
    return %c0_i32, %arg1 : i32, i32
  }
  func.func @transform_3(%arg0: i32, %arg1: i32, %arg2: i32) -> (i32, i32) {
    %c0_i32 = arith.constant 0 : i32
    return %arg0, %arg1 : i32, i32
  }
}

module attributes {stable_mosaic.version = 11 : i64} {
  func.func @_gat_proj_kernel(%arg0: i32, %arg1: i32, %arg2: i32, %arg3: memref<1x16x32xf32, #tpu.memory_space<vmem>>, %arg4: memref<1x1x32x16xf32, #tpu.memory_space<vmem>>, %arg5: memref<1x1x16xf32, #tpu.memory_space<vmem>>, %arg6: memref<1x16x16xf32, #tpu.memory_space<vmem>>) attributes {dimension_semantics = [#tpu.dimension_semantics<parallel>, #tpu.dimension_semantics<parallel>, #tpu.dimension_semantics<arbitrary>], iteration_bounds = array<i64: 4, 1, 1>, scalar_prefetch = 0 : i64, scratch_operands = 0 : i64, tpu.core_type = #tpu.core_type<tc>, window_params = [{transform_indices = @transform_0, window_bounds = array<i64: 1, 16, 32>}, {transform_indices = @transform_1, window_bounds = array<i64: 1, 1, 32, 16>}, {transform_indices = @transform_2, window_bounds = array<i64: 1, 1, 16>}, {transform_indices = @transform_3, window_bounds = array<i64: 1, 16, 16>}]} {
    %c0 = arith.constant 0 : index
    %c0_0 = arith.constant 0 : index
    %c0_1 = arith.constant 0 : index
    %0 = vector.load %arg3[%c0, %c0_0, %c0_1] : memref<1x16x32xf32, #tpu.memory_space<vmem>>, vector<1x16x32xf32>
    %1 = vector.shape_cast %0 : vector<1x16x32xf32> to vector<16x32xf32>
    %c0_2 = arith.constant 0 : index
    %c0_3 = arith.constant 0 : index
    %c0_4 = arith.constant 0 : index
    %c0_5 = arith.constant 0 : index
    %2 = vector.load %arg4[%c0_2, %c0_3, %c0_4, %c0_5] : memref<1x1x32x16xf32, #tpu.memory_space<vmem>>, vector<1x1x32x16xf32>
    %3 = vector.shape_cast %2 : vector<1x1x32x16xf32> to vector<32x16xf32>
    %cst = arith.constant dense<0.000000e+00> : vector<16x16xf32>
    %4 = tpu.matmul %1, %3, %cst {dimension_numbers = #tpu.dot_dimension_numbers<[1], [0], [0], [1], [0, 0, 1, 1], [], []>} : vector<16x32xf32>, vector<32x16xf32>, vector<16x16xf32> -> vector<16x16xf32>
    %c0_i32 = arith.constant 0 : i32
    %5 = arith.cmpi eq, %arg2, %c0_i32 : i32
    %6 = arith.extui %5 : i1 to i32
    %c0_i32_6 = arith.constant 0 : i32
    %7 = arith.cmpi ne, %6, %c0_i32_6 : i32
    scf.if %7 {
      %c0_9 = arith.constant 0 : index
      %c0_10 = arith.constant 0 : index
      %c0_11 = arith.constant 0 : index
      %11 = vector.load %arg5[%c0_9, %c0_10, %c0_11] : memref<1x1x16xf32, #tpu.memory_space<vmem>>, vector<1x1x16xf32>
      %12 = vector.shape_cast %11 : vector<1x1x16xf32> to vector<1x16xf32>
      %13 = vector.broadcast %12 : vector<1x16xf32> to vector<16x16xf32>
      %14 = arith.addf %4, %13 : vector<16x16xf32>
      %15 = vector.shape_cast %14 : vector<16x16xf32> to vector<1x16x16xf32>
      %c0_12 = arith.constant 0 : index
      %c0_13 = arith.constant 0 : index
      %c0_14 = arith.constant 0 : index
      %16 = vector.load %arg6[%c0_12, %c0_13, %c0_14] : memref<1x16x16xf32, #tpu.memory_space<vmem>>, vector<1x16x16xf32>
      tpu.vector_store %arg6[%c0_12, %c0_13, %c0_14], %15 {strides = array<i32>} : memref<1x16x16xf32, #tpu.memory_space<vmem>>, vector<1x16x16xf32>,
    } else {
    }
    %c0_i32_7 = arith.constant 0 : i32
    %8 = arith.cmpi sgt, %arg2, %c0_i32_7 : i32
    %9 = arith.extui %8 : i1 to i32
    %c0_i32_8 = arith.constant 0 : i32
    %10 = arith.cmpi ne, %9, %c0_i32_8 : i32
    scf.if %10 {
      %c0_9 = arith.constant 0 : index
      %c0_10 = arith.constant 0 : index
      %c0_11 = arith.constant 0 : index
      %11 = vector.load %arg6[%c0_9, %c0_10, %c0_11] : memref<1x16x16xf32, #tpu.memory_space<vmem>>, vector<1x16x16xf32>
      %12 = vector.shape_cast %4 : vector<16x16xf32> to vector<1x16x16xf32>
      %13 = arith.addf %11, %12 : vector<1x16x16xf32>
      %c0_12 = arith.constant 0 : index
      %c0_13 = arith.constant 0 : index
      %c0_14 = arith.constant 0 : index
      %14 = vector.load %arg6[%c0_12, %c0_13, %c0_14] : memref<1x16x16xf32, #tpu.memory_space<vmem>>, vector<1x16x16xf32>
      tpu.vector_store %arg6[%c0_12, %c0_13, %c0_14], %13 {strides = array<i32>} : memref<1x16x16xf32, #tpu.memory_space<vmem>>, vector<1x16x16xf32>,
    } else {
    }
    return
  }
  func.func @transform_0(%arg0: i32, %arg1: i32, %arg2: i32) -> (i32, i32, i32) {
    %c0_i32 = arith.constant 0 : i32
    %c0_i32_0 = arith.constant 0 : i32
    return %arg2, %arg1, %c0_i32 : i32, i32, i32
  }
  func.func @transform_1(%arg0: i32, %arg1: i32, %arg2: i32) -> (i32, i32, i32, i32) {
    %c0_i32 = arith.constant 0 : i32
    %c0_i32_0 = arith.constant 0 : i32
    %c0_i32_1 = arith.constant 0 : i32
    return %arg0, %arg2, %c0_i32, %c0_i32_0 : i32, i32, i32, i32
  }
  func.func @transform_2(%arg0: i32, %arg1: i32, %arg2: i32) -> (i32, i32, i32) {
    %c0_i32 = arith.constant 0 : i32
    %c0_i32_0 = arith.constant 0 : i32
    %c0_i32_1 = arith.constant 0 : i32
    return %arg0, %c0_i32, %c0_i32_0 : i32, i32, i32
  }
  func.func @transform_3(%arg0: i32, %arg1: i32, %arg2: i32) -> (i32, i32, i32) {
    %c0_i32 = arith.constant 0 : i32
    %c0_i32_0 = arith.constant 0 : i32
    return %arg0, %arg1, %c0_i32 : i32, i32, i32
  }
}

module attributes {stable_mosaic.version = 11 : i64} {
  func.func @_gat_attn_kernel(%arg0: i32, %arg1: i32, %arg2: i32, %arg3: memref<1x16x16xf32, #tpu.memory_space<vmem>>, %arg4: memref<1x16x16xf32, #tpu.memory_space<vmem>>, %arg5: memref<1x1x16xf32, #tpu.memory_space<vmem>>, %arg6: memref<16x16xf32, #tpu.memory_space<vmem>>, %arg7: memref<1x1x16xf32, #tpu.memory_space<vmem>>, %arg8: memref<1x16x16xf32, #tpu.memory_space<vmem>>, %arg9: memref<16x1xf32, #tpu.memory_space<vmem>>, %arg10: memref<16x1xf32, #tpu.memory_space<vmem>>, %arg11: memref<16x16xf32, #tpu.memory_space<vmem>>) attributes {dimension_semantics = [#tpu.dimension_semantics<parallel>, #tpu.dimension_semantics<parallel>, #tpu.dimension_semantics<arbitrary>], iteration_bounds = array<i64: 2, 1, 1>, scalar_prefetch = 0 : i64, scratch_operands = 3 : i64, tpu.core_type = #tpu.core_type<tc>, window_params = [{transform_indices = @transform_0, window_bounds = array<i64: 1, 16, 16>}, {transform_indices = @transform_1, window_bounds = array<i64: 1, 16, 16>}, {transform_indices = @transform_2, window_bounds = array<i64: 1, 1, 16>}, {transform_indices = @transform_3, window_bounds = array<i64: 16, 16>}, {transform_indices = @transform_4, window_bounds = array<i64: 1, 1, 16>}, {transform_indices = @transform_5, window_bounds = array<i64: 1, 16, 16>}]} {
    %c0_i32 = arith.constant 0 : i32
    %0 = arith.cmpi eq, %arg2, %c0_i32 : i32
    %1 = arith.extui %0 : i1 to i32
    %c0_i32_0 = arith.constant 0 : i32
    %2 = arith.cmpi ne, %1, %c0_i32_0 : i32
    scf.if %2 {
      %cst_32 = arith.constant -1.000000e+30 : f32
      %54 = vector.broadcast %cst_32 : f32 to vector<16x1xf32>
      %c0_33 = arith.constant 0 : index
      %c0_34 = arith.constant 0 : index
      %55 = vector.load %arg9[%c0_33, %c0_34] : memref<16x1xf32, #tpu.memory_space<vmem>>, vector<16x1xf32>
      tpu.vector_store %arg9[%c0_33, %c0_34], %54 {strides = array<i32>} : memref<16x1xf32, #tpu.memory_space<vmem>>, vector<16x1xf32>,
      %cst_35 = arith.constant 0.000000e+00 : f32
      %56 = vector.broadcast %cst_35 : f32 to vector<16x1xf32>
      %c0_36 = arith.constant 0 : index
      %c0_37 = arith.constant 0 : index
      %57 = vector.load %arg10[%c0_36, %c0_37] : memref<16x1xf32, #tpu.memory_space<vmem>>, vector<16x1xf32>
      tpu.vector_store %arg10[%c0_36, %c0_37], %56 {strides = array<i32>} : memref<16x1xf32, #tpu.memory_space<vmem>>, vector<16x1xf32>,
      %cst_38 = arith.constant 0.000000e+00 : f32
      %58 = vector.broadcast %cst_38 : f32 to vector<16x16xf32>
      %c0_39 = arith.constant 0 : index
      %c0_40 = arith.constant 0 : index
      %59 = vector.load %arg11[%c0_39, %c0_40] : memref<16x16xf32, #tpu.memory_space<vmem>>, vector<16x16xf32>
      tpu.vector_store %arg11[%c0_39, %c0_40], %58 {strides = array<i32>} : memref<16x16xf32, #tpu.memory_space<vmem>>, vector<16x16xf32>,
    } else {
    }
    %c0 = arith.constant 0 : index
    %c0_1 = arith.constant 0 : index
    %c0_2 = arith.constant 0 : index
    %3 = vector.load %arg3[%c0, %c0_1, %c0_2] : memref<1x16x16xf32, #tpu.memory_space<vmem>>, vector<1x16x16xf32>
    %4 = vector.shape_cast %3 : vector<1x16x16xf32> to vector<16x16xf32>
    %c0_3 = arith.constant 0 : index
    %c0_4 = arith.constant 0 : index
    %c0_5 = arith.constant 0 : index
    %5 = vector.load %arg4[%c0_3, %c0_4, %c0_5] : memref<1x16x16xf32, #tpu.memory_space<vmem>>, vector<1x16x16xf32>
    %6 = vector.shape_cast %5 : vector<1x16x16xf32> to vector<16x16xf32>
    %c0_6 = arith.constant 0 : index
    %c0_7 = arith.constant 0 : index
    %c0_8 = arith.constant 0 : index
    %7 = vector.load %arg5[%c0_6, %c0_7, %c0_8] : memref<1x1x16xf32, #tpu.memory_space<vmem>>, vector<1x1x16xf32>
    %8 = vector.shape_cast %7 : vector<1x1x16xf32> to vector<1x16xf32>
    %9 = vector.shape_cast %6 : vector<16x16xf32> to vector<16x1x16xf32>
    %10 = vector.shape_cast %4 : vector<16x16xf32> to vector<1x16x16xf32>
    %11 = vector.broadcast %9 : vector<16x1x16xf32> to vector<16x16x16xf32>
    %12 = vector.broadcast %10 : vector<1x16x16xf32> to vector<16x16x16xf32>
    %13 = arith.addf %11, %12 : vector<16x16x16xf32>
    %cst = arith.constant 6.000000e-01 : f32
    %14 = vector.broadcast %cst : f32 to vector<16x16x16xf32>
    %15 = arith.mulf %14, %13 : vector<16x16x16xf32>
    %16 = math.absf %13 : vector<16x16x16xf32>
    %cst_9 = arith.constant 4.000000e-01 : f32
    %17 = vector.broadcast %cst_9 : f32 to vector<16x16x16xf32>
    %18 = arith.mulf %17, %16 : vector<16x16x16xf32>
    %19 = arith.addf %15, %18 : vector<16x16x16xf32>
    %20 = vector.shape_cast %8 : vector<1x16xf32> to vector<1x1x16xf32>
    %21 = vector.broadcast %20 : vector<1x1x16xf32> to vector<16x16x16xf32>
    %22 = arith.mulf %19, %21 : vector<16x16x16xf32>
    %cst_10 = arith.constant dense<0.000000e+00> : vector<16x16xf32>
    %23 = vector.multi_reduction <add>, %22, %cst_10 [2] : vector<16x16x16xf32> to vector<16x16xf32>
    %c0_11 = arith.constant 0 : index
    %c0_12 = arith.constant 0 : index
    %24 = vector.load %arg6[%c0_11, %c0_12] : memref<16x16xf32, #tpu.memory_space<vmem>>, vector<16x16xf32>
    %cst_13 = arith.constant 0.000000e+00 : f32
    %25 = vector.broadcast %cst_13 : f32 to vector<16x16xf32>
    %26 = arith.cmpf ogt, %24, %25 : vector<16x16xf32>
    %cst_14 = arith.constant -1.000000e+30 : f32
    %27 = vector.broadcast %cst_14 : f32 to vector<16x16xf32>
    %28 = arith.select %26, %23, %27 : vector<16x16xi1>, vector<16x16xf32>
    %c0_15 = arith.constant 0 : index
    %c0_16 = arith.constant 0 : index
    %29 = vector.load %arg9[%c0_15, %c0_16] : memref<16x1xf32, #tpu.memory_space<vmem>>, vector<16x1xf32>
    %cst_17 = arith.constant dense<0xFF800000> : vector<16xf32>
    %30 = vector.multi_reduction <maximumf>, %28, %cst_17 [1] : vector<16x16xf32> to vector<16xf32>
    %31 = vector.shape_cast %30 : vector<16xf32> to vector<16x1xf32>
    %32 = arith.maximumf %29, %31 : vector<16x1xf32>
    %33 = arith.subf %29, %32 : vector<16x1xf32>
    %34 = math.exp %33 : vector<16x1xf32>
    %35 = vector.broadcast %32 : vector<16x1xf32> to vector<16x16xf32>
    %36 = arith.subf %28, %35 : vector<16x16xf32>
    %37 = math.exp %36 : vector<16x16xf32>
    %c0_18 = arith.constant 0 : index
    %c0_19 = arith.constant 0 : index
    %38 = vector.load %arg10[%c0_18, %c0_19] : memref<16x1xf32, #tpu.memory_space<vmem>>, vector<16x1xf32>
    %39 = arith.mulf %34, %38 : vector<16x1xf32>
    %cst_20 = arith.constant dense<0.000000e+00> : vector<16xf32>
    %40 = vector.multi_reduction <add>, %37, %cst_20 [1] : vector<16x16xf32> to vector<16xf32>
    %41 = vector.shape_cast %40 : vector<16xf32> to vector<16x1xf32>
    %42 = arith.addf %39, %41 : vector<16x1xf32>
    %c0_21 = arith.constant 0 : index
    %c0_22 = arith.constant 0 : index
    %43 = vector.load %arg10[%c0_21, %c0_22] : memref<16x1xf32, #tpu.memory_space<vmem>>, vector<16x1xf32>
    tpu.vector_store %arg10[%c0_21, %c0_22], %42 {strides = array<i32>} : memref<16x1xf32, #tpu.memory_space<vmem>>, vector<16x1xf32>,
    %c0_23 = arith.constant 0 : index
    %c0_24 = arith.constant 0 : index
    %44 = vector.load %arg11[%c0_23, %c0_24] : memref<16x16xf32, #tpu.memory_space<vmem>>, vector<16x16xf32>
    %45 = vector.broadcast %34 : vector<16x1xf32> to vector<16x16xf32>
    %46 = arith.mulf %45, %44 : vector<16x16xf32>
    %cst_25 = arith.constant dense<0.000000e+00> : vector<16x16xf32>
    %47 = tpu.matmul %37, %4, %cst_25 {dimension_numbers = #tpu.dot_dimension_numbers<[1], [0], [0], [1], [0, 0, 1, 1], [], []>} : vector<16x16xf32>, vector<16x16xf32>, vector<16x16xf32> -> vector<16x16xf32>
    %48 = arith.addf %46, %47 : vector<16x16xf32>
    %c0_26 = arith.constant 0 : index
    %c0_27 = arith.constant 0 : index
    %49 = vector.load %arg11[%c0_26, %c0_27] : memref<16x16xf32, #tpu.memory_space<vmem>>, vector<16x16xf32>
    tpu.vector_store %arg11[%c0_26, %c0_27], %48 {strides = array<i32>} : memref<16x16xf32, #tpu.memory_space<vmem>>, vector<16x16xf32>,
    %c0_28 = arith.constant 0 : index
    %c0_29 = arith.constant 0 : index
    %50 = vector.load %arg9[%c0_28, %c0_29] : memref<16x1xf32, #tpu.memory_space<vmem>>, vector<16x1xf32>
    tpu.vector_store %arg9[%c0_28, %c0_29], %32 {strides = array<i32>} : memref<16x1xf32, #tpu.memory_space<vmem>>, vector<16x1xf32>,
    %c0_i32_30 = arith.constant 0 : i32
    %51 = arith.cmpi eq, %arg2, %c0_i32_30 : i32
    %52 = arith.extui %51 : i1 to i32
    %c0_i32_31 = arith.constant 0 : i32
    %53 = arith.cmpi ne, %52, %c0_i32_31 : i32
    scf.if %53 {
      %c0_32 = arith.constant 0 : index
      %c0_33 = arith.constant 0 : index
      %54 = vector.load %arg10[%c0_32, %c0_33] : memref<16x1xf32, #tpu.memory_space<vmem>>, vector<16x1xf32>
      %55 = tpu.reciprocal %54 {approx = true} : vector<16x1xf32> -> vector<16x1xf32>
      %c0_34 = arith.constant 0 : index
      %c0_35 = arith.constant 0 : index
      %56 = vector.load %arg11[%c0_34, %c0_35] : memref<16x16xf32, #tpu.memory_space<vmem>>, vector<16x16xf32>
      %57 = vector.broadcast %55 : vector<16x1xf32> to vector<16x16xf32>
      %58 = arith.mulf %56, %57 : vector<16x16xf32>
      %c0_36 = arith.constant 0 : index
      %c0_37 = arith.constant 0 : index
      %c0_38 = arith.constant 0 : index
      %59 = vector.load %arg7[%c0_36, %c0_37, %c0_38] : memref<1x1x16xf32, #tpu.memory_space<vmem>>, vector<1x1x16xf32>
      %60 = vector.shape_cast %59 : vector<1x1x16xf32> to vector<1x16xf32>
      %61 = vector.broadcast %60 : vector<1x16xf32> to vector<16x16xf32>
      %62 = arith.addf %58, %61 : vector<16x16xf32>
      %c0_39 = arith.constant 0 : index
      %c0_40 = arith.constant 0 : index
      %c0_41 = arith.constant 0 : index
      %63 = vector.load %arg8[%c0_39, %c0_40, %c0_41] : memref<1x16x16xf32, #tpu.memory_space<vmem>>, vector<1x16x16xf32>
      %64 = vector.shape_cast %63 : vector<1x16x16xf32> to vector<16x16xf32>
      %65 = vector.shape_cast %62 : vector<16x16xf32> to vector<1x16x16xf32>
      tpu.vector_store %arg8[%c0_39, %c0_40, %c0_41], %65 {strides = array<i32>} : memref<1x16x16xf32, #tpu.memory_space<vmem>>, vector<1x16x16xf32>,
    } else {
    }
    return
  }
  func.func @transform_0(%arg0: i32, %arg1: i32, %arg2: i32) -> (i32, i32, i32) {
    %c0_i32 = arith.constant 0 : i32
    %c0_i32_0 = arith.constant 0 : i32
    return %arg0, %arg2, %c0_i32 : i32, i32, i32
  }
  func.func @transform_1(%arg0: i32, %arg1: i32, %arg2: i32) -> (i32, i32, i32) {
    %c2_i32 = arith.constant 2 : i32
    %0 = arith.addi %c2_i32, %arg0 : i32
    %c0_i32 = arith.constant 0 : i32
    %c0_i32_0 = arith.constant 0 : i32
    return %0, %arg1, %c0_i32 : i32, i32, i32
  }
  func.func @transform_2(%arg0: i32, %arg1: i32, %arg2: i32) -> (i32, i32, i32) {
    %c0_i32 = arith.constant 0 : i32
    %c0_i32_0 = arith.constant 0 : i32
    %c0_i32_1 = arith.constant 0 : i32
    return %arg0, %c0_i32, %c0_i32_0 : i32, i32, i32
  }
  func.func @transform_3(%arg0: i32, %arg1: i32, %arg2: i32) -> (i32, i32) {
    %c0_i32 = arith.constant 0 : i32
    return %arg1, %arg2 : i32, i32
  }
  func.func @transform_4(%arg0: i32, %arg1: i32, %arg2: i32) -> (i32, i32, i32) {
    %c0_i32 = arith.constant 0 : i32
    %c0_i32_0 = arith.constant 0 : i32
    %c0_i32_1 = arith.constant 0 : i32
    return %arg0, %c0_i32, %c0_i32_0 : i32, i32, i32
  }
  func.func @transform_5(%arg0: i32, %arg1: i32, %arg2: i32) -> (i32, i32, i32) {
    %c0_i32 = arith.constant 0 : i32
    %c0_i32_0 = arith.constant 0 : i32
    return %arg0, %arg1, %c0_i32 : i32, i32, i32
  }
}

module attributes {stable_mosaic.version = 11 : i64} {
  func.func @_linear_kernel(%arg0: i32, %arg1: i32, %arg2: i32, %arg3: memref<4x8xf32, #tpu.memory_space<vmem>>, %arg4: memref<8x32xf32, #tpu.memory_space<vmem>>, %arg5: memref<1x32xf32, #tpu.memory_space<vmem>>, %arg6: memref<4x32xf32, #tpu.memory_space<vmem>>, %arg7: memref<4x32xf32, #tpu.memory_space<vmem>>) attributes {dimension_semantics = [#tpu.dimension_semantics<parallel>, #tpu.dimension_semantics<parallel>, #tpu.dimension_semantics<arbitrary>], iteration_bounds = array<i64: 1, 1, 1>, scalar_prefetch = 0 : i64, scratch_operands = 1 : i64, tpu.core_type = #tpu.core_type<tc>, window_params = [{transform_indices = @transform_0, window_bounds = array<i64: 4, 8>}, {transform_indices = @transform_1, window_bounds = array<i64: 8, 32>}, {transform_indices = @transform_2, window_bounds = array<i64: 1, 32>}, {transform_indices = @transform_3, window_bounds = array<i64: 4, 32>}]} {
    %c0_i32 = arith.constant 0 : i32
    %0 = arith.cmpi eq, %arg2, %c0_i32 : i32
    %1 = arith.extui %0 : i1 to i32
    %c0_i32_0 = arith.constant 0 : i32
    %2 = arith.cmpi ne, %1, %c0_i32_0 : i32
    scf.if %2 {
      %cst_10 = arith.constant 0.000000e+00 : f32
      %12 = vector.broadcast %cst_10 : f32 to vector<4x32xf32>
      %c0_11 = arith.constant 0 : index
      %c0_12 = arith.constant 0 : index
      %13 = vector.load %arg7[%c0_11, %c0_12] : memref<4x32xf32, #tpu.memory_space<vmem>>, vector<4x32xf32>
      tpu.vector_store %arg7[%c0_11, %c0_12], %12 {strides = array<i32>} : memref<4x32xf32, #tpu.memory_space<vmem>>, vector<4x32xf32>,
    } else {
    }
    %c0 = arith.constant 0 : index
    %c0_1 = arith.constant 0 : index
    %3 = vector.load %arg7[%c0, %c0_1] : memref<4x32xf32, #tpu.memory_space<vmem>>, vector<4x32xf32>
    %c0_2 = arith.constant 0 : index
    %c0_3 = arith.constant 0 : index
    %4 = vector.load %arg3[%c0_2, %c0_3] : memref<4x8xf32, #tpu.memory_space<vmem>>, vector<4x8xf32>
    %c0_4 = arith.constant 0 : index
    %c0_5 = arith.constant 0 : index
    %5 = vector.load %arg4[%c0_4, %c0_5] : memref<8x32xf32, #tpu.memory_space<vmem>>, vector<8x32xf32>
    %cst = arith.constant dense<0.000000e+00> : vector<4x32xf32>
    %6 = tpu.matmul %4, %5, %cst {dimension_numbers = #tpu.dot_dimension_numbers<[1], [0], [0], [1], [0, 0, 1, 1], [], []>} : vector<4x8xf32>, vector<8x32xf32>, vector<4x32xf32> -> vector<4x32xf32>
    %7 = arith.addf %3, %6 : vector<4x32xf32>
    %c0_6 = arith.constant 0 : index
    %c0_7 = arith.constant 0 : index
    %8 = vector.load %arg7[%c0_6, %c0_7] : memref<4x32xf32, #tpu.memory_space<vmem>>, vector<4x32xf32>
    tpu.vector_store %arg7[%c0_6, %c0_7], %7 {strides = array<i32>} : memref<4x32xf32, #tpu.memory_space<vmem>>, vector<4x32xf32>,
    %c0_i32_8 = arith.constant 0 : i32
    %9 = arith.cmpi eq, %arg2, %c0_i32_8 : i32
    %10 = arith.extui %9 : i1 to i32
    %c0_i32_9 = arith.constant 0 : i32
    %11 = arith.cmpi ne, %10, %c0_i32_9 : i32
    scf.if %11 {
      %c0_10 = arith.constant 0 : index
      %c0_11 = arith.constant 0 : index
      %12 = vector.load %arg7[%c0_10, %c0_11] : memref<4x32xf32, #tpu.memory_space<vmem>>, vector<4x32xf32>
      %c0_12 = arith.constant 0 : index
      %c0_13 = arith.constant 0 : index
      %13 = vector.load %arg5[%c0_12, %c0_13] : memref<1x32xf32, #tpu.memory_space<vmem>>, vector<1x32xf32>
      %14 = vector.broadcast %13 : vector<1x32xf32> to vector<4x32xf32>
      %15 = arith.addf %12, %14 : vector<4x32xf32>
      %c0_14 = arith.constant 0 : index
      %c0_15 = arith.constant 0 : index
      %16 = vector.load %arg6[%c0_14, %c0_15] : memref<4x32xf32, #tpu.memory_space<vmem>>, vector<4x32xf32>
      tpu.vector_store %arg6[%c0_14, %c0_15], %15 {strides = array<i32>} : memref<4x32xf32, #tpu.memory_space<vmem>>, vector<4x32xf32>,
    } else {
    }
    return
  }
  func.func @transform_0(%arg0: i32, %arg1: i32, %arg2: i32) -> (i32, i32) {
    %c0_i32 = arith.constant 0 : i32
    return %arg0, %arg2 : i32, i32
  }
  func.func @transform_1(%arg0: i32, %arg1: i32, %arg2: i32) -> (i32, i32) {
    %c0_i32 = arith.constant 0 : i32
    return %arg2, %arg1 : i32, i32
  }
  func.func @transform_2(%arg0: i32, %arg1: i32, %arg2: i32) -> (i32, i32) {
    %c0_i32 = arith.constant 0 : i32
    %c0_i32_0 = arith.constant 0 : i32
    return %c0_i32, %arg1 : i32, i32
  }
  func.func @transform_3(%arg0: i32, %arg1: i32, %arg2: i32) -> (i32, i32) {
    %c0_i32 = arith.constant 0 : i32
    return %arg0, %arg1 : i32, i32
  }
}

module attributes {stable_mosaic.version = 11 : i64} {
  func.func @_graphnorm_relu_kernel(%arg0: i32, %arg1: memref<1x16x16xf32, #tpu.memory_space<vmem>>, %arg2: memref<1x1x16xf32, #tpu.memory_space<vmem>>, %arg3: memref<1x1x16xf32, #tpu.memory_space<vmem>>, %arg4: memref<1x1x16xf32, #tpu.memory_space<vmem>>, %arg5: memref<1x16x16xf32, #tpu.memory_space<vmem>>) attributes {dimension_semantics = [#tpu.dimension_semantics<parallel>], iteration_bounds = array<i64: 2>, scalar_prefetch = 0 : i64, scratch_operands = 0 : i64, tpu.core_type = #tpu.core_type<tc>, window_params = [{transform_indices = @transform_0, window_bounds = array<i64: 1, 16, 16>}, {transform_indices = @transform_1, window_bounds = array<i64: 1, 1, 16>}, {transform_indices = @transform_2, window_bounds = array<i64: 1, 1, 16>}, {transform_indices = @transform_3, window_bounds = array<i64: 1, 1, 16>}, {transform_indices = @transform_4, window_bounds = array<i64: 1, 16, 16>}]} {
    %c0 = arith.constant 0 : index
    %c0_0 = arith.constant 0 : index
    %c0_1 = arith.constant 0 : index
    %0 = vector.load %arg1[%c0, %c0_0, %c0_1] : memref<1x16x16xf32, #tpu.memory_space<vmem>>, vector<1x16x16xf32>
    %1 = vector.shape_cast %0 : vector<1x16x16xf32> to vector<16x16xf32>
    %cst = arith.constant dense<0.000000e+00> : vector<16xf32>
    %2 = vector.multi_reduction <add>, %1, %cst [0] : vector<16x16xf32> to vector<16xf32>
    %3 = vector.shape_cast %2 : vector<16xf32> to vector<1x16xf32>
    %cst_2 = arith.constant 1.600000e+01 : f32
    %4 = vector.broadcast %cst_2 : f32 to vector<1x16xf32>
    %5 = arith.divf %3, %4 : vector<1x16xf32>
    %c0_3 = arith.constant 0 : index
    %c0_4 = arith.constant 0 : index
    %c0_5 = arith.constant 0 : index
    %6 = vector.load %arg4[%c0_3, %c0_4, %c0_5] : memref<1x1x16xf32, #tpu.memory_space<vmem>>, vector<1x1x16xf32>
    %7 = vector.shape_cast %6 : vector<1x1x16xf32> to vector<1x16xf32>
    %8 = arith.mulf %7, %5 : vector<1x16xf32>
    %9 = vector.broadcast %8 : vector<1x16xf32> to vector<16x16xf32>
    %10 = arith.subf %1, %9 : vector<16x16xf32>
    %11 = arith.mulf %10, %10 : vector<16x16xf32>
    %cst_6 = arith.constant dense<0.000000e+00> : vector<16xf32>
    %12 = vector.multi_reduction <add>, %11, %cst_6 [0] : vector<16x16xf32> to vector<16xf32>
    %13 = vector.shape_cast %12 : vector<16xf32> to vector<1x16xf32>
    %cst_7 = arith.constant 1.600000e+01 : f32
    %14 = vector.broadcast %cst_7 : f32 to vector<1x16xf32>
    %15 = arith.divf %13, %14 : vector<1x16xf32>
    %cst_8 = arith.constant 9.99999974E-6 : f32
    %16 = vector.broadcast %cst_8 : f32 to vector<1x16xf32>
    %17 = arith.addf %15, %16 : vector<1x16xf32>
    %18 = math.rsqrt %17 : vector<1x16xf32>
    %19 = vector.broadcast %18 : vector<1x16xf32> to vector<16x16xf32>
    %20 = arith.mulf %10, %19 : vector<16x16xf32>
    %c0_9 = arith.constant 0 : index
    %c0_10 = arith.constant 0 : index
    %c0_11 = arith.constant 0 : index
    %21 = vector.load %arg2[%c0_9, %c0_10, %c0_11] : memref<1x1x16xf32, #tpu.memory_space<vmem>>, vector<1x1x16xf32>
    %22 = vector.shape_cast %21 : vector<1x1x16xf32> to vector<1x16xf32>
    %23 = vector.broadcast %22 : vector<1x16xf32> to vector<16x16xf32>
    %24 = arith.mulf %20, %23 : vector<16x16xf32>
    %c0_12 = arith.constant 0 : index
    %c0_13 = arith.constant 0 : index
    %c0_14 = arith.constant 0 : index
    %25 = vector.load %arg3[%c0_12, %c0_13, %c0_14] : memref<1x1x16xf32, #tpu.memory_space<vmem>>, vector<1x1x16xf32>
    %26 = vector.shape_cast %25 : vector<1x1x16xf32> to vector<1x16xf32>
    %27 = vector.broadcast %26 : vector<1x16xf32> to vector<16x16xf32>
    %28 = arith.addf %24, %27 : vector<16x16xf32>
    %cst_15 = arith.constant 0.000000e+00 : f32
    %29 = vector.broadcast %cst_15 : f32 to vector<16x16xf32>
    %30 = arith.maximumf %28, %29 : vector<16x16xf32>
    %c0_16 = arith.constant 0 : index
    %c0_17 = arith.constant 0 : index
    %c0_18 = arith.constant 0 : index
    %31 = vector.load %arg5[%c0_16, %c0_17, %c0_18] : memref<1x16x16xf32, #tpu.memory_space<vmem>>, vector<1x16x16xf32>
    %32 = vector.shape_cast %31 : vector<1x16x16xf32> to vector<16x16xf32>
    %33 = vector.shape_cast %30 : vector<16x16xf32> to vector<1x16x16xf32>
    tpu.vector_store %arg5[%c0_16, %c0_17, %c0_18], %33 {strides = array<i32>} : memref<1x16x16xf32, #tpu.memory_space<vmem>>, vector<1x16x16xf32>,
    return
  }
  func.func @transform_0(%arg0: i32) -> (i32, i32, i32) {
    %c0_i32 = arith.constant 0 : i32
    %c0_i32_0 = arith.constant 0 : i32
    %c0_i32_1 = arith.constant 0 : i32
    return %arg0, %c0_i32, %c0_i32_0 : i32, i32, i32
  }
  func.func @transform_1(%arg0: i32) -> (i32, i32, i32) {
    %c0_i32 = arith.constant 0 : i32
    %c0_i32_0 = arith.constant 0 : i32
    %c0_i32_1 = arith.constant 0 : i32
    return %arg0, %c0_i32, %c0_i32_0 : i32, i32, i32
  }
  func.func @transform_2(%arg0: i32) -> (i32, i32, i32) {
    %c0_i32 = arith.constant 0 : i32
    %c0_i32_0 = arith.constant 0 : i32
    %c0_i32_1 = arith.constant 0 : i32
    return %arg0, %c0_i32, %c0_i32_0 : i32, i32, i32
  }
  func.func @transform_3(%arg0: i32) -> (i32, i32, i32) {
    %c0_i32 = arith.constant 0 : i32
    %c0_i32_0 = arith.constant 0 : i32
    %c0_i32_1 = arith.constant 0 : i32
    return %arg0, %c0_i32, %c0_i32_0 : i32, i32, i32
  }
  func.func @transform_4(%arg0: i32) -> (i32, i32, i32) {
    %c0_i32 = arith.constant 0 : i32
    %c0_i32_0 = arith.constant 0 : i32
    %c0_i32_1 = arith.constant 0 : i32
    return %arg0, %c0_i32, %c0_i32_0 : i32, i32, i32
  }
}

module attributes {stable_mosaic.version = 11 : i64} {
  func.func @_gat_proj_kernel(%arg0: i32, %arg1: i32, %arg2: i32, %arg3: memref<1x16x16xf32, #tpu.memory_space<vmem>>, %arg4: memref<1x1x16x16xf32, #tpu.memory_space<vmem>>, %arg5: memref<1x1x16xf32, #tpu.memory_space<vmem>>, %arg6: memref<1x16x16xf32, #tpu.memory_space<vmem>>) attributes {dimension_semantics = [#tpu.dimension_semantics<parallel>, #tpu.dimension_semantics<parallel>, #tpu.dimension_semantics<arbitrary>], iteration_bounds = array<i64: 4, 1, 2>, scalar_prefetch = 0 : i64, scratch_operands = 0 : i64, tpu.core_type = #tpu.core_type<tc>, window_params = [{transform_indices = @transform_0, window_bounds = array<i64: 1, 16, 16>}, {transform_indices = @transform_1, window_bounds = array<i64: 1, 1, 16, 16>}, {transform_indices = @transform_2, window_bounds = array<i64: 1, 1, 16>}, {transform_indices = @transform_3, window_bounds = array<i64: 1, 16, 16>}]} {
    %c0 = arith.constant 0 : index
    %c0_0 = arith.constant 0 : index
    %c0_1 = arith.constant 0 : index
    %0 = vector.load %arg3[%c0, %c0_0, %c0_1] : memref<1x16x16xf32, #tpu.memory_space<vmem>>, vector<1x16x16xf32>
    %1 = vector.shape_cast %0 : vector<1x16x16xf32> to vector<16x16xf32>
    %c0_2 = arith.constant 0 : index
    %c0_3 = arith.constant 0 : index
    %c0_4 = arith.constant 0 : index
    %c0_5 = arith.constant 0 : index
    %2 = vector.load %arg4[%c0_2, %c0_3, %c0_4, %c0_5] : memref<1x1x16x16xf32, #tpu.memory_space<vmem>>, vector<1x1x16x16xf32>
    %3 = vector.shape_cast %2 : vector<1x1x16x16xf32> to vector<16x16xf32>
    %cst = arith.constant dense<0.000000e+00> : vector<16x16xf32>
    %4 = tpu.matmul %1, %3, %cst {dimension_numbers = #tpu.dot_dimension_numbers<[1], [0], [0], [1], [0, 0, 1, 1], [], []>} : vector<16x16xf32>, vector<16x16xf32>, vector<16x16xf32> -> vector<16x16xf32>
    %c0_i32 = arith.constant 0 : i32
    %5 = arith.cmpi eq, %arg2, %c0_i32 : i32
    %6 = arith.extui %5 : i1 to i32
    %c0_i32_6 = arith.constant 0 : i32
    %7 = arith.cmpi ne, %6, %c0_i32_6 : i32
    scf.if %7 {
      %c0_9 = arith.constant 0 : index
      %c0_10 = arith.constant 0 : index
      %c0_11 = arith.constant 0 : index
      %11 = vector.load %arg5[%c0_9, %c0_10, %c0_11] : memref<1x1x16xf32, #tpu.memory_space<vmem>>, vector<1x1x16xf32>
      %12 = vector.shape_cast %11 : vector<1x1x16xf32> to vector<1x16xf32>
      %13 = vector.broadcast %12 : vector<1x16xf32> to vector<16x16xf32>
      %14 = arith.addf %4, %13 : vector<16x16xf32>
      %15 = vector.shape_cast %14 : vector<16x16xf32> to vector<1x16x16xf32>
      %c0_12 = arith.constant 0 : index
      %c0_13 = arith.constant 0 : index
      %c0_14 = arith.constant 0 : index
      %16 = vector.load %arg6[%c0_12, %c0_13, %c0_14] : memref<1x16x16xf32, #tpu.memory_space<vmem>>, vector<1x16x16xf32>
      tpu.vector_store %arg6[%c0_12, %c0_13, %c0_14], %15 {strides = array<i32>} : memref<1x16x16xf32, #tpu.memory_space<vmem>>, vector<1x16x16xf32>,
    } else {
    }
    %c0_i32_7 = arith.constant 0 : i32
    %8 = arith.cmpi sgt, %arg2, %c0_i32_7 : i32
    %9 = arith.extui %8 : i1 to i32
    %c0_i32_8 = arith.constant 0 : i32
    %10 = arith.cmpi ne, %9, %c0_i32_8 : i32
    scf.if %10 {
      %c0_9 = arith.constant 0 : index
      %c0_10 = arith.constant 0 : index
      %c0_11 = arith.constant 0 : index
      %11 = vector.load %arg6[%c0_9, %c0_10, %c0_11] : memref<1x16x16xf32, #tpu.memory_space<vmem>>, vector<1x16x16xf32>
      %12 = vector.shape_cast %4 : vector<16x16xf32> to vector<1x16x16xf32>
      %13 = arith.addf %11, %12 : vector<1x16x16xf32>
      %c0_12 = arith.constant 0 : index
      %c0_13 = arith.constant 0 : index
      %c0_14 = arith.constant 0 : index
      %14 = vector.load %arg6[%c0_12, %c0_13, %c0_14] : memref<1x16x16xf32, #tpu.memory_space<vmem>>, vector<1x16x16xf32>
      tpu.vector_store %arg6[%c0_12, %c0_13, %c0_14], %13 {strides = array<i32>} : memref<1x16x16xf32, #tpu.memory_space<vmem>>, vector<1x16x16xf32>,
    } else {
    }
    return
  }
  func.func @transform_0(%arg0: i32, %arg1: i32, %arg2: i32) -> (i32, i32, i32) {
    %c0_i32 = arith.constant 0 : i32
    %c0_i32_0 = arith.constant 0 : i32
    return %arg2, %arg1, %c0_i32 : i32, i32, i32
  }
  func.func @transform_1(%arg0: i32, %arg1: i32, %arg2: i32) -> (i32, i32, i32, i32) {
    %c0_i32 = arith.constant 0 : i32
    %c0_i32_0 = arith.constant 0 : i32
    %c0_i32_1 = arith.constant 0 : i32
    return %arg0, %arg2, %c0_i32, %c0_i32_0 : i32, i32, i32, i32
  }
  func.func @transform_2(%arg0: i32, %arg1: i32, %arg2: i32) -> (i32, i32, i32) {
    %c0_i32 = arith.constant 0 : i32
    %c0_i32_0 = arith.constant 0 : i32
    %c0_i32_1 = arith.constant 0 : i32
    return %arg0, %c0_i32, %c0_i32_0 : i32, i32, i32
  }
  func.func @transform_3(%arg0: i32, %arg1: i32, %arg2: i32) -> (i32, i32, i32) {
    %c0_i32 = arith.constant 0 : i32
    %c0_i32_0 = arith.constant 0 : i32
    return %arg0, %arg1, %c0_i32 : i32, i32, i32
  }
}

module attributes {stable_mosaic.version = 11 : i64} {
  func.func @_linear_kernel(%arg0: i32, %arg1: i32, %arg2: i32, %arg3: memref<6x64xf32, #tpu.memory_space<vmem>>, %arg4: memref<64x1xf32, #tpu.memory_space<vmem>>, %arg5: memref<1x1xf32, #tpu.memory_space<vmem>>, %arg6: memref<6x1xf32, #tpu.memory_space<vmem>>, %arg7: memref<6x1xf32, #tpu.memory_space<vmem>>) attributes {dimension_semantics = [#tpu.dimension_semantics<parallel>, #tpu.dimension_semantics<parallel>, #tpu.dimension_semantics<arbitrary>], iteration_bounds = array<i64: 1, 1, 1>, scalar_prefetch = 0 : i64, scratch_operands = 1 : i64, tpu.core_type = #tpu.core_type<tc>, window_params = [{transform_indices = @transform_0, window_bounds = array<i64: 6, 64>}, {transform_indices = @transform_1, window_bounds = array<i64: 64, 1>}, {transform_indices = @transform_2, window_bounds = array<i64: 1, 1>}, {transform_indices = @transform_3, window_bounds = array<i64: 6, 1>}]} {
    %c0_i32 = arith.constant 0 : i32
    %0 = arith.cmpi eq, %arg2, %c0_i32 : i32
    %1 = arith.extui %0 : i1 to i32
    %c0_i32_0 = arith.constant 0 : i32
    %2 = arith.cmpi ne, %1, %c0_i32_0 : i32
    scf.if %2 {
      %cst_10 = arith.constant 0.000000e+00 : f32
      %12 = vector.broadcast %cst_10 : f32 to vector<6x1xf32>
      %c0_11 = arith.constant 0 : index
      %c0_12 = arith.constant 0 : index
      %13 = vector.load %arg7[%c0_11, %c0_12] : memref<6x1xf32, #tpu.memory_space<vmem>>, vector<6x1xf32>
      tpu.vector_store %arg7[%c0_11, %c0_12], %12 {strides = array<i32>} : memref<6x1xf32, #tpu.memory_space<vmem>>, vector<6x1xf32>,
    } else {
    }
    %c0 = arith.constant 0 : index
    %c0_1 = arith.constant 0 : index
    %3 = vector.load %arg7[%c0, %c0_1] : memref<6x1xf32, #tpu.memory_space<vmem>>, vector<6x1xf32>
    %c0_2 = arith.constant 0 : index
    %c0_3 = arith.constant 0 : index
    %4 = vector.load %arg3[%c0_2, %c0_3] : memref<6x64xf32, #tpu.memory_space<vmem>>, vector<6x64xf32>
    %c0_4 = arith.constant 0 : index
    %c0_5 = arith.constant 0 : index
    %5 = vector.load %arg4[%c0_4, %c0_5] : memref<64x1xf32, #tpu.memory_space<vmem>>, vector<64x1xf32>
    %cst = arith.constant dense<0.000000e+00> : vector<6x1xf32>
    %6 = tpu.matmul %4, %5, %cst {dimension_numbers = #tpu.dot_dimension_numbers<[1], [0], [0], [1], [0, 0, 1, 1], [], []>} : vector<6x64xf32>, vector<64x1xf32>, vector<6x1xf32> -> vector<6x1xf32>
    %7 = arith.addf %3, %6 : vector<6x1xf32>
    %c0_6 = arith.constant 0 : index
    %c0_7 = arith.constant 0 : index
    %8 = vector.load %arg7[%c0_6, %c0_7] : memref<6x1xf32, #tpu.memory_space<vmem>>, vector<6x1xf32>
    tpu.vector_store %arg7[%c0_6, %c0_7], %7 {strides = array<i32>} : memref<6x1xf32, #tpu.memory_space<vmem>>, vector<6x1xf32>,
    %c0_i32_8 = arith.constant 0 : i32
    %9 = arith.cmpi eq, %arg2, %c0_i32_8 : i32
    %10 = arith.extui %9 : i1 to i32
    %c0_i32_9 = arith.constant 0 : i32
    %11 = arith.cmpi ne, %10, %c0_i32_9 : i32
    scf.if %11 {
      %c0_10 = arith.constant 0 : index
      %c0_11 = arith.constant 0 : index
      %12 = vector.load %arg7[%c0_10, %c0_11] : memref<6x1xf32, #tpu.memory_space<vmem>>, vector<6x1xf32>
      %c0_12 = arith.constant 0 : index
      %c0_13 = arith.constant 0 : index
      %13 = vector.load %arg5[%c0_12, %c0_13] : memref<1x1xf32, #tpu.memory_space<vmem>>, vector<1x1xf32>
      %14 = vector.broadcast %13 : vector<1x1xf32> to vector<6x1xf32>
      %15 = arith.addf %12, %14 : vector<6x1xf32>
      %16 = arith.negf %15 : vector<6x1xf32>
      %17 = math.exp %16 : vector<6x1xf32>
      %cst_14 = arith.constant 1.000000e+00 : f32
      %18 = vector.broadcast %cst_14 : f32 to vector<6x1xf32>
      %19 = arith.addf %18, %17 : vector<6x1xf32>
      %20 = arith.divf %18, %19 : vector<6x1xf32>
      %c0_15 = arith.constant 0 : index
      %c0_16 = arith.constant 0 : index
      %21 = vector.load %arg6[%c0_15, %c0_16] : memref<6x1xf32, #tpu.memory_space<vmem>>, vector<6x1xf32>
      tpu.vector_store %arg6[%c0_15, %c0_16], %20 {strides = array<i32>} : memref<6x1xf32, #tpu.memory_space<vmem>>, vector<6x1xf32>,
    } else {
    }
    return
  }
  func.func @transform_0(%arg0: i32, %arg1: i32, %arg2: i32) -> (i32, i32) {
    %c0_i32 = arith.constant 0 : i32
    return %arg0, %arg2 : i32, i32
  }
  func.func @transform_1(%arg0: i32, %arg1: i32, %arg2: i32) -> (i32, i32) {
    %c0_i32 = arith.constant 0 : i32
    return %arg2, %arg1 : i32, i32
  }
  func.func @transform_2(%arg0: i32, %arg1: i32, %arg2: i32) -> (i32, i32) {
    %c0_i32 = arith.constant 0 : i32
    %c0_i32_0 = arith.constant 0 : i32
    return %c0_i32, %arg1 : i32, i32
  }
  func.func @transform_3(%arg0: i32, %arg1: i32, %arg2: i32) -> (i32, i32) {
    %c0_i32 = arith.constant 0 : i32
    return %arg0, %arg1 : i32, i32
  }
}

</mosaic_0001>

<llo_original>
// kernel: gat_forward.10
$region0: #{gat_forward.10}
  #allocation0 [shape = 'u32[]', space=smem, size = 0x4, offset = 0x4, fixed_abs, tag = 'smem constant byte address 0x4 - core index']
  #allocation1 [shape = 'u32[144,128]{1,0:T(1,128)}', space=vmem, size = 0x12000, scoped, tag = 'internal scratch']
  #allocation2 [shape = 'f32[4,32]{1,0:T(4,128)}', space=vmem, size = 0x800, scoped, tag = 'scratch operand']
  %s0 = inlined_call_operand.vmem [shape: f32[4,8], index: 0, kind: input, shape index: {}]
  %s1 = inlined_call_operand.vmem [shape: f32[8,32], index: 1, kind: input, shape index: {}]
  %s2 = inlined_call_operand.vmem [shape: f32[1,32], index: 2, kind: input, shape index: {}]
  %s3 = inlined_call_operand.vmem [shape: f32[4,32], index: 3, kind: output, shape index: {}]
  %s4 = sld [smem:[#allocation0]]
  $region30: #{gat_forward.10} parent=0
    _
  %s6 = ssub.s32 1, %s4
  %s7 = scalar_select 0, %s6, %s4
  // Predicated region
  $region2: #{gat_forward.10} parent=0 // pred_check
    _
  $region3: #{gat_forward.10} parent=0 // pred_check_branch
    %9 = sbr.rel (0) target = $region5
  $region4: #{gat_forward.10} parent=0 // pred_region
    _
  $region5: #{gat_forward.10} parent=0 // pred_fallthru
    _
  // Predicated region
  $region6: #{gat_forward.10} parent=0 // pred_check
    _
  $region7: #{gat_forward.10} parent=0 // pred_check_branch
    %11 = sbr.rel (0) target = $region9
  $region8: #{gat_forward.10} parent=0 // pred_region
    _
  $region9: #{gat_forward.10} parent=0 // pred_fallthru
    _
  // Predicated region
  $region10: #{gat_forward.10} parent=0 // pred_check
    _
  $region11: #{gat_forward.10} parent=0 // pred_check_branch
    %13 = sbr.rel (0) target = $region13
  $region12: #{gat_forward.10} parent=0 // pred_region
    _
  $region13: #{gat_forward.10} parent=0 // pred_fallthru
    _
  %p14 = scmp.eq.s32.totalorder 0, 0
  // Predicated region
  $region14: #{gat_forward.10} parent=0 // pred_check
    %p15 = pneg %p14
  $region15: #{gat_forward.10} parent=0 // pred_check_branch
    %17 = sbr.rel (%p15) target = $region17
  $region16: #{gat_forward.10} parent=0 // pred_region
    %vm18 = vcmask 257024
    %19 = vst.msk [vmem:[#allocation2] sm:$0xf] %vm18, 0.0
  $region17: #{gat_forward.10} parent=0 // pred_fallthru
    _
  %v20 = vld [vmem:[#allocation2] sm:$0xf]
  %v21 = vld [vmem:[%s0] sm:$0xf]
  %v22 = vld [vmem:[%s1] sm:$0xff]
  %vm23 = vcmask 64512
  %v25 = vsel %vm23, %v21, 0
  %27 = vmatprep.subr.mxu0 0.0
  %28 = vmatpush1.msra.mxu0 0.0
  %29 = vmatprep.subr.mxu0 0.0
  %30 = vmatpush1.msra.mxu0 0.0
  %31 = vmatprep.subr.mxu0 0.0
  %32 = vmatpush1.msra.mxu0 0.0
  %33 = vmatprep.subr.mxu0 0.0
  %34 = vmatpush1.msra.mxu0 0.0
  %35 = vmatprep.subr.mxu0 0.0
  %36 = vmatpush1.msra.mxu0 0.0
  %37 = vmatprep.subr.mxu0 0.0
  %38 = vmatpush1.msra.mxu0 0.0
  %39 = vmatprep.subr.mxu0 0.0
  %40 = vmatpush1.msra.mxu0 0.0
  %41 = vmatprep.subr.mxu0 0.0
  %42 = vmatpush1.msra.mxu0 0.0
  %43 = vmatprep.subr.mxu0 0.0
  %44 = vmatpush1.msra.mxu0 0.0
  %45 = vmatprep.subr.mxu0 0.0
  %46 = vmatpush1.msra.mxu0 0.0
  %47 = vmatprep.subr.mxu0 0.0
  %48 = vmatpush1.msra.mxu0 0.0
  %49 = vmatprep.subr.mxu0 0.0
  %50 = vmatpush1.msra.mxu0 0.0
  %51 = vmatprep.subr.mxu0 0.0
  %52 = vmatpush1.msra.mxu0 0.0
  %53 = vmatprep.subr.mxu0 0.0
  %54 = vmatpush1.msra.mxu0 0.0
  %55 = vmatprep.subr.mxu0 0.0
  %56 = vmatpush1.msra.mxu0 0.0
  %57 = vmatprep.subr.mxu0 0.0
  %58 = vmatpush1.msra.mxu0 %v22
  %59 = vmatprep.subr.mxu0 0.0
  %60 = vmatpush2.msra.mxu0 0.0
  %61 = vmatprep.subr.mxu0 0.0
  %62 = vmatpush2.msra.mxu0 0.0
  %63 = vmatprep.subr.mxu0 0.0
  %64 = vmatpush2.msra.mxu0 0.0
  %65 = vmatprep.subr.mxu0 0.0
  %66 = vmatpush2.msra.mxu0 0.0
  %67 = vmatprep.subr.mxu0 0.0
  %68 = vmatpush2.msra.mxu0 0.0
  %69 = vmatprep.subr.mxu0 0.0
  %70 = vmatpush2.msra.mxu0 0.0
  %71 = vmatprep.subr.mxu0 0.0
  %72 = vmatpush2.msra.mxu0 0.0
  %73 = vmatprep.subr.mxu0 0.0
  %74 = vmatpush2.msra.mxu0 0.0
  %75 = vmatprep.subr.mxu0 0.0
  %76 = vmatpush2.msra.mxu0 0.0
  %77 = vmatprep.subr.mxu0 0.0
  %78 = vmatpush2.msra.mxu0 0.0
  %79 = vmatprep.subr.mxu0 0.0
  %80 = vmatpush2.msra.mxu0 0.0
  %81 = vmatprep.subr.mxu0 0.0
  %82 = vmatpush2.msra.mxu0 0.0
  %83 = vmatprep.subr.mxu0 0.0
  %84 = vmatpush2.msra.mxu0 0.0
  %85 = vmatprep.subr.mxu0 0.0
  %86 = vmatpush2.msra.mxu0 0.0
  %87 = vmatprep.subr.mxu0 0.0
  %88 = vmatpush2.msra.mxu0 0.0
  %89 = vmatprep.subr.mxu0 0.0
  %90 = vmatpush2.msra.mxu0 0.0
  %91 = vmatprep.mubr.f32.mxu0 0.0
  %92 = vmatmul.mubr.f32.gmra.mxu0 %v25
  %v93 = vpop.f32.mrf.mxu0
  %v94 = vadd.f32 0.0, %v93
  %v95 = vpop.f32.mrf.mxu0
  %96 = vdwg.mxu0
  %v97 = vadd.f32 %v20, %v94
  %vm98 = vcmask 257024
  %99 = vst.msk [vmem:[#allocation2] sm:$0xf] %vm98, %v97
  // Predicated region
  $region18: #{gat_forward.10} parent=0 // pred_check
    %p100 = pneg %p14
  $region19: #{gat_forward.10} parent=0 // pred_check_branch
    %102 = sbr.rel (%p100) target = $region21
  $region20: #{gat_forward.10} parent=0 // pred_region
    %v103 = vld [vmem:[#allocation2] sm:$0xf]
    %v104 = vld [vmem:[%s2] sm:$0x1]
    %v106 = vlaneseq
    %v107 = vshrl.u32 %v106, 7
    %v108 = vsub.s32 0, %v107
    %v109 = vrot.slane %v104, %v108
    %v111 = vadd.f32 %v103, %v109
    %112 = vst.msk [vmem:[%s3] sm:$0xf] %vm98, %v111
  $region21: #{gat_forward.10} parent=0 // pred_fallthru
    _
  // Predicated region
  $region22: #{gat_forward.10} parent=0 // pred_check
    _
  $region23: #{gat_forward.10} parent=0 // pred_check_branch
    %114 = sbr.rel (0) target = $region25
  $region24: #{gat_forward.10} parent=0 // pred_region
    _
  $region25: #{gat_forward.10} parent=0 // pred_fallthru
    _
  // Predicated region
  $region26: #{gat_forward.10} parent=0 // pred_check
    _
  $region27: #{gat_forward.10} parent=0 // pred_check_branch
    %116 = sbr.rel (0) target = $region29
  $region28: #{gat_forward.10} parent=0 // pred_region
    _
  $region29: #{gat_forward.10} parent=0 // pred_fallthru
    _

// kernel: gat_forward.12
$region0: #{gat_forward.12}
  #allocation0 [shape = 'u32[]', space=smem, size = 0x4, offset = 0x4, fixed_abs, tag = 'smem constant byte address 0x4 - core index']
  #allocation1 [shape = 'u32[144,128]{1,0:T(1,128)}', space=vmem, size = 0x12000, scoped, tag = 'internal scratch']
  #allocation2 [shape = 'f32[8,32]{1,0:T(8,128)}', space=vmem, size = 0x1000, scoped, tag = 'scratch operand']
  %s0 = inlined_call_operand.vmem [shape: f32[8,8], index: 0, kind: input, shape index: {}]
  %s1 = inlined_call_operand.vmem [shape: f32[8,32], index: 1, kind: input, shape index: {}]
  %s2 = inlined_call_operand.vmem [shape: f32[1,32], index: 2, kind: input, shape index: {}]
  %s3 = inlined_call_operand.vmem [shape: f32[8,32], index: 3, kind: output, shape index: {}]
  %s4 = sld [smem:[#allocation0]]
  $region30: #{gat_forward.12} parent=0
    _
  %s6 = ssub.s32 1, %s4
  %s7 = scalar_select 0, %s6, %s4
  // Predicated region
  $region2: #{gat_forward.12} parent=0 // pred_check
    _
  $region3: #{gat_forward.12} parent=0 // pred_check_branch
    %9 = sbr.rel (0) target = $region5
  $region4: #{gat_forward.12} parent=0 // pred_region
    _
  $region5: #{gat_forward.12} parent=0 // pred_fallthru
    _
  // Predicated region
  $region6: #{gat_forward.12} parent=0 // pred_check
    _
  $region7: #{gat_forward.12} parent=0 // pred_check_branch
    %11 = sbr.rel (0) target = $region9
  $region8: #{gat_forward.12} parent=0 // pred_region
    _
  $region9: #{gat_forward.12} parent=0 // pred_fallthru
    _
  // Predicated region
  $region10: #{gat_forward.12} parent=0 // pred_check
    _
  $region11: #{gat_forward.12} parent=0 // pred_check_branch
    %13 = sbr.rel (0) target = $region13
  $region12: #{gat_forward.12} parent=0 // pred_region
    _
  $region13: #{gat_forward.12} parent=0 // pred_fallthru
    _
  %p14 = scmp.eq.s32.totalorder 0, 0
  // Predicated region
  $region14: #{gat_forward.12} parent=0 // pred_check
    %p15 = pneg %p14
  $region15: #{gat_forward.12} parent=0 // pred_check_branch
    %17 = sbr.rel (%p15) target = $region17
  $region16: #{gat_forward.12} parent=0 // pred_region
    %vm18 = vcmask 261120
    %19 = vst.msk [vmem:[#allocation2] sm:$0xff] %vm18, 0.0
  $region17: #{gat_forward.12} parent=0 // pred_fallthru
    _
  %v20 = vld [vmem:[#allocation2] sm:$0xff]
  %v21 = vld [vmem:[%s0] sm:$0xff]
  %v22 = vld [vmem:[%s1] sm:$0xff]
  %vm23 = vcmask 64512
  %v25 = vsel %vm23, %v21, 0
  %27 = vmatprep.subr.mxu0 0.0
  %28 = vmatpush1.msra.mxu0 0.0
  %29 = vmatprep.subr.mxu0 0.0
  %30 = vmatpush1.msra.mxu0 0.0
  %31 = vmatprep.subr.mxu0 0.0
  %32 = vmatpush1.msra.mxu0 0.0
  %33 = vmatprep.subr.mxu0 0.0
  %34 = vmatpush1.msra.mxu0 0.0
  %35 = vmatprep.subr.mxu0 0.0
  %36 = vmatpush1.msra.mxu0 0.0
  %37 = vmatprep.subr.mxu0 0.0
  %38 = vmatpush1.msra.mxu0 0.0
  %39 = vmatprep.subr.mxu0 0.0
  %40 = vmatpush1.msra.mxu0 0.0
  %41 = vmatprep.subr.mxu0 0.0
  %42 = vmatpush1.msra.mxu0 0.0
  %43 = vmatprep.subr.mxu0 0.0
  %44 = vmatpush1.msra.mxu0 0.0
  %45 = vmatprep.subr.mxu0 0.0
  %46 = vmatpush1.msra.mxu0 0.0
  %47 = vmatprep.subr.mxu0 0.0
  %48 = vmatpush1.msra.mxu0 0.0
  %49 = vmatprep.subr.mxu0 0.0
  %50 = vmatpush1.msra.mxu0 0.0
  %51 = vmatprep.subr.mxu0 0.0
  %52 = vmatpush1.msra.mxu0 0.0
  %53 = vmatprep.subr.mxu0 0.0
  %54 = vmatpush1.msra.mxu0 0.0
  %55 = vmatprep.subr.mxu0 0.0
  %56 = vmatpush1.msra.mxu0 0.0
  %57 = vmatprep.subr.mxu0 0.0
  %58 = vmatpush1.msra.mxu0 %v22
  %59 = vmatprep.subr.mxu0 0.0
  %60 = vmatpush2.msra.mxu0 0.0
  %61 = vmatprep.subr.mxu0 0.0
  %62 = vmatpush2.msra.mxu0 0.0
  %63 = vmatprep.subr.mxu0 0.0
  %64 = vmatpush2.msra.mxu0 0.0
  %65 = vmatprep.subr.mxu0 0.0
  %66 = vmatpush2.msra.mxu0 0.0
  %67 = vmatprep.subr.mxu0 0.0
  %68 = vmatpush2.msra.mxu0 0.0
  %69 = vmatprep.subr.mxu0 0.0
  %70 = vmatpush2.msra.mxu0 0.0
  %71 = vmatprep.subr.mxu0 0.0
  %72 = vmatpush2.msra.mxu0 0.0
  %73 = vmatprep.subr.mxu0 0.0
  %74 = vmatpush2.msra.mxu0 0.0
  %75 = vmatprep.subr.mxu0 0.0
  %76 = vmatpush2.msra.mxu0 0.0
  %77 = vmatprep.subr.mxu0 0.0
  %78 = vmatpush2.msra.mxu0 0.0
  %79 = vmatprep.subr.mxu0 0.0
  %80 = vmatpush2.msra.mxu0 0.0
  %81 = vmatprep.subr.mxu0 0.0
  %82 = vmatpush2.msra.mxu0 0.0
  %83 = vmatprep.subr.mxu0 0.0
  %84 = vmatpush2.msra.mxu0 0.0
  %85 = vmatprep.subr.mxu0 0.0
  %86 = vmatpush2.msra.mxu0 0.0
  %87 = vmatprep.subr.mxu0 0.0
  %88 = vmatpush2.msra.mxu0 0.0
  %89 = vmatprep.subr.mxu0 0.0
  %90 = vmatpush2.msra.mxu0 0.0
  %91 = vmatprep.mubr.f32.mxu0 0.0
  %92 = vmatmul.mubr.f32.gmra.mxu0 %v25
  %v93 = vpop.f32.mrf.mxu0
  %v94 = vadd.f32 0.0, %v93
  %v95 = vpop.f32.mrf.mxu0
  %96 = vdwg.mxu0
  %v97 = vadd.f32 %v20, %v94
  %vm98 = vcmask 261120
  %99 = vst.msk [vmem:[#allocation2] sm:$0xff] %vm98, %v97
  // Predicated region
  $region18: #{gat_forward.12} parent=0 // pred_check
    %p100 = pneg %p14
  $region19: #{gat_forward.12} parent=0 // pred_check_branch
    %102 = sbr.rel (%p100) target = $region21
  $region20: #{gat_forward.12} parent=0 // pred_region
    %v103 = vld [vmem:[#allocation2] sm:$0xff]
    %v104 = vld [vmem:[%s2] sm:$0x1]
    %v106 = vlaneseq
    %v107 = vshrl.u32 %v106, 7
    %v108 = vsub.s32 0, %v107
    %v109 = vrot.slane %v104, %v108
    %v111 = vadd.f32 %v103, %v109
    %112 = vst.msk [vmem:[%s3] sm:$0xff] %vm98, %v111
  $region21: #{gat_forward.12} parent=0 // pred_fallthru
    _
  // Predicated region
  $region22: #{gat_forward.12} parent=0 // pred_check
    _
  $region23: #{gat_forward.12} parent=0 // pred_check_branch
    %114 = sbr.rel (0) target = $region25
  $region24: #{gat_forward.12} parent=0 // pred_region
    _
  $region25: #{gat_forward.12} parent=0 // pred_fallthru
    _
  // Predicated region
  $region26: #{gat_forward.12} parent=0 // pred_check
    _
  $region27: #{gat_forward.12} parent=0 // pred_check_branch
    %116 = sbr.rel (0) target = $region29
  $region28: #{gat_forward.12} parent=0 // pred_region
    _
  $region29: #{gat_forward.12} parent=0 // pred_fallthru
    _

// kernel: gat_forward.13
$region0: #{gat_forward.13}
  #allocation0 [shape = 'u32[]', space=smem, size = 0x4, offset = 0x4, fixed_abs, tag = 'smem constant byte address 0x4 - core index']
  #allocation1 [shape = 'u32[144,128]{1,0:T(1,128)}', space=vmem, size = 0x12000, scoped, tag = 'internal scratch']
  %s0 = inlined_call_operand.vmem [shape: f32[1,16,32], index: 0, kind: input, shape index: {}]
  %s1 = inlined_call_operand.vmem [shape: f32[4,1,32,16], index: 1, kind: input, shape index: {}]
  %s2 = inlined_call_operand.vmem [shape: f32[4,1,16], index: 2, kind: input, shape index: {}]
  %s3 = inlined_call_operand.vmem [shape: f32[4,16,16], index: 3, kind: output, shape index: {}]
  %s4 = sld [smem:[#allocation0]]
  $region53: #{gat_forward.13} parent=0
    _
  %s6 = ssub.s32 1, %s4
  %s7 = scalar_select 0, %s6, %s4
  loop: start=0, step=1, limit=6
  $region2: #{gat_forward.13} parent=0 // loop_pre_header
    _
  $region3: #{gat_forward.13} parent=0 // loop_header
    %s9 = sphi 0, %s13
    %p10 = scmp.ge.s32.totalorder %s9, 6
    %s16 = sphi 0, %s35
    %s17 = sphi 0, %s31
    %s18 = sphi 0, %s27
    %s19 = sphi 0, %s16
    %s20 = sphi 0, %s17
    %s21 = sphi 0, %s18
    %s22 = sphi 0, %s19
    %s23 = sphi 0, %s20
    %s24 = sphi 0, %s21
    %s40 = sphi 0, %s42
    %s43 = sphi 0, %s40
    %s44 = sphi 0, %s43
    %s60 = sphi 0, %s44
    %s68 = sphi 0, %s70
    %s71 = sphi 0, %s68
    %s72 = sphi 0, %s71
    %s88 = sphi 0, %s72
    %s94 = sphi 0, %s96
    %s97 = sphi 0, %s94
    %s98 = sphi 0, %s97
    %s114 = sphi 0, %s98
    %s122 = sphi 0, %s124
    %s125 = sphi 0, %s122
    %s126 = sphi 0, %s125
    %s142 = sphi 0, %s126
  $region4: #{gat_forward.13} parent=0 // loop_header_branch
    %12 = sbr.rel (%p10) target = $region8
  $region5: #{gat_forward.13} parent=0 // loop_body
    %s14 = ssub.s32 %s9, 1
    %s15 = ssub.s32 %s9, 2
    %s25 = sadd.s32 1, %s18
    %p26 = scmp.ge.s32.totalorder %s25, 1
    %s27 = scalar_select %p26, 0, %s25
    %s28 = sadd.s32 1, %s17
    %s29 = scalar_select %p26, %s28, %s17
    %p30 = scmp.ge.s32.totalorder %s29, 1
    %s31 = scalar_select %p30, 0, %s29
    %s32 = sadd.s32 1, %s16
    %s33 = scalar_select %p30, %s32, %s16
    %p34 = scmp.ge.s32.totalorder %s33, 4
    %s35 = scalar_select %p34, 0, %s33
    %s36 = ssub.s32 %s18, %s27
    %s37 = ssub.s32 %s17, %s31
    %s38 = sor.u32 %s36, %s37
    %p39 = scmp.eq.s32.totalorder %s38, 0
    %s41 = sadd.s32 %s40, 1
    %s42 = scalar_select %p39, %s40, %s41
    %p45 = pneg %p39
    %p46 = scmp.eq.s32.totalorder %s9, 3
    %p47 = por %p45, %p46
    %p48 = scmp.ne.s32.totalorder %s40, %s43
    %p49 = scmp.eq.s32.totalorder %s9, 0
    %p50 = por %p48, %p49
    %p51 = scmp.ne.s32.totalorder %s40, %s43
    %p52 = scmp.eq.s32.totalorder %s14, 3
    %p53 = por %p51, %p52
    %p54 = scmp.ne.s32.totalorder %s43, %s44
    %p55 = scmp.eq.s32.totalorder %s14, 0
    %p56 = por %p54, %p55
    %p57 = scmp.ne.s32.totalorder %s43, %s44
    %p58 = scmp.eq.s32.totalorder %s15, 3
    %p59 = por %p57, %p58
    %p61 = scmp.ne.s32.totalorder %s44, %s60
    %p62 = scmp.eq.s32.totalorder %s15, 0
    %p63 = por %p61, %p62
    %s64 = ssub.s32 %s16, %s35
    %s65 = ssub.s32 %s18, %s27
    %s66 = sor.u32 %s64, %s65
    %p67 = scmp.eq.s32.totalorder %s66, 0
    %s69 = sadd.s32 %s68, 1
    %s70 = scalar_select %p67, %s68, %s69
    %p73 = pneg %p67
    %p74 = scmp.eq.s32.totalorder %s9, 3
    %p75 = por %p73, %p74
    %p76 = scmp.ne.s32.totalorder %s68, %s71
    %p77 = scmp.eq.s32.totalorder %s9, 0
    %p78 = por %p76, %p77
    %p79 = scmp.ne.s32.totalorder %s68, %s71
    %p80 = scmp.eq.s32.totalorder %s14, 3
    %p81 = por %p79, %p80
    %p82 = scmp.ne.s32.totalorder %s71, %s72
    %p83 = scmp.eq.s32.totalorder %s14, 0
    %p84 = por %p82, %p83
    %p85 = scmp.ne.s32.totalorder %s71, %s72
    %p86 = scmp.eq.s32.totalorder %s15, 3
    %p87 = por %p85, %p86
    %p89 = scmp.ne.s32.totalorder %s72, %s88
    %p90 = scmp.eq.s32.totalorder %s15, 0
    %p91 = por %p89, %p90
    %s92 = ssub.s32 %s16, %s35
    %p93 = scmp.eq.s32.totalorder %s92, 0
    %s95 = sadd.s32 %s94, 1
    %s96 = scalar_select %p93, %s94, %s95
    %p99 = pneg %p93
    %p100 = scmp.eq.s32.totalorder %s9, 3
    %p101 = por %p99, %p100
    %p102 = scmp.ne.s32.totalorder %s94, %s97
    %p103 = scmp.eq.s32.totalorder %s9, 0
    %p104 = por %p102, %p103
    %p105 = scmp.ne.s32.totalorder %s94, %s97
    %p106 = scmp.eq.s32.totalorder %s14, 3
    %p107 = por %p105, %p106
    %p108 = scmp.ne.s32.totalorder %s97, %s98
    %p109 = scmp.eq.s32.totalorder %s14, 0
    %p110 = por %p108, %p109
    %p111 = scmp.ne.s32.totalorder %s97, %s98
    %p112 = scmp.eq.s32.totalorder %s15, 3
    %p113 = por %p111, %p112
    %p115 = scmp.ne.s32.totalorder %s98, %s114
    %p116 = scmp.eq.s32.totalorder %s15, 0
    %p117 = por %p115, %p116
    %s118 = ssub.s32 %s16, %s35
    %s119 = ssub.s32 %s17, %s31
    %s120 = sor.u32 %s118, %s119
    %p121 = scmp.eq.s32.totalorder %s120, 0
    %s123 = sadd.s32 %s122, 1
    %s124 = scalar_select %p121, %s122, %s123
    %p127 = pneg %p121
    %p128 = scmp.eq.s32.totalorder %s9, 3
    %p129 = por %p127, %p128
    %p130 = scmp.ne.s32.totalorder %s122, %s125
    %p131 = scmp.eq.s32.totalorder %s9, 0
    %p132 = por %p130, %p131
    %p133 = scmp.ne.s32.totalorder %s122, %s125
    %p134 = scmp.eq.s32.totalorder %s14, 3
    %p135 = por %p133, %p134
    %p136 = scmp.ne.s32.totalorder %s125, %s126
    %p137 = scmp.eq.s32.totalorder %s14, 0
    %p138 = por %p136, %p137
    %p139 = scmp.ne.s32.totalorder %s125, %s126
    %p140 = scmp.eq.s32.totalorder %s15, 3
    %p141 = por %p139, %p140
    %p143 = scmp.ne.s32.totalorder %s126, %s142
    %p144 = scmp.eq.s32.totalorder %s15, 0
    %p145 = por %p143, %p144
    %p146 = scmp.le.s32.totalorder 1, %s9
    %p147 = scmp.lt.s32.totalorder %s9, 5
    %p148 = pnand %p146, %p147
    %p149 = pneg %p148
    // Predicated region
    $region9: #{gat_forward.13} parent=5 // pred_check
      _
    $region10: #{gat_forward.13} parent=5 // pred_check_branch
      %151 = sbr.rel (%p148) target = $region12
    $region11: #{gat_forward.13} parent=5 // pred_region
      %s152 = ssub.s32 %s9, 1
      // Predicated region
      $region13: #{gat_forward.13} parent=11 // pred_check
        %p153 = pneg %p56
      $region14: #{gat_forward.13} parent=11 // pred_check_branch
        %155 = sbr.rel (%p153) target = $region16
      $region15: #{gat_forward.13} parent=11 // pred_region
        %s156 = smul.u32 2, %s20
        %p157 = scmp.lt.s32.totalorder %s21, 0
        %s158 = scalar_select %p157, %s21, 0
        %p159 = scmp.lt.s32.totalorder %s156, 1
        %s160 = scalar_select %p159, %s156, 1
        %s161 = smul.addr %s158, 2
        %s162 = sadd.s32 %s160, %s161
        %s163 = smul.addr %s162, 8
        %s164 = scalar_lea.vmem %s0, %s163
        %s165 = smul.u32 2, %s20
      $region16: #{gat_forward.13} parent=11 // pred_fallthru
        _
    $region12: #{gat_forward.13} parent=5 // pred_fallthru
      _
    %p166 = scmp.lt.s32.totalorder %s9, 4
    // Predicated region
    $region17: #{gat_forward.13} parent=5 // pred_check
      %p167 = pneg %p166
    $region18: #{gat_forward.13} parent=5 // pred_check_branch
      %169 = sbr.rel (%p167) target = $region20
    $region19: #{gat_forward.13} parent=5 // pred_region
      // Predicated region
      $region21: #{gat_forward.13} parent=19 // pred_check
        %p170 = pneg %p78
      $region22: #{gat_forward.13} parent=19 // pred_check_branch
        %172 = sbr.rel (%p170) target = $region24
      $region23: #{gat_forward.13} parent=19 // pred_region
        %p173 = scmp.lt.s32.totalorder %s16, 3
        %s174 = scalar_select %p173, %s16, 3
        %p175 = scmp.lt.s32.totalorder %s18, 0
        %s176 = scalar_select %p175, %s18, 0
        %s177 = smul.addr %s176, 4
        %s178 = smul.addr %s174, 4
        %s179 = sadd.s32 %s177, %s178
        %s180 = smul.addr %s179, 8
        %s181 = scalar_lea.vmem %s1, %s180
      $region24: #{gat_forward.13} parent=19 // pred_fallthru
        _
      // Predicated region
      $region25: #{gat_forward.13} parent=19 // pred_check
        %p182 = pneg %p104
      $region26: #{gat_forward.13} parent=19 // pred_check_branch
        %184 = sbr.rel (%p182) target = $region28
      $region27: #{gat_forward.13} parent=19 // pred_region
        %p185 = scmp.lt.s32.totalorder %s16, 3
        %s186 = scalar_select %p185, %s16, 3
        %s187 = scalar_lea.vmem %s2, %s186
      $region28: #{gat_forward.13} parent=19 // pred_fallthru
        _
    $region20: #{gat_forward.13} parent=5 // pred_fallthru
      _
    %p188 = scmp.le.s32.totalorder 1, %s9
    %p189 = scmp.lt.s32.totalorder %s9, 5
    %p190 = pnand %p188, %p189
    %p191 = pneg %p190
    // Predicated region
    $region29: #{gat_forward.13} parent=5 // pred_check
      _
    $region30: #{gat_forward.13} parent=5 // pred_check_branch
      %193 = sbr.rel (%p190) target = $region32
    $region31: #{gat_forward.13} parent=5 // pred_region
      %s194 = ssub.s32 %s9, 1
      %s195 = smul.u32 2, %s20
      %p196 = scmp.lt.s32.totalorder %s21, 0
      %s197 = scalar_select %p196, %s21, 0
      %p198 = scmp.lt.s32.totalorder %s195, 1
      %s199 = scalar_select %p198, %s195, 1
      %s200 = smul.addr %s197, 2
      %s201 = sadd.s32 %s199, %s200
      %s202 = smul.addr %s201, 8
      %s203 = scalar_lea.vmem %s0, %s202
      %p204 = pneg %p56
      %p205 = pneg %p53
      %p206 = scmp.lt.s32.totalorder %s19, 3
      %s207 = scalar_select %p206, %s19, 3
      %p208 = scmp.lt.s32.totalorder %s21, 0
      %s209 = scalar_select %p208, %s21, 0
      %s210 = smul.addr %s209, 4
      %s211 = smul.addr %s207, 4
      %s212 = sadd.s32 %s210, %s211
      %s213 = smul.addr %s212, 8
      %s214 = scalar_lea.vmem %s1, %s213
      %p215 = pneg %p84
      %p216 = pneg %p81
      %p217 = scmp.lt.s32.totalorder %s19, 3
      %s218 = scalar_select %p217, %s19, 3
      %s219 = scalar_lea.vmem %s2, %s218
      %p220 = pneg %p110
      %p221 = pneg %p107
      %p222 = pneg %p138
      %p223 = pneg %p135
      %s224 = smul.u32 2, %s20
      %p225 = scmp.lt.s32.totalorder %s19, 3
      %s226 = scalar_select %p225, %s19, 3
      %p227 = scmp.lt.s32.totalorder %s224, 1
      %s228 = scalar_select %p227, %s224, 1
      %s229 = smul.addr %s226, 2
      %s230 = sadd.s32 %s228, %s229
      %s231 = smul.addr %s230, 8
      %s232 = scalar_lea.vmem %s3, %s231
      %s233 = smul.u32 2, %s20
      %p234 = scmp.lt.s32.totalorder %s21, 0
      %s235 = scalar_select %p234, %s21, 0
      %p236 = scmp.lt.s32.totalorder %s233, 1
      %s237 = scalar_select %p236, %s233, 1
      %s238 = smul.addr %s235, 2
      %s239 = sadd.s32 %s237, %s238
      %s240 = smul.addr %s239, 8
      %s241 = scalar_lea.vmem %s0, %s240
      %s242 = smul.u32 2, %s20
      %p243 = scmp.lt.s32.totalorder %s19, 3
      %s244 = scalar_select %p243, %s19, 3
      %p245 = scmp.lt.s32.totalorder %s21, 0
      %s246 = scalar_select %p245, %s21, 0
      %s247 = smul.addr %s246, 4
      %s248 = smul.addr %s244, 4
      %s249 = sadd.s32 %s247, %s248
      %s250 = smul.addr %s249, 8
      %s251 = scalar_lea.vmem %s1, %s250
      %p252 = scmp.lt.s32.totalorder %s19, 3
      %s253 = scalar_select %p252, %s19, 3
      %s254 = scalar_lea.vmem %s2, %s253
      %s255 = smul.u32 2, %s20
      %p256 = scmp.lt.s32.totalorder %s19, 3
      %s257 = scalar_select %p256, %s19, 3
      %p258 = scmp.lt.s32.totalorder %s255, 1
      %s259 = scalar_select %p258, %s255, 1
      %s260 = smul.addr %s257, 2
      %s261 = sadd.s32 %s259, %s260
      %s262 = smul.addr %s261, 8
      %s263 = scalar_lea.vmem %s3, %s262
      %s264 = smul.u32 2, %s20
      %v265 = vld [vmem:[%s241] sm:$0xff]
      %v266 = vld [vmem:[%s241 + $0x8] sm:$0xff]
      %v267 = vld [vmem:[%s251] sm:$0xff]
      %v268 = vld [vmem:[%s251 + $0x8] sm:$0xff]
      %v269 = vld [vmem:[%s251 + $0x10] sm:$0xff]
      %v270 = vld [vmem:[%s251 + $0x18] sm:$0xff]
      %vm271 = vcmask 261120
      %v273 = vsel %vm271, %v265, 0
      %v276 = vsel %vm271, %v266, 0
      %278 = vmatprep.subr.mxu0 0.0
      %279 = vmatpush1.msra.mxu0 0.0
      %280 = vmatprep.subr.mxu0 0.0
      %281 = vmatpush1.msra.mxu0 0.0
      %282 = vmatprep.subr.mxu0 0.0
      %283 = vmatpush1.msra.mxu0 0.0
      %284 = vmatprep.subr.mxu0 0.0
      %285 = vmatpush1.msra.mxu0 0.0
      %286 = vmatprep.subr.mxu0 0.0
      %287 = vmatpush1.msra.mxu0 0.0
      %288 = vmatprep.subr.mxu0 0.0
      %289 = vmatpush1.msra.mxu0 0.0
      %290 = vmatprep.subr.mxu0 0.0
      %291 = vmatpush1.msra.mxu0 0.0
      %292 = vmatprep.subr.mxu0 0.0
      %293 = vmatpush1.msra.mxu0 0.0
      %294 = vmatprep.subr.mxu0 0.0
      %295 = vmatpush1.msra.mxu0 0.0
      %296 = vmatprep.subr.mxu0 0.0
      %297 = vmatpush1.msra.mxu0 0.0
      %298 = vmatprep.subr.mxu0 0.0
      %299 = vmatpush1.msra.mxu0 0.0
      %300 = vmatprep.subr.mxu0 0.0
      %301 = vmatpush1.msra.mxu0 0.0
      %302 = vmatprep.subr.mxu0 0.0
      %303 = vmatpush1.msra.mxu0 %v270
      %304 = vmatprep.subr.mxu0 0.0
      %305 = vmatpush1.msra.mxu0 %v269
      %306 = vmatprep.subr.mxu0 0.0
      %307 = vmatpush1.msra.mxu0 %v268
      %308 = vmatprep.subr.mxu0 0.0
      %309 = vmatpush1.msra.mxu0 %v267
      %310 = vmatprep.subr.mxu0 0.0
      %311 = vmatpush2.msra.mxu0 0.0
      %312 = vmatprep.subr.mxu0 0.0
      %313 = vmatpush2.msra.mxu0 0.0
      %314 = vmatprep.subr.mxu0 0.0
      %315 = vmatpush2.msra.mxu0 0.0
      %316 = vmatprep.subr.mxu0 0.0
      %317 = vmatpush2.msra.mxu0 0.0
      %318 = vmatprep.subr.mxu0 0.0
      %319 = vmatpush2.msra.mxu0 0.0
      %320 = vmatprep.subr.mxu0 0.0
      %321 = vmatpush2.msra.mxu0 0.0
      %322 = vmatprep.subr.mxu0 0.0
      %323 = vmatpush2.msra.mxu0 0.0
      %324 = vmatprep.subr.mxu0 0.0
      %325 = vmatpush2.msra.mxu0 0.0
      %326 = vmatprep.subr.mxu0 0.0
      %327 = vmatpush2.msra.mxu0 0.0
      %328 = vmatprep.subr.mxu0 0.0
      %329 = vmatpush2.msra.mxu0 0.0
      %330 = vmatprep.subr.mxu0 0.0
      %331 = vmatpush2.msra.mxu0 0.0
      %332 = vmatprep.subr.mxu0 0.0
      %333 = vmatpush2.msra.mxu0 0.0
      %334 = vmatprep.subr.mxu0 0.0
      %335 = vmatpush2.msra.mxu0 0.0
      %336 = vmatprep.subr.mxu0 0.0
      %337 = vmatpush2.msra.mxu0 0.0
      %338 = vmatprep.subr.mxu0 0.0
      %339 = vmatpush2.msra.mxu0 0.0
      %340 = vmatprep.subr.mxu0 0.0
      %341 = vmatpush2.msra.mxu0 0.0
      %342 = vmatprep.mubr.f32.mxu0 0.0
      %343 = vmatmul.mubr.f32.gmra.mxu0 %v273
      %v344 = vpop.f32.mrf.mxu0
      %v345 = vadd.f32 0.0, %v344
      %v346 = vpop.f32.mrf.mxu0
      %347 = vmatprep.mubr.f32.mxu0 0.0
      %348 = vmatmul.mubr.f32.gmra.mxu0 %v276
      %v349 = vpop.f32.mrf.mxu0
      %v350 = vadd.f32 0.0, %v349
      %v351 = vpop.f32.mrf.mxu0
      %352 = vdwg.mxu0
      %p353 = scmp.eq.s32.totalorder %s21, 0
      // Predicated region
      $region33: #{gat_forward.13} parent=31 // pred_check
        %p354 = pneg %p353
      $region34: #{gat_forward.13} parent=31 // pred_check_branch
        %356 = sbr.rel (%p354) target = $region36
      $region35: #{gat_forward.13} parent=31 // pred_region
        %v357 = vld [vmem:[%s254] sm:$0x1]
        %v359 = vlaneseq
        %v360 = vshrl.u32 %v359, 7
        %v361 = vsub.s32 0, %v360
        %v362 = vrot.slane %v357, %v361
        %v364 = vadd.f32 %v345, %v362
        %v365 = vadd.f32 %v350, %v362
        %vm366 = vcmask 130048
        %367 = vst.msk [vmem:[%s263] sm:$0xff] %vm366, %v364
        %368 = vst.msk [vmem:[%s263 + $0x8] sm:$0xff] %vm366, %v365
      $region36: #{gat_forward.13} parent=31 // pred_fallthru
        _
      %p369 = scmp.gt.s32.totalorder %s21, 0
      // Predicated region
      $region37: #{gat_forward.13} parent=31 // pred_check
        %p370 = pneg %p369
      $region38: #{gat_forward.13} parent=31 // pred_check_branch
        %372 = sbr.rel (%p370) target = $region40
      $region39: #{gat_forward.13} parent=31 // pred_region
        %v373 = vld [vmem:[%s263] sm:$0xff]
        %v374 = vld [vmem:[%s263 + $0x8] sm:$0xff]
        %v375 = vadd.f32 %v373, %v345
        %v376 = vadd.f32 %v374, %v350
        %vm377 = vcmask 130048
        %378 = vst.msk [vmem:[%s263] sm:$0xff] %vm377, %v375
        %379 = vst.msk [vmem:[%s263 + $0x8] sm:$0xff] %vm377, %v376
      $region40: #{gat_forward.13} parent=31 // pred_fallthru
        _
      %s380 = smul.u32 2, %s20
      %p381 = scmp.lt.s32.totalorder %s19, 3
      %s382 = scalar_select %p381, %s19, 3
      %p383 = scmp.lt.s32.totalorder %s380, 1
      %s384 = scalar_select %p383, %s380, 1
      %s385 = smul.addr %s382, 2
      %s386 = sadd.s32 %s384, %s385
      %s387 = smul.addr %s386, 8
      %s388 = scalar_lea.vmem %s3, %s387
      // Predicated region
      $region41: #{gat_forward.13} parent=31 // pred_check
        %p389 = pneg %p135
      $region42: #{gat_forward.13} parent=31 // pred_check_branch
        %391 = sbr.rel (%p389) target = $region44
      $region43: #{gat_forward.13} parent=31 // pred_region
        %s392 = smul.u32 2, %s20
      $region44: #{gat_forward.13} parent=31 // pred_fallthru
        _
    $region32: #{gat_forward.13} parent=5 // pred_fallthru
      _
    %p393 = scmp.le.s32.totalorder 2, %s9
    // Predicated region
    $region45: #{gat_forward.13} parent=5 // pred_check
      %p394 = pneg %p393
    $region46: #{gat_forward.13} parent=5 // pred_check_branch
      %396 = sbr.rel (%p394) target = $region48
    $region47: #{gat_forward.13} parent=5 // pred_region
      %s397 = ssub.s32 %s9, 2
      // Predicated region
      $region49: #{gat_forward.13} parent=47 // pred_check
        %p398 = pneg %p141
      $region50: #{gat_forward.13} parent=47 // pred_check_branch
        %400 = sbr.rel (%p398) target = $region52
      $region51: #{gat_forward.13} parent=47 // pred_region
        %s401 = smul.u32 2, %s23
        %p402 = scmp.lt.s32.totalorder %s22, 3
        %s403 = scalar_select %p402, %s22, 3
        %p404 = scmp.lt.s32.totalorder %s401, 1
        %s405 = scalar_select %p404, %s401, 1
        %s406 = smul.addr %s403, 2
        %s407 = sadd.s32 %s405, %s406
        %s408 = smul.addr %s407, 8
        %s409 = scalar_lea.vmem %s3, %s408
      $region52: #{gat_forward.13} parent=47 // pred_fallthru
        _
    $region48: #{gat_forward.13} parent=5 // pred_fallthru
      _
  $region6: #{gat_forward.13} parent=0 // loop_footer
    %s13 = sadd.s32 1, %s9
  $region7: #{gat_forward.13} parent=0 // loop_footer_branch
    %8 = sbr.rel target = $region3
  $region8: #{gat_forward.13} parent=0 // loop_exit
    _

// kernel: gat_forward.14
$region0: #{gat_forward.14}
  #allocation0 [shape = 'u32[]', space=smem, size = 0x4, offset = 0x4, fixed_abs, tag = 'smem constant byte address 0x4 - core index']
  #allocation1 [shape = 'u32[144,128]{1,0:T(1,128)}', space=vmem, size = 0x12000, scoped, tag = 'internal scratch']
  #allocation2 [shape = 'f32[16,1]{1,0:T(8,128)}', space=vmem, size = 0x2000, scoped, tag = 'scratch operand']
  #allocation3 [shape = 'f32[16,1]{1,0:T(8,128)}', space=vmem, size = 0x2000, scoped, tag = 'scratch operand']
  #allocation4 [shape = 'f32[16,16]{1,0:T(8,128)}', space=vmem, size = 0x2000, scoped, tag = 'scratch operand']
  %s0 = inlined_call_operand.vmem [shape: f32[4,16,16], index: 0, kind: input, shape index: {}, may-alias: {0,1}]
  %s1 = inlined_call_operand.vmem [shape: f32[4,16,16], index: 1, kind: input, shape index: {}, may-alias: {0,1}]
  %s2 = inlined_call_operand.vmem [shape: f32[2,1,16], index: 2, kind: input, shape index: {}]
  %s3 = inlined_call_operand.vmem [shape: f32[16,16], index: 3, kind: input, shape index: {}]
  %s4 = inlined_call_operand.vmem [shape: f32[2,1,16], index: 4, kind: input, shape index: {}]
  %s5 = inlined_call_operand.vmem [shape: f32[2,16,16], index: 5, kind: output, shape index: {}]
  %s6 = sld [smem:[#allocation0]]
  $region61: #{gat_forward.14} parent=0
    _
  %s8 = ssub.s32 1, %s6
  %s9 = scalar_select 0, %s8, %s6
  loop: start=0, step=1, limit=4
  $region2: #{gat_forward.14} parent=0 // loop_pre_header
    _
  $region3: #{gat_forward.14} parent=0 // loop_header
    %s11 = sphi 0, %s15
    %p12 = scmp.ge.s32.totalorder %s11, 4
    %s18 = sphi 0, %s37
    %s19 = sphi 0, %s33
    %s20 = sphi 0, %s29
    %s21 = sphi 0, %s18
    %s22 = sphi 0, %s19
    %s23 = sphi 0, %s20
    %s24 = sphi 0, %s21
    %s25 = sphi 0, %s22
    %s26 = sphi 0, %s23
    %s42 = sphi 0, %s44
    %s45 = sphi 0, %s42
    %s46 = sphi 0, %s45
    %s62 = sphi 0, %s46
    %s72 = sphi 0, %s74
    %s75 = sphi 0, %s72
    %s76 = sphi 0, %s75
    %s92 = sphi 0, %s76
    %s98 = sphi 0, %s100
    %s101 = sphi 0, %s98
    %s102 = sphi 0, %s101
    %s118 = sphi 0, %s102
    %s126 = sphi 0, %s128
    %s129 = sphi 0, %s126
    %s130 = sphi 0, %s129
    %s146 = sphi 0, %s130
    %s152 = sphi 0, %s154
    %s155 = sphi 0, %s152
    %s156 = sphi 0, %s155
    %s172 = sphi 0, %s156
    %s180 = sphi 0, %s182
    %s183 = sphi 0, %s180
    %s184 = sphi 0, %s183
    %s200 = sphi 0, %s184
  $region4: #{gat_forward.14} parent=0 // loop_header_branch
    %14 = sbr.rel (%p12) target = $region8
  $region5: #{gat_forward.14} parent=0 // loop_body
    %s16 = ssub.s32 %s11, 1
    %s17 = ssub.s32 %s11, 2
    %s27 = sadd.s32 1, %s20
    %p28 = scmp.ge.s32.totalorder %s27, 1
    %s29 = scalar_select %p28, 0, %s27
    %s30 = sadd.s32 1, %s19
    %s31 = scalar_select %p28, %s30, %s19
    %p32 = scmp.ge.s32.totalorder %s31, 1
    %s33 = scalar_select %p32, 0, %s31
    %s34 = sadd.s32 1, %s18
    %s35 = scalar_select %p32, %s34, %s18
    %p36 = scmp.ge.s32.totalorder %s35, 2
    %s37 = scalar_select %p36, 0, %s35
    %s38 = ssub.s32 %s18, %s37
    %s39 = ssub.s32 %s20, %s29
    %s40 = sor.u32 %s38, %s39
    %p41 = scmp.eq.s32.totalorder %s40, 0
    %s43 = sadd.s32 %s42, 1
    %s44 = scalar_select %p41, %s42, %s43
    %p47 = pneg %p41
    %p48 = scmp.eq.s32.totalorder %s11, 1
    %p49 = por %p47, %p48
    %p50 = scmp.ne.s32.totalorder %s42, %s45
    %p51 = scmp.eq.s32.totalorder %s11, 0
    %p52 = por %p50, %p51
    %p53 = scmp.ne.s32.totalorder %s42, %s45
    %p54 = scmp.eq.s32.totalorder %s16, 1
    %p55 = por %p53, %p54
    %p56 = scmp.ne.s32.totalorder %s45, %s46
    %p57 = scmp.eq.s32.totalorder %s16, 0
    %p58 = por %p56, %p57
    %p59 = scmp.ne.s32.totalorder %s45, %s46
    %p60 = scmp.eq.s32.totalorder %s17, 1
    %p61 = por %p59, %p60
    %p63 = scmp.ne.s32.totalorder %s46, %s62
    %p64 = scmp.eq.s32.totalorder %s17, 0
    %p65 = por %p63, %p64
    %s66 = sadd.s32 %s18, 2
    %s67 = sadd.s32 %s37, 2
    %s68 = ssub.s32 %s66, %s67
    %s69 = ssub.s32 %s19, %s33
    %s70 = sor.u32 %s68, %s69
    %p71 = scmp.eq.s32.totalorder %s70, 0
    %s73 = sadd.s32 %s72, 1
    %s74 = scalar_select %p71, %s72, %s73
    %p77 = pneg %p71
    %p78 = scmp.eq.s32.totalorder %s11, 1
    %p79 = por %p77, %p78
    %p80 = scmp.ne.s32.totalorder %s72, %s75
    %p81 = scmp.eq.s32.totalorder %s11, 0
    %p82 = por %p80, %p81
    %p83 = scmp.ne.s32.totalorder %s72, %s75
    %p84 = scmp.eq.s32.totalorder %s16, 1
    %p85 = por %p83, %p84
    %p86 = scmp.ne.s32.totalorder %s75, %s76
    %p87 = scmp.eq.s32.totalorder %s16, 0
    %p88 = por %p86, %p87
    %p89 = scmp.ne.s32.totalorder %s75, %s76
    %p90 = scmp.eq.s32.totalorder %s17, 1
    %p91 = por %p89, %p90
    %p93 = scmp.ne.s32.totalorder %s76, %s92
    %p94 = scmp.eq.s32.totalorder %s17, 0
    %p95 = por %p93, %p94
    %s96 = ssub.s32 %s18, %s37
    %p97 = scmp.eq.s32.totalorder %s96, 0
    %s99 = sadd.s32 %s98, 1
    %s100 = scalar_select %p97, %s98, %s99
    %p103 = pneg %p97
    %p104 = scmp.eq.s32.totalorder %s11, 1
    %p105 = por %p103, %p104
    %p106 = scmp.ne.s32.totalorder %s98, %s101
    %p107 = scmp.eq.s32.totalorder %s11, 0
    %p108 = por %p106, %p107
    %p109 = scmp.ne.s32.totalorder %s98, %s101
    %p110 = scmp.eq.s32.totalorder %s16, 1
    %p111 = por %p109, %p110
    %p112 = scmp.ne.s32.totalorder %s101, %s102
    %p113 = scmp.eq.s32.totalorder %s16, 0
    %p114 = por %p112, %p113
    %p115 = scmp.ne.s32.totalorder %s101, %s102
    %p116 = scmp.eq.s32.totalorder %s17, 1
    %p117 = por %p115, %p116
    %p119 = scmp.ne.s32.totalorder %s102, %s118
    %p120 = scmp.eq.s32.totalorder %s17, 0
    %p121 = por %p119, %p120
    %s122 = ssub.s32 %s19, %s33
    %s123 = ssub.s32 %s20, %s29
    %s124 = sor.u32 %s122, %s123
    %p125 = scmp.eq.s32.totalorder %s124, 0
    %s127 = sadd.s32 %s126, 1
    %s128 = scalar_select %p125, %s126, %s127
    %p131 = pneg %p125
    %p132 = scmp.eq.s32.totalorder %s11, 1
    %p133 = por %p131, %p132
    %p134 = scmp.ne.s32.totalorder %s126, %s129
    %p135 = scmp.eq.s32.totalorder %s11, 0
    %p136 = por %p134, %p135
    %p137 = scmp.ne.s32.totalorder %s126, %s129
    %p138 = scmp.eq.s32.totalorder %s16, 1
    %p139 = por %p137, %p138
    %p140 = scmp.ne.s32.totalorder %s129, %s130
    %p141 = scmp.eq.s32.totalorder %s16, 0
    %p142 = por %p140, %p141
    %p143 = scmp.ne.s32.totalorder %s129, %s130
    %p144 = scmp.eq.s32.totalorder %s17, 1
    %p145 = por %p143, %p144
    %p147 = scmp.ne.s32.totalorder %s130, %s146
    %p148 = scmp.eq.s32.totalorder %s17, 0
    %p149 = por %p147, %p148
    %s150 = ssub.s32 %s18, %s37
    %p151 = scmp.eq.s32.totalorder %s150, 0
    %s153 = sadd.s32 %s152, 1
    %s154 = scalar_select %p151, %s152, %s153
    %p157 = pneg %p151
    %p158 = scmp.eq.s32.totalorder %s11, 1
    %p159 = por %p157, %p158
    %p160 = scmp.ne.s32.totalorder %s152, %s155
    %p161 = scmp.eq.s32.totalorder %s11, 0
    %p162 = por %p160, %p161
    %p163 = scmp.ne.s32.totalorder %s152, %s155
    %p164 = scmp.eq.s32.totalorder %s16, 1
    %p165 = por %p163, %p164
    %p166 = scmp.ne.s32.totalorder %s155, %s156
    %p167 = scmp.eq.s32.totalorder %s16, 0
    %p168 = por %p166, %p167
    %p169 = scmp.ne.s32.totalorder %s155, %s156
    %p170 = scmp.eq.s32.totalorder %s17, 1
    %p171 = por %p169, %p170
    %p173 = scmp.ne.s32.totalorder %s156, %s172
    %p174 = scmp.eq.s32.totalorder %s17, 0
    %p175 = por %p173, %p174
    %s176 = ssub.s32 %s18, %s37
    %s177 = ssub.s32 %s19, %s33
    %s178 = sor.u32 %s176, %s177
    %p179 = scmp.eq.s32.totalorder %s178, 0
    %s181 = sadd.s32 %s180, 1
    %s182 = scalar_select %p179, %s180, %s181
    %p185 = pneg %p179
    %p186 = scmp.eq.s32.totalorder %s11, 1
    %p187 = por %p185, %p186
    %p188 = scmp.ne.s32.totalorder %s180, %s183
    %p189 = scmp.eq.s32.totalorder %s11, 0
    %p190 = por %p188, %p189
    %p191 = scmp.ne.s32.totalorder %s180, %s183
    %p192 = scmp.eq.s32.totalorder %s16, 1
    %p193 = por %p191, %p192
    %p194 = scmp.ne.s32.totalorder %s183, %s184
    %p195 = scmp.eq.s32.totalorder %s16, 0
    %p196 = por %p194, %p195
    %p197 = scmp.ne.s32.totalorder %s183, %s184
    %p198 = scmp.eq.s32.totalorder %s17, 1
    %p199 = por %p197, %p198
    %p201 = scmp.ne.s32.totalorder %s184, %s200
    %p202 = scmp.eq.s32.totalorder %s17, 0
    %p203 = por %p201, %p202
    %p204 = scmp.le.s32.totalorder 1, %s11
    %p205 = scmp.lt.s32.totalorder %s11, 3
    %p206 = pnand %p204, %p205
    %p207 = pneg %p206
    // Predicated region
    $region9: #{gat_forward.14} parent=5 // pred_check
      _
    $region10: #{gat_forward.14} parent=5 // pred_check_branch
      %209 = sbr.rel (%p206) target = $region12
    $region11: #{gat_forward.14} parent=5 // pred_region
      %s210 = ssub.s32 %s11, 1
      // Predicated region
      $region13: #{gat_forward.14} parent=11 // pred_check
        %p211 = pneg %p142
      $region14: #{gat_forward.14} parent=11 // pred_check_branch
        %213 = sbr.rel (%p211) target = $region16
      $region15: #{gat_forward.14} parent=11 // pred_region
        %s214 = smul.u32 2, %s22
        %p215 = scmp.lt.s32.totalorder %s214, 1
        %s216 = scalar_select %p215, %s214, 1
        %p217 = scmp.lt.s32.totalorder %s23, 0
        %s218 = scalar_select %p217, %s23, 0
        %s219 = sadd.s32 %s218, %s216
        %s220 = smul.addr %s219, 8
        %s221 = scalar_lea.vmem %s3, %s220
        %s222 = smul.u32 2, %s22
      $region16: #{gat_forward.14} parent=11 // pred_fallthru
        _
    $region12: #{gat_forward.14} parent=5 // pred_fallthru
      _
    %p223 = scmp.lt.s32.totalorder %s11, 2
    // Predicated region
    $region17: #{gat_forward.14} parent=5 // pred_check
      %p224 = pneg %p223
    $region18: #{gat_forward.14} parent=5 // pred_check_branch
      %226 = sbr.rel (%p224) target = $region20
    $region19: #{gat_forward.14} parent=5 // pred_region
      // Predicated region
      $region21: #{gat_forward.14} parent=19 // pred_check
        %p227 = pneg %p52
      $region22: #{gat_forward.14} parent=19 // pred_check_branch
        %229 = sbr.rel (%p227) target = $region24
      $region23: #{gat_forward.14} parent=19 // pred_region
        %s230 = smul.u32 2, %s20
        %p231 = scmp.lt.s32.totalorder %s18, 3
        %s232 = scalar_select %p231, %s18, 3
        %p233 = scmp.lt.s32.totalorder %s230, 1
        %s234 = scalar_select %p233, %s230, 1
        %s235 = smul.addr %s232, 2
        %s236 = sadd.s32 %s234, %s235
        %s237 = smul.addr %s236, 8
        %s238 = scalar_lea.vmem %s0, %s237
        %s239 = smul.u32 2, %s20
      $region24: #{gat_forward.14} parent=19 // pred_fallthru
        _
      // Predicated region
      $region25: #{gat_forward.14} parent=19 // pred_check
        %p240 = pneg %p82
      $region26: #{gat_forward.14} parent=19 // pred_check_branch
        %242 = sbr.rel (%p240) target = $region28
      $region27: #{gat_forward.14} parent=19 // pred_region
        %s243 = sadd.s32 %s18, 2
        %s244 = smul.u32 2, %s19
        %p245 = scmp.lt.s32.totalorder %s243, 3
        %s246 = scalar_select %p245, %s243, 3
        %p247 = scmp.lt.s32.totalorder %s244, 1
        %s248 = scalar_select %p247, %s244, 1
        %s249 = smul.addr %s246, 2
        %s250 = sadd.s32 %s248, %s249
        %s251 = smul.addr %s250, 8
        %s252 = scalar_lea.vmem %s1, %s251
        %s253 = sadd.s32 %s18, 2
        %s254 = smul.u32 2, %s19
      $region28: #{gat_forward.14} parent=19 // pred_fallthru
        _
      // Predicated region
      $region29: #{gat_forward.14} parent=19 // pred_check
        %p255 = pneg %p108
      $region30: #{gat_forward.14} parent=19 // pred_check_branch
        %257 = sbr.rel (%p255) target = $region32
      $region31: #{gat_forward.14} parent=19 // pred_region
        %p258 = scmp.lt.s32.totalorder %s18, 1
        %s259 = scalar_select %p258, %s18, 1
        %s260 = scalar_lea.vmem %s2, %s259
      $region32: #{gat_forward.14} parent=19 // pred_fallthru
        _
      // Predicated region
      $region33: #{gat_forward.14} parent=19 // pred_check
        %p261 = pneg %p162
      $region34: #{gat_forward.14} parent=19 // pred_check_branch
        %263 = sbr.rel (%p261) target = $region36
      $region35: #{gat_forward.14} parent=19 // pred_region
        %p264 = scmp.lt.s32.totalorder %s18, 1
        %s265 = scalar_select %p264, %s18, 1
        %s266 = scalar_lea.vmem %s4, %s265
      $region36: #{gat_forward.14} parent=19 // pred_fallthru
        _
    $region20: #{gat_forward.14} parent=5 // pred_fallthru
      _
    %p267 = scmp.le.s32.totalorder 1, %s11
    %p268 = scmp.lt.s32.totalorder %s11, 3
    %p269 = pnand %p267, %p268
    %p270 = pneg %p269
    // Predicated region
    $region37: #{gat_forward.14} parent=5 // pred_check
      _
    $region38: #{gat_forward.14} parent=5 // pred_check_branch
      %272 = sbr.rel (%p269) target = $region40
    $region39: #{gat_forward.14} parent=5 // pred_region
      %s273 = ssub.s32 %s11, 1
      %s274 = smul.u32 2, %s23
      %p275 = scmp.lt.s32.totalorder %s21, 3
      %s276 = scalar_select %p275, %s21, 3
      %p277 = scmp.lt.s32.totalorder %s274, 1
      %s278 = scalar_select %p277, %s274, 1
      %s279 = smul.addr %s276, 2
      %s280 = sadd.s32 %s278, %s279
      %s281 = smul.addr %s280, 8
      %s282 = scalar_lea.vmem %s0, %s281
      %p283 = pneg %p58
      %p284 = pneg %p55
      %s285 = sadd.s32 %s21, 2
      %s286 = smul.u32 2, %s22
      %p287 = scmp.lt.s32.totalorder %s285, 3
      %s288 = scalar_select %p287, %s285, 3
      %p289 = scmp.lt.s32.totalorder %s286, 1
      %s290 = scalar_select %p289, %s286, 1
      %s291 = smul.addr %s288, 2
      %s292 = sadd.s32 %s290, %s291
      %s293 = smul.addr %s292, 8
      %s294 = scalar_lea.vmem %s1, %s293
      %p295 = pneg %p88
      %p296 = pneg %p85
      %p297 = scmp.lt.s32.totalorder %s21, 1
      %s298 = scalar_select %p297, %s21, 1
      %s299 = scalar_lea.vmem %s2, %s298
      %p300 = pneg %p114
      %p301 = pneg %p111
      %s302 = smul.u32 2, %s22
      %p303 = scmp.lt.s32.totalorder %s302, 1
      %s304 = scalar_select %p303, %s302, 1
      %p305 = scmp.lt.s32.totalorder %s23, 0
      %s306 = scalar_select %p305, %s23, 0
      %s307 = sadd.s32 %s306, %s304
      %s308 = smul.addr %s307, 8
      %s309 = scalar_lea.vmem %s3, %s308
      %p310 = pneg %p142
      %p311 = pneg %p139
      %p312 = scmp.lt.s32.totalorder %s21, 1
      %s313 = scalar_select %p312, %s21, 1
      %s314 = scalar_lea.vmem %s4, %s313
      %p315 = pneg %p168
      %p316 = pneg %p165
      %p317 = pneg %p196
      %p318 = pneg %p193
      %s319 = smul.u32 2, %s22
      %p320 = scmp.lt.s32.totalorder %s21, 1
      %s321 = scalar_select %p320, %s21, 1
      %p322 = scmp.lt.s32.totalorder %s319, 1
      %s323 = scalar_select %p322, %s319, 1
      %s324 = smul.addr %s321, 2
      %s325 = sadd.s32 %s323, %s324
      %s326 = smul.addr %s325, 8
      %s327 = scalar_lea.vmem %s5, %s326
      %s328 = smul.u32 2, %s23
      %p329 = scmp.lt.s32.totalorder %s21, 3
      %s330 = scalar_select %p329, %s21, 3
      %p331 = scmp.lt.s32.totalorder %s328, 1
      %s332 = scalar_select %p331, %s328, 1
      %s333 = smul.addr %s330, 2
      %s334 = sadd.s32 %s332, %s333
      %s335 = smul.addr %s334, 8
      %s336 = scalar_lea.vmem %s0, %s335
      %s337 = smul.u32 2, %s23
      %s338 = sadd.s32 %s21, 2
      %s339 = smul.u32 2, %s22
      %p340 = scmp.lt.s32.totalorder %s338, 3
      %s341 = scalar_select %p340, %s338, 3
      %p342 = scmp.lt.s32.totalorder %s339, 1
      %s343 = scalar_select %p342, %s339, 1
      %s344 = smul.addr %s341, 2
      %s345 = sadd.s32 %s343, %s344
      %s346 = smul.addr %s345, 8
      %s347 = scalar_lea.vmem %s1, %s346
      %s348 = sadd.s32 %s21, 2
      %s349 = smul.u32 2, %s22
      %p350 = scmp.lt.s32.totalorder %s21, 1
      %s351 = scalar_select %p350, %s21, 1
      %s352 = scalar_lea.vmem %s2, %s351
      %s353 = smul.u32 2, %s22
      %p354 = scmp.lt.s32.totalorder %s353, 1
      %s355 = scalar_select %p354, %s353, 1
      %p356 = scmp.lt.s32.totalorder %s23, 0
      %s357 = scalar_select %p356, %s23, 0
      %s358 = sadd.s32 %s357, %s355
      %s359 = smul.addr %s358, 8
      %s360 = scalar_lea.vmem %s3, %s359
      %s361 = smul.u32 2, %s22
      %p362 = scmp.lt.s32.totalorder %s21, 1
      %s363 = scalar_select %p362, %s21, 1
      %s364 = scalar_lea.vmem %s4, %s363
      %s365 = smul.u32 2, %s22
      %p366 = scmp.lt.s32.totalorder %s21, 1
      %s367 = scalar_select %p366, %s21, 1
      %p368 = scmp.lt.s32.totalorder %s365, 1
      %s369 = scalar_select %p368, %s365, 1
      %s370 = smul.addr %s367, 2
      %s371 = sadd.s32 %s369, %s370
      %s372 = smul.addr %s371, 8
      %s373 = scalar_lea.vmem %s5, %s372
      %s374 = smul.u32 2, %s22
      %p375 = scmp.eq.s32.totalorder %s23, 0
      // Predicated region
      $region41: #{gat_forward.14} parent=39 // pred_check
        %p376 = pneg %p375
      $region42: #{gat_forward.14} parent=39 // pred_check_branch
        %378 = sbr.rel (%p376) target = $region44
      $region43: #{gat_forward.14} parent=39 // pred_region
        %vm379 = vcmask 7168
        %380 = vst.msk [vmem:[#allocation2] sm:$0xff] %vm379, -1e+30
        %381 = vst.msk [vmem:[#allocation2 + $0x8] sm:$0xff] %vm379, -1e+30
        %382 = vst.msk [vmem:[#allocation3] sm:$0xff] %vm379, 0.0
        %383 = vst.msk [vmem:[#allocation3 + $0x8] sm:$0xff] %vm379, 0.0
        %vm384 = vcmask 130048
        %385 = vst.msk [vmem:[#allocation4] sm:$0xff] %vm384, 0.0
        %386 = vst.msk [vmem:[#allocation4 + $0x8] sm:$0xff] %vm384, 0.0
      $region44: #{gat_forward.14} parent=39 // pred_fallthru
        _
      %v387 = vld [vmem:[%s336] sm:$0xff]
      %v388 = vld [vmem:[%s336 + $0x8] sm:$0xff]
      %v389 = vld [vmem:[%s347] sm:$0xff]
      %v390 = vld [vmem:[%s347 + $0x8] sm:$0xff]
      %v391 = vld [vmem:[%s352] sm:$0x1]
      %v394 = vcombine.high %v389, %v389
      %v396 = vunpack.c.l.s4 1966171168
      %v397 = vunpack.c.0.s8 %v396
      %v398 = vlaneseq
      %v399 = vshrl.u32 %v398, 7
      %v400 = vsub.s32 %v397, %v399
      %v401 = vrot.slane %v389, %v400
      %v403 = vunpack.c.l.s4 1966171168
      %v404 = vunpack.c.0.s8 %v403
      %v405 = vlaneseq
      %v406 = vshrl.u32 %v405, 7
      %v407 = vsub.s32 %v404, %v406
      %v408 = vrot.slane %v394, %v407
      %v409 = vcombine.high %v401, %v401
      %v410 = vcombine.high %v408, %v408
      %v412 = vunpack.c.l.s4 1966171168
      %v413 = vunpack.c.0.s8 %v412
      %v414 = vlaneseq
      %v415 = vshrl.u32 %v414, 7
      %v416 = vsub.s32 %v413, %v415
      %v417 = vrot.slane %v401, %v416
      %v419 = vunpack.c.l.s4 1966171168
      %v420 = vunpack.c.0.s8 %v419
      %v421 = vlaneseq
      %v422 = vshrl.u32 %v421, 7
      %v423 = vsub.s32 %v420, %v422
      %v424 = vrot.slane %v408, %v423
      %v426 = vunpack.c.l.s4 1966171168
      %v427 = vunpack.c.0.s8 %v426
      %v428 = vlaneseq
      %v429 = vshrl.u32 %v428, 7
      %v430 = vsub.s32 %v427, %v429
      %v431 = vrot.slane %v409, %v430
      %v433 = vunpack.c.l.s4 1966171168
      %v434 = vunpack.c.0.s8 %v433
      %v435 = vlaneseq
      %v436 = vshrl.u32 %v435, 7
      %v437 = vsub.s32 %v434, %v436
      %v438 = vrot.slane %v410, %v437
      %v439 = vcombine.high %v417, %v417
      %v440 = vcombine.high %v424, %v424
      %v441 = vcombine.high %v431, %v431
      %v442 = vcombine.high %v438, %v438
      %v443 = vcombine.high %v390, %v390
      %v445 = vunpack.c.l.s4 1966171168
      %v446 = vunpack.c.0.s8 %v445
      %v447 = vlaneseq
      %v448 = vshrl.u32 %v447, 7
      %v449 = vsub.s32 %v446, %v448
      %v450 = vrot.slane %v390, %v449
      %v452 = vunpack.c.l.s4 1966171168
      %v453 = vunpack.c.0.s8 %v452
      %v454 = vlaneseq
      %v455 = vshrl.u32 %v454, 7
      %v456 = vsub.s32 %v453, %v455
      %v457 = vrot.slane %v443, %v456
      %v458 = vcombine.high %v450, %v450
      %v459 = vcombine.high %v457, %v457
      %v461 = vunpack.c.l.s4 1966171168
      %v462 = vunpack.c.0.s8 %v461
      %v463 = vlaneseq
      %v464 = vshrl.u32 %v463, 7
      %v465 = vsub.s32 %v462, %v464
      %v466 = vrot.slane %v450, %v465
      %v468 = vunpack.c.l.s4 1966171168
      %v469 = vunpack.c.0.s8 %v468
      %v470 = vlaneseq
      %v471 = vshrl.u32 %v470, 7
      %v472 = vsub.s32 %v469, %v471
      %v473 = vrot.slane %v457, %v472
      %v475 = vunpack.c.l.s4 1966171168
      %v476 = vunpack.c.0.s8 %v475
      %v477 = vlaneseq
      %v478 = vshrl.u32 %v477, 7
      %v479 = vsub.s32 %v476, %v478
      %v480 = vrot.slane %v458, %v479
      %v482 = vunpack.c.l.s4 1966171168
      %v483 = vunpack.c.0.s8 %v482
      %v484 = vlaneseq
      %v485 = vshrl.u32 %v484, 7
      %v486 = vsub.s32 %v483, %v485
      %v487 = vrot.slane %v459, %v486
      %v488 = vcombine.high %v466, %v466
      %v489 = vcombine.high %v473, %v473
      %v490 = vcombine.high %v480, %v480
      %v491 = vcombine.high %v487, %v487
      %v492 = vlaneseq
      %v493 = vshrl.u32 %v492, 7
      %v494 = vsub.s32 0, %v493
      %v495 = vrot.slane %v417, %v494
      %v496 = vlaneseq
      %v497 = vshrl.u32 %v496, 7
      %v498 = vsub.s32 0, %v497
      %v499 = vrot.slane %v431, %v498
      %v500 = vlaneseq
      %v501 = vshrl.u32 %v500, 7
      %v502 = vsub.s32 0, %v501
      %v503 = vrot.slane %v439, %v502
      %v504 = vlaneseq
      %v505 = vshrl.u32 %v504, 7
      %v506 = vsub.s32 0, %v505
      %v507 = vrot.slane %v441, %v506
      %v508 = vlaneseq
      %v509 = vshrl.u32 %v508, 7
      %v510 = vsub.s32 0, %v509
      %v511 = vrot.slane %v424, %v510
      %v512 = vlaneseq
      %v513 = vshrl.u32 %v512, 7
      %v514 = vsub.s32 0, %v513
      %v515 = vrot.slane %v438, %v514
      %v516 = vlaneseq
      %v517 = vshrl.u32 %v516, 7
      %v518 = vsub.s32 0, %v517
      %v519 = vrot.slane %v440, %v518
      %v520 = vlaneseq
      %v521 = vshrl.u32 %v520, 7
      %v522 = vsub.s32 0, %v521
      %v523 = vrot.slane %v442, %v522
      %v524 = vlaneseq
      %v525 = vshrl.u32 %v524, 7
      %v526 = vsub.s32 0, %v525
      %v527 = vrot.slane %v466, %v526
      %v528 = vlaneseq
      %v529 = vshrl.u32 %v528, 7
      %v530 = vsub.s32 0, %v529
      %v531 = vrot.slane %v480, %v530
      %v532 = vlaneseq
      %v533 = vshrl.u32 %v532, 7
      %v534 = vsub.s32 0, %v533
      %v535 = vrot.slane %v488, %v534
      %v536 = vlaneseq
      %v537 = vshrl.u32 %v536, 7
      %v538 = vsub.s32 0, %v537
      %v539 = vrot.slane %v490, %v538
      %v540 = vlaneseq
      %v541 = vshrl.u32 %v540, 7
      %v542 = vsub.s32 0, %v541
      %v543 = vrot.slane %v473, %v542
      %v544 = vlaneseq
      %v545 = vshrl.u32 %v544, 7
      %v546 = vsub.s32 0, %v545
      %v547 = vrot.slane %v487, %v546
      %v548 = vlaneseq
      %v549 = vshrl.u32 %v548, 7
      %v550 = vsub.s32 0, %v549
      %v551 = vrot.slane %v489, %v550
      %v552 = vlaneseq
      %v553 = vshrl.u32 %v552, 7
      %v554 = vsub.s32 0, %v553
      %v555 = vrot.slane %v491, %v554
      %v572 = vadd.f32 %v495, %v387
      %v573 = vadd.f32 %v495, %v388
      %v574 = vadd.f32 %v499, %v387
      %v575 = vadd.f32 %v499, %v388
      %v576 = vadd.f32 %v503, %v387
      %v577 = vadd.f32 %v503, %v388
      %v578 = vadd.f32 %v507, %v387
      %v579 = vadd.f32 %v507, %v388
      %v580 = vadd.f32 %v511, %v387
      %v581 = vadd.f32 %v511, %v388
      %v582 = vadd.f32 %v515, %v387
      %v583 = vadd.f32 %v515, %v388
      %v584 = vadd.f32 %v519, %v387
      %v585 = vadd.f32 %v519, %v388
      %v586 = vadd.f32 %v523, %v387
      %v587 = vadd.f32 %v523, %v388
      %v588 = vadd.f32 %v527, %v387
      %v589 = vadd.f32 %v527, %v388
      %v590 = vadd.f32 %v531, %v387
      %v591 = vadd.f32 %v531, %v388
      %v592 = vadd.f32 %v535, %v387
      %v593 = vadd.f32 %v535, %v388
      %v594 = vadd.f32 %v539, %v387
      %v595 = vadd.f32 %v539, %v388
      %v596 = vadd.f32 %v543, %v387
      %v597 = vadd.f32 %v543, %v388
      %v598 = vadd.f32 %v547, %v387
      %v599 = vadd.f32 %v547, %v388
      %v600 = vadd.f32 %v551, %v387
      %v601 = vadd.f32 %v551, %v388
      %v602 = vadd.f32 %v555, %v387
      %v603 = vadd.f32 %v555, %v388
      %v604 = vmul.f32 %v572, 0.6
      %v605 = vmul.f32 %v573, 0.6
      %v606 = vmul.f32 %v574, 0.6
      %v607 = vmul.f32 %v575, 0.6
      %v608 = vmul.f32 %v576, 0.6
      %v609 = vmul.f32 %v577, 0.6
      %v610 = vmul.f32 %v578, 0.6
      %v611 = vmul.f32 %v579, 0.6
      %v612 = vmul.f32 %v580, 0.6
      %v613 = vmul.f32 %v581, 0.6
      %v614 = vmul.f32 %v582, 0.6
      %v615 = vmul.f32 %v583, 0.6
      %v616 = vmul.f32 %v584, 0.6
      %v617 = vmul.f32 %v585, 0.6
      %v618 = vmul.f32 %v586, 0.6
      %v619 = vmul.f32 %v587, 0.6
      %v620 = vmul.f32 %v588, 0.6
      %v621 = vmul.f32 %v589, 0.6
      %v622 = vmul.f32 %v590, 0.6
      %v623 = vmul.f32 %v591, 0.6
      %v624 = vmul.f32 %v592, 0.6
      %v625 = vmul.f32 %v593, 0.6
      %v626 = vmul.f32 %v594, 0.6
      %v627 = vmul.f32 %v595, 0.6
      %v628 = vmul.f32 %v596, 0.6
      %v629 = vmul.f32 %v597, 0.6
      %v630 = vmul.f32 %v598, 0.6
      %v631 = vmul.f32 %v599, 0.6
      %v632 = vmul.f32 %v600, 0.6
      %v633 = vmul.f32 %v601, 0.6
      %v634 = vmul.f32 %v602, 0.6
      %v635 = vmul.f32 %v603, 0.6
      %v636 = vand.u32 2147483647, %v572
      %v637 = vand.u32 2147483647, %v573
      %v638 = vand.u32 2147483647, %v574
      %v639 = vand.u32 2147483647, %v575
      %v640 = vand.u32 2147483647, %v576
      %v641 = vand.u32 2147483647, %v577
      %v642 = vand.u32 2147483647, %v578
      %v643 = vand.u32 2147483647, %v579
      %v644 = vand.u32 2147483647, %v580
      %v645 = vand.u32 2147483647, %v581
      %v646 = vand.u32 2147483647, %v582
      %v647 = vand.u32 2147483647, %v583
      %v648 = vand.u32 2147483647, %v584
      %v649 = vand.u32 2147483647, %v585
      %v650 = vand.u32 2147483647, %v586
      %v651 = vand.u32 2147483647, %v587
      %v652 = vand.u32 2147483647, %v588
      %v653 = vand.u32 2147483647, %v589
      %v654 = vand.u32 2147483647, %v590
      %v655 = vand.u32 2147483647, %v591
      %v656 = vand.u32 2147483647, %v592
      %v657 = vand.u32 2147483647, %v593
      %v658 = vand.u32 2147483647, %v594
      %v659 = vand.u32 2147483647, %v595
      %v660 = vand.u32 2147483647, %v596
      %v661 = vand.u32 2147483647, %v597
      %v662 = vand.u32 2147483647, %v598
      %v663 = vand.u32 2147483647, %v599
      %v664 = vand.u32 2147483647, %v600
      %v665 = vand.u32 2147483647, %v601
      %v666 = vand.u32 2147483647, %v602
      %v667 = vand.u32 2147483647, %v603
      %v668 = vmul.f32 %v636, 0.4
      %v669 = vmul.f32 %v637, 0.4
      %v670 = vmul.f32 %v638, 0.4
      %v671 = vmul.f32 %v639, 0.4
      %v672 = vmul.f32 %v640, 0.4
      %v673 = vmul.f32 %v641, 0.4
      %v674 = vmul.f32 %v642, 0.4
      %v675 = vmul.f32 %v643, 0.4
      %v676 = vmul.f32 %v644, 0.4
      %v677 = vmul.f32 %v645, 0.4
      %v678 = vmul.f32 %v646, 0.4
      %v679 = vmul.f32 %v647, 0.4
      %v680 = vmul.f32 %v648, 0.4
      %v681 = vmul.f32 %v649, 0.4
      %v682 = vmul.f32 %v650, 0.4
      %v683 = vmul.f32 %v651, 0.4
      %v684 = vmul.f32 %v652, 0.4
      %v685 = vmul.f32 %v653, 0.4
      %v686 = vmul.f32 %v654, 0.4
      %v687 = vmul.f32 %v655, 0.4
      %v688 = vmul.f32 %v656, 0.4
      %v689 = vmul.f32 %v657, 0.4
      %v690 = vmul.f32 %v658, 0.4
      %v691 = vmul.f32 %v659, 0.4
      %v692 = vmul.f32 %v660, 0.4
      %v693 = vmul.f32 %v661, 0.4
      %v694 = vmul.f32 %v662, 0.4
      %v695 = vmul.f32 %v663, 0.4
      %v696 = vmul.f32 %v664, 0.4
      %v697 = vmul.f32 %v665, 0.4
      %v698 = vmul.f32 %v666, 0.4
      %v699 = vmul.f32 %v667, 0.4
      %v700 = vadd.f32 %v604, %v668
      %v701 = vadd.f32 %v605, %v669
      %v702 = vadd.f32 %v606, %v670
      %v703 = vadd.f32 %v607, %v671
      %v704 = vadd.f32 %v608, %v672
      %v705 = vadd.f32 %v609, %v673
      %v706 = vadd.f32 %v610, %v674
      %v707 = vadd.f32 %v611, %v675
      %v708 = vadd.f32 %v612, %v676
      %v709 = vadd.f32 %v613, %v677
      %v710 = vadd.f32 %v614, %v678
      %v711 = vadd.f32 %v615, %v679
      %v712 = vadd.f32 %v616, %v680
      %v713 = vadd.f32 %v617, %v681
      %v714 = vadd.f32 %v618, %v682
      %v715 = vadd.f32 %v619, %v683
      %v716 = vadd.f32 %v620, %v684
      %v717 = vadd.f32 %v621, %v685
      %v718 = vadd.f32 %v622, %v686
      %v719 = vadd.f32 %v623, %v687
      %v720 = vadd.f32 %v624, %v688
      %v721 = vadd.f32 %v625, %v689
      %v722 = vadd.f32 %v626, %v690
      %v723 = vadd.f32 %v627, %v691
      %v724 = vadd.f32 %v628, %v692
      %v725 = vadd.f32 %v629, %v693
      %v726 = vadd.f32 %v630, %v694
      %v727 = vadd.f32 %v631, %v695
      %v728 = vadd.f32 %v632, %v696
      %v729 = vadd.f32 %v633, %v697
      %v730 = vadd.f32 %v634, %v698
      %v731 = vadd.f32 %v635, %v699
      %v733 = vlaneseq
      %v734 = vshrl.u32 %v733, 7
      %v735 = vsub.s32 0, %v734
      %v736 = vrot.slane %v391, %v735
      %v738 = vmul.f32 %v700, %v736
      %v739 = vmul.f32 %v701, %v736
      %v740 = vmul.f32 %v702, %v736
      %v741 = vmul.f32 %v703, %v736
      %v742 = vmul.f32 %v704, %v736
      %v743 = vmul.f32 %v705, %v736
      %v744 = vmul.f32 %v706, %v736
      %v745 = vmul.f32 %v707, %v736
      %v746 = vmul.f32 %v708, %v736
      %v747 = vmul.f32 %v709, %v736
      %v748 = vmul.f32 %v710, %v736
      %v749 = vmul.f32 %v711, %v736
      %v750 = vmul.f32 %v712, %v736
      %v751 = vmul.f32 %v713, %v736
      %v752 = vmul.f32 %v714, %v736
      %v753 = vmul.f32 %v715, %v736
      %v754 = vmul.f32 %v716, %v736
      %v755 = vmul.f32 %v717, %v736
      %v756 = vmul.f32 %v718, %v736
      %v757 = vmul.f32 %v719, %v736
      %v758 = vmul.f32 %v720, %v736
      %v759 = vmul.f32 %v721, %v736
      %v760 = vmul.f32 %v722, %v736
      %v761 = vmul.f32 %v723, %v736
      %v762 = vmul.f32 %v724, %v736
      %v763 = vmul.f32 %v725, %v736
      %v764 = vmul.f32 %v726, %v736
      %v765 = vmul.f32 %v727, %v736
      %v766 = vmul.f32 %v728, %v736
      %v767 = vmul.f32 %v729, %v736
      %v768 = vmul.f32 %v730, %v736
      %v769 = vmul.f32 %v731, %v736
      %vm770 = vcmask 130048
      %v771 = vsel %vm770, %v738, 0.0
      %772 = vadd.xlane.f32.xlu0 %v771
      %v773 = vpop.xlane.xlu0 %772
      %v774 = vsel %vm770, %v739, 0.0
      %775 = vadd.xlane.f32.xlu0 %v774
      %v776 = vpop.xlane.xlu0 %775
      %v777 = vsel %vm770, %v740, 0.0
      %778 = vadd.xlane.f32.xlu0 %v777
      %v779 = vpop.xlane.xlu0 %778
      %v780 = vsel %vm770, %v741, 0.0
      %781 = vadd.xlane.f32.xlu0 %v780
      %v782 = vpop.xlane.xlu0 %781
      %v783 = vsel %vm770, %v742, 0.0
      %784 = vadd.xlane.f32.xlu0 %v783
      %v785 = vpop.xlane.xlu0 %784
      %v786 = vsel %vm770, %v743, 0.0
      %787 = vadd.xlane.f32.xlu0 %v786
      %v788 = vpop.xlane.xlu0 %787
      %v789 = vsel %vm770, %v744, 0.0
      %790 = vadd.xlane.f32.xlu0 %v789
      %v791 = vpop.xlane.xlu0 %790
      %v792 = vsel %vm770, %v745, 0.0
      %793 = vadd.xlane.f32.xlu0 %v792
      %v794 = vpop.xlane.xlu0 %793
      %v795 = vsel %vm770, %v746, 0.0
      %796 = vadd.xlane.f32.xlu0 %v795
      %v797 = vpop.xlane.xlu0 %796
      %v798 = vsel %vm770, %v747, 0.0
      %799 = vadd.xlane.f32.xlu0 %v798
      %v800 = vpop.xlane.xlu0 %799
      %v801 = vsel %vm770, %v748, 0.0
      %802 = vadd.xlane.f32.xlu0 %v801
      %v803 = vpop.xlane.xlu0 %802
      %v804 = vsel %vm770, %v749, 0.0
      %805 = vadd.xlane.f32.xlu0 %v804
      %v806 = vpop.xlane.xlu0 %805
      %v807 = vsel %vm770, %v750, 0.0
      %808 = vadd.xlane.f32.xlu0 %v807
      %v809 = vpop.xlane.xlu0 %808
      %v810 = vsel %vm770, %v751, 0.0
      %811 = vadd.xlane.f32.xlu0 %v810
      %v812 = vpop.xlane.xlu0 %811
      %v813 = vsel %vm770, %v752, 0.0
      %814 = vadd.xlane.f32.xlu0 %v813
      %v815 = vpop.xlane.xlu0 %814
      %v816 = vsel %vm770, %v753, 0.0
      %817 = vadd.xlane.f32.xlu0 %v816
      %v818 = vpop.xlane.xlu0 %817
      %v819 = vsel %vm770, %v754, 0.0
      %820 = vadd.xlane.f32.xlu0 %v819
      %v821 = vpop.xlane.xlu0 %820
      %v822 = vsel %vm770, %v755, 0.0
      %823 = vadd.xlane.f32.xlu0 %v822
      %v824 = vpop.xlane.xlu0 %823
      %v825 = vsel %vm770, %v756, 0.0
      %826 = vadd.xlane.f32.xlu0 %v825
      %v827 = vpop.xlane.xlu0 %826
      %v828 = vsel %vm770, %v757, 0.0
      %829 = vadd.xlane.f32.xlu0 %v828
      %v830 = vpop.xlane.xlu0 %829
      %v831 = vsel %vm770, %v758, 0.0
      %832 = vadd.xlane.f32.xlu0 %v831
      %v833 = vpop.xlane.xlu0 %832
      %v834 = vsel %vm770, %v759, 0.0
      %835 = vadd.xlane.f32.xlu0 %v834
      %v836 = vpop.xlane.xlu0 %835
      %v837 = vsel %vm770, %v760, 0.0
      %838 = vadd.xlane.f32.xlu0 %v837
      %v839 = vpop.xlane.xlu0 %838
      %v840 = vsel %vm770, %v761, 0.0
      %841 = vadd.xlane.f32.xlu0 %v840
      %v842 = vpop.xlane.xlu0 %841
      %v843 = vsel %vm770, %v762, 0.0
      %844 = vadd.xlane.f32.xlu0 %v843
      %v845 = vpop.xlane.xlu0 %844
      %v846 = vsel %vm770, %v763, 0.0
      %847 = vadd.xlane.f32.xlu0 %v846
      %v848 = vpop.xlane.xlu0 %847
      %v849 = vsel %vm770, %v764, 0.0
      %850 = vadd.xlane.f32.xlu0 %v849
      %v851 = vpop.xlane.xlu0 %850
      %v852 = vsel %vm770, %v765, 0.0
      %853 = vadd.xlane.f32.xlu0 %v852
      %v854 = vpop.xlane.xlu0 %853
      %v855 = vsel %vm770, %v766, 0.0
      %856 = vadd.xlane.f32.xlu0 %v855
      %v857 = vpop.xlane.xlu0 %856
      %v858 = vsel %vm770, %v767, 0.0
      %859 = vadd.xlane.f32.xlu0 %v858
      %v860 = vpop.xlane.xlu0 %859
      %v861 = vsel %vm770, %v768, 0.0
      %862 = vadd.xlane.f32.xlu0 %v861
      %v863 = vpop.xlane.xlu0 %862
      %v864 = vsel %vm770, %v769, 0.0
      %865 = vadd.xlane.f32.xlu0 %v864
      %v866 = vpop.xlane.xlu0 %865
      %v867 = vld [vmem:[%s360] sm:$0xff]
      %v868 = vld [vmem:[%s360 + $0x8] sm:$0xff]
      %vm869 = vcmp.gt.f32.partialorder %v867, 0.0
      %vm870 = vcmp.gt.f32.partialorder %v868, 0.0
      %v903 = vlaneseq
      %v904 = vand.u32 %v903, 127
      %v905 = vlaneseq
      %v906 = vshrl.u32 %v905, 7
      %v907 = vsub.s32 %v904, %v906
      %v908 = vrot.slane %v773, %v907
      %v909 = vadd.s32 %v904, 4294967288
      %v910 = vlaneseq
      %v911 = vshrl.u32 %v910, 7
      %v912 = vsub.s32 %v909, %v911
      %v913 = vrot.slane %v776, %v912
      %vm914 = vcmask 130112
      %v915 = vsel %vm914, %v913, %v908
      %v916 = vlaneseq
      %v917 = vshrl.u32 %v916, 7
      %v918 = vsub.s32 %v904, %v917
      %v919 = vrot.slane %v779, %v918
      %v920 = vlaneseq
      %v921 = vshrl.u32 %v920, 7
      %v922 = vsub.s32 %v909, %v921
      %v923 = vrot.slane %v782, %v922
      %v924 = vsel %vm914, %v923, %v919
      %v925 = vlaneseq
      %v926 = vshrl.u32 %v925, 7
      %v927 = vsub.s32 %v904, %v926
      %v928 = vrot.slane %v785, %v927
      %v929 = vlaneseq
      %v930 = vshrl.u32 %v929, 7
      %v931 = vsub.s32 %v909, %v930
      %v932 = vrot.slane %v788, %v931
      %v933 = vsel %vm914, %v932, %v928
      %v934 = vlaneseq
      %v935 = vshrl.u32 %v934, 7
      %v936 = vsub.s32 %v904, %v935
      %v937 = vrot.slane %v791, %v936
      %v938 = vlaneseq
      %v939 = vshrl.u32 %v938, 7
      %v940 = vsub.s32 %v909, %v939
      %v941 = vrot.slane %v794, %v940
      %v942 = vsel %vm914, %v941, %v937
      %v943 = vlaneseq
      %v944 = vshrl.u32 %v943, 7
      %v945 = vsub.s32 %v904, %v944
      %v946 = vrot.slane %v797, %v945
      %v947 = vlaneseq
      %v948 = vshrl.u32 %v947, 7
      %v949 = vsub.s32 %v909, %v948
      %v950 = vrot.slane %v800, %v949
      %v951 = vsel %vm914, %v950, %v946
      %v952 = vlaneseq
      %v953 = vshrl.u32 %v952, 7
      %v954 = vsub.s32 %v904, %v953
      %v955 = vrot.slane %v803, %v954
      %v956 = vlaneseq
      %v957 = vshrl.u32 %v956, 7
      %v958 = vsub.s32 %v909, %v957
      %v959 = vrot.slane %v806, %v958
      %v960 = vsel %vm914, %v959, %v955
      %v961 = vlaneseq
      %v962 = vshrl.u32 %v961, 7
      %v963 = vsub.s32 %v904, %v962
      %v964 = vrot.slane %v809, %v963
      %v965 = vlaneseq
      %v966 = vshrl.u32 %v965, 7
      %v967 = vsub.s32 %v909, %v966
      %v968 = vrot.slane %v812, %v967
      %v969 = vsel %vm914, %v968, %v964
      %v970 = vlaneseq
      %v971 = vshrl.u32 %v970, 7
      %v972 = vsub.s32 %v904, %v971
      %v973 = vrot.slane %v815, %v972
      %v974 = vlaneseq
      %v975 = vshrl.u32 %v974, 7
      %v976 = vsub.s32 %v909, %v975
      %v977 = vrot.slane %v818, %v976
      %v978 = vsel %vm914, %v977, %v973
      %v979 = vlaneseq
      %v980 = vshrl.u32 %v979, 7
      %v981 = vsub.s32 %v904, %v980
      %v982 = vrot.slane %v821, %v981
      %v983 = vlaneseq
      %v984 = vshrl.u32 %v983, 7
      %v985 = vsub.s32 %v909, %v984
      %v986 = vrot.slane %v824, %v985
      %v987 = vsel %vm914, %v986, %v982
      %v988 = vlaneseq
      %v989 = vshrl.u32 %v988, 7
      %v990 = vsub.s32 %v904, %v989
      %v991 = vrot.slane %v827, %v990
      %v992 = vlaneseq
      %v993 = vshrl.u32 %v992, 7
      %v994 = vsub.s32 %v909, %v993
      %v995 = vrot.slane %v830, %v994
      %v996 = vsel %vm914, %v995, %v991
      %v997 = vlaneseq
      %v998 = vshrl.u32 %v997, 7
      %v999 = vsub.s32 %v904, %v998
      %v1000 = vrot.slane %v833, %v999
      %v1001 = vlaneseq
      %v1002 = vshrl.u32 %v1001, 7
      %v1003 = vsub.s32 %v909, %v1002
      %v1004 = vrot.slane %v836, %v1003
      %v1005 = vsel %vm914, %v1004, %v1000
      %v1006 = vlaneseq
      %v1007 = vshrl.u32 %v1006, 7
      %v1008 = vsub.s32 %v904, %v1007
      %v1009 = vrot.slane %v839, %v1008
      %v1010 = vlaneseq
      %v1011 = vshrl.u32 %v1010, 7
      %v1012 = vsub.s32 %v909, %v1011
      %v1013 = vrot.slane %v842, %v1012
      %v1014 = vsel %vm914, %v1013, %v1009
      %v1015 = vlaneseq
      %v1016 = vshrl.u32 %v1015, 7
      %v1017 = vsub.s32 %v904, %v1016
      %v1018 = vrot.slane %v845, %v1017
      %v1019 = vlaneseq
      %v1020 = vshrl.u32 %v1019, 7
      %v1021 = vsub.s32 %v909, %v1020
      %v1022 = vrot.slane %v848, %v1021
      %v1023 = vsel %vm914, %v1022, %v1018
      %v1024 = vlaneseq
      %v1025 = vshrl.u32 %v1024, 7
      %v1026 = vsub.s32 %v904, %v1025
      %v1027 = vrot.slane %v851, %v1026
      %v1028 = vlaneseq
      %v1029 = vshrl.u32 %v1028, 7
      %v1030 = vsub.s32 %v909, %v1029
      %v1031 = vrot.slane %v854, %v1030
      %v1032 = vsel %vm914, %v1031, %v1027
      %v1033 = vlaneseq
      %v1034 = vshrl.u32 %v1033, 7
      %v1035 = vsub.s32 %v904, %v1034
      %v1036 = vrot.slane %v857, %v1035
      %v1037 = vlaneseq
      %v1038 = vshrl.u32 %v1037, 7
      %v1039 = vsub.s32 %v909, %v1038
      %v1040 = vrot.slane %v860, %v1039
      %v1041 = vsel %vm914, %v1040, %v1036
      %v1042 = vlaneseq
      %v1043 = vshrl.u32 %v1042, 7
      %v1044 = vsub.s32 %v904, %v1043
      %v1045 = vrot.slane %v863, %v1044
      %v1046 = vlaneseq
      %v1047 = vshrl.u32 %v1046, 7
      %v1048 = vsub.s32 %v909, %v1047
      %v1049 = vrot.slane %v866, %v1048
      %v1050 = vsel %vm914, %v1049, %v1045
      %vm1051 = vcmask 1041409
      %v1052 = vsel %vm1051, %v924, %v915
      %vm1053 = vcmask 1042434
      %v1054 = vsel %vm1053, %v933, %v1052
      %vm1055 = vcmask 1043459
      %v1056 = vsel %vm1055, %v942, %v1054
      %vm1057 = vcmask 1044484
      %v1058 = vsel %vm1057, %v951, %v1056
      %vm1059 = vcmask 1045509
      %v1060 = vsel %vm1059, %v960, %v1058
      %vm1061 = vcmask 1046534
      %v1062 = vsel %vm1061, %v969, %v1060
      %vm1063 = vcmask 1047559
      %v1064 = vsel %vm1063, %v978, %v1062
      %v1065 = vsel %vm1051, %v996, %v987
      %v1066 = vsel %vm1053, %v1005, %v1065
      %v1067 = vsel %vm1055, %v1014, %v1066
      %v1068 = vsel %vm1057, %v1023, %v1067
      %v1069 = vsel %vm1059, %v1032, %v1068
      %v1070 = vsel %vm1061, %v1041, %v1069
      %v1071 = vsel %vm1063, %v1050, %v1070
      %v1074 = vsel %vm869, %v1064, -1e+30
      %v1075 = vsel %vm870, %v1071, -1e+30
      %v1076 = vld [vmem:[#allocation2] sm:$0xff]
      %v1077 = vld [vmem:[#allocation2 + $0x8] sm:$0xff]
      %v1078 = vsel %vm770, %v1074, -inf
      %1079 = vmax.xlane.f32.xlu0 %v1078
      %v1080 = vpop.xlane.xlu0 %1079
      %v1081 = vsel %vm770, %v1075, -inf
      %1082 = vmax.xlane.f32.xlu0 %v1081
      %v1083 = vpop.xlane.xlu0 %1082
      %v1084 = vmax.f32 %v1076, %v1080
      %v1085 = vmax.f32 %v1077, %v1083
      %v1086 = vsub.f32 %v1076, %v1084
      %v1087 = vsub.f32 %v1077, %v1085
      %v1088 = vmul.f32 %v1086, 1.442695
      %v1089 = vpow.pop %v1088
      %v1090 = vmul.f32 %v1087, 1.442695
      %v1091 = vpow.pop %v1090
      %1093 = vset.pattern.permute.xlu0 0
      %1094 = vperm.xlu0 %1093, %v1084
      %v1095 = vpop.permute.xlu0 %1094
      %1098 = vset.pattern.permute.xlu0 0
      %1099 = vperm.xlu0 %1098, %v1085
      %v1100 = vpop.permute.xlu0 %1099
      %v1102 = vsub.f32 %v1074, %v1095
      %v1103 = vsub.f32 %v1075, %v1100
      %v1104 = vmul.f32 %v1102, 1.442695
      %v1105 = vpow.pop %v1104
      %v1106 = vmul.f32 %v1103, 1.442695
      %v1107 = vpow.pop %v1106
      %v1108 = vld [vmem:[#allocation3] sm:$0xff]
      %v1109 = vld [vmem:[#allocation3 + $0x8] sm:$0xff]
      %v1110 = vmul.f32 %v1089, %v1108
      %v1111 = vmul.f32 %v1091, %v1109
      %v1112 = vsel %vm770, %v1105, 0.0
      %1113 = vadd.xlane.f32.xlu0 %v1112
      %v1114 = vpop.xlane.xlu0 %1113
      %v1115 = vsel %vm770, %v1107, 0.0
      %1116 = vadd.xlane.f32.xlu0 %v1115
      %v1117 = vpop.xlane.xlu0 %1116
      %v1118 = vadd.f32 %v1110, %v1114
      %v1119 = vadd.f32 %v1111, %v1117
      %vm1120 = vcmask 7168
      %1121 = vst.msk [vmem:[#allocation3] sm:$0xff] %vm1120, %v1118
      %1122 = vst.msk [vmem:[#allocation3 + $0x8] sm:$0xff] %vm1120, %v1119
      %v1123 = vld [vmem:[#allocation4] sm:$0xff]
      %v1124 = vld [vmem:[#allocation4 + $0x8] sm:$0xff]
      %1126 = vset.pattern.permute.xlu0 0
      %1127 = vperm.xlu0 %1126, %v1089
      %v1128 = vpop.permute.xlu0 %1127
      %1131 = vset.pattern.permute.xlu0 0
      %1132 = vperm.xlu0 %1131, %v1091
      %v1133 = vpop.permute.xlu0 %1132
      %v1135 = vmul.f32 %v1128, %v1123
      %v1136 = vmul.f32 %v1133, %v1124
      %v1138 = vsel %vm770, %v1105, 0
      %v1141 = vsel %vm770, %v1107, 0
      %1143 = vmatprep.subr.mxu0 0.0
      %1144 = vmatpush1.msra.mxu0 0.0
      %1145 = vmatprep.subr.mxu0 0.0
      %1146 = vmatpush1.msra.mxu0 0.0
      %1147 = vmatprep.subr.mxu0 0.0
      %1148 = vmatpush1.msra.mxu0 0.0
      %1149 = vmatprep.subr.mxu0 0.0
      %1150 = vmatpush1.msra.mxu0 0.0
      %1151 = vmatprep.subr.mxu0 0.0
      %1152 = vmatpush1.msra.mxu0 0.0
      %1153 = vmatprep.subr.mxu0 0.0
      %1154 = vmatpush1.msra.mxu0 0.0
      %1155 = vmatprep.subr.mxu0 0.0
      %1156 = vmatpush1.msra.mxu0 0.0
      %1157 = vmatprep.subr.mxu0 0.0
      %1158 = vmatpush1.msra.mxu0 0.0
      %1159 = vmatprep.subr.mxu0 0.0
      %1160 = vmatpush1.msra.mxu0 0.0
      %1161 = vmatprep.subr.mxu0 0.0
      %1162 = vmatpush1.msra.mxu0 0.0
      %1163 = vmatprep.subr.mxu0 0.0
      %1164 = vmatpush1.msra.mxu0 0.0
      %1165 = vmatprep.subr.mxu0 0.0
      %1166 = vmatpush1.msra.mxu0 0.0
      %1167 = vmatprep.subr.mxu0 0.0
      %1168 = vmatpush1.msra.mxu0 0.0
      %1169 = vmatprep.subr.mxu0 0.0
      %1170 = vmatpush1.msra.mxu0 0.0
      %1171 = vmatprep.subr.mxu0 0.0
      %1172 = vmatpush1.msra.mxu0 %v388
      %1173 = vmatprep.subr.mxu0 0.0
      %1174 = vmatpush1.msra.mxu0 %v387
      %1175 = vmatprep.subr.mxu0 0.0
      %1176 = vmatpush2.msra.mxu0 0.0
      %1177 = vmatprep.subr.mxu0 0.0
      %1178 = vmatpush2.msra.mxu0 0.0
      %1179 = vmatprep.subr.mxu0 0.0
      %1180 = vmatpush2.msra.mxu0 0.0
      %1181 = vmatprep.subr.mxu0 0.0
      %1182 = vmatpush2.msra.mxu0 0.0
      %1183 = vmatprep.subr.mxu0 0.0
      %1184 = vmatpush2.msra.mxu0 0.0
      %1185 = vmatprep.subr.mxu0 0.0
      %1186 = vmatpush2.msra.mxu0 0.0
      %1187 = vmatprep.subr.mxu0 0.0
      %1188 = vmatpush2.msra.mxu0 0.0
      %1189 = vmatprep.subr.mxu0 0.0
      %1190 = vmatpush2.msra.mxu0 0.0
      %1191 = vmatprep.subr.mxu0 0.0
      %1192 = vmatpush2.msra.mxu0 0.0
      %1193 = vmatprep.subr.mxu0 0.0
      %1194 = vmatpush2.msra.mxu0 0.0
      %1195 = vmatprep.subr.mxu0 0.0
      %1196 = vmatpush2.msra.mxu0 0.0
      %1197 = vmatprep.subr.mxu0 0.0
      %1198 = vmatpush2.msra.mxu0 0.0
      %1199 = vmatprep.subr.mxu0 0.0
      %1200 = vmatpush2.msra.mxu0 0.0
      %1201 = vmatprep.subr.mxu0 0.0
      %1202 = vmatpush2.msra.mxu0 0.0
      %1203 = vmatprep.subr.mxu0 0.0
      %1204 = vmatpush2.msra.mxu0 0.0
      %1205 = vmatprep.subr.mxu0 0.0
      %1206 = vmatpush2.msra.mxu0 0.0
      %1207 = vmatprep.mubr.f32.mxu0 0.0
      %1208 = vmatmul.mubr.f32.gmra.mxu0 %v1138
      %v1209 = vpop.f32.mrf.mxu0
      %v1210 = vadd.f32 0.0, %v1209
      %v1211 = vpop.f32.mrf.mxu0
      %1212 = vmatprep.mubr.f32.mxu0 0.0
      %1213 = vmatmul.mubr.f32.gmra.mxu0 %v1141
      %v1214 = vpop.f32.mrf.mxu0
      %v1215 = vadd.f32 0.0, %v1214
      %v1216 = vpop.f32.mrf.mxu0
      %1217 = vdwg.mxu0
      %v1218 = vadd.f32 %v1135, %v1210
      %v1219 = vadd.f32 %v1136, %v1215
      %1220 = vst.msk [vmem:[#allocation4] sm:$0xff] %vm770, %v1218
      %1221 = vst.msk [vmem:[#allocation4 + $0x8] sm:$0xff] %vm770, %v1219
      %1222 = vst.msk [vmem:[#allocation2] sm:$0xff] %vm1120, %v1084
      %1223 = vst.msk [vmem:[#allocation2 + $0x8] sm:$0xff] %vm1120, %v1085
      // Predicated region
      $region45: #{gat_forward.14} parent=39 // pred_check
        %p1224 = pneg %p375
      $region46: #{gat_forward.14} parent=39 // pred_check_branch
        %1226 = sbr.rel (%p1224) target = $region48
      $region47: #{gat_forward.14} parent=39 // pred_region
        %v1227 = vld [vmem:[#allocation3] sm:$0xff]
        %v1228 = vld [vmem:[#allocation3 + $0x8] sm:$0xff]
        %v1229 = vrcp.pop %v1227
        %v1230 = vrcp.pop %v1228
        %v1231 = vld [vmem:[#allocation4] sm:$0xff]
        %v1232 = vld [vmem:[#allocation4 + $0x8] sm:$0xff]
        %1234 = vset.pattern.permute.xlu0 0
        %1235 = vperm.xlu0 %1234, %v1229
        %v1236 = vpop.permute.xlu0 %1235
        %1239 = vset.pattern.permute.xlu0 0
        %1240 = vperm.xlu0 %1239, %v1230
        %v1241 = vpop.permute.xlu0 %1240
        %v1243 = vmul.f32 %v1231, %v1236
        %v1244 = vmul.f32 %v1232, %v1241
        %v1245 = vld [vmem:[%s364] sm:$0x1]
        %v1247 = vlaneseq
        %v1248 = vshrl.u32 %v1247, 7
        %v1249 = vsub.s32 0, %v1248
        %v1250 = vrot.slane %v1245, %v1249
        %v1252 = vadd.f32 %v1243, %v1250
        %v1253 = vadd.f32 %v1244, %v1250
        %1254 = vst.msk [vmem:[%s373] sm:$0xff] %vm770, %v1252
        %1255 = vst.msk [vmem:[%s373 + $0x8] sm:$0xff] %vm770, %v1253
      $region48: #{gat_forward.14} parent=39 // pred_fallthru
        _
      %s1256 = smul.u32 2, %s22
      %p1257 = scmp.lt.s32.totalorder %s21, 1
      %s1258 = scalar_select %p1257, %s21, 1
      %p1259 = scmp.lt.s32.totalorder %s1256, 1
      %s1260 = scalar_select %p1259, %s1256, 1
      %s1261 = smul.addr %s1258, 2
      %s1262 = sadd.s32 %s1260, %s1261
      %s1263 = smul.addr %s1262, 8
      %s1264 = scalar_lea.vmem %s5, %s1263
      // Predicated region
      $region49: #{gat_forward.14} parent=39 // pred_check
        %p1265 = pneg %p193
      $region50: #{gat_forward.14} parent=39 // pred_check_branch
        %1267 = sbr.rel (%p1265) target = $region52
      $region51: #{gat_forward.14} parent=39 // pred_region
        %s1268 = smul.u32 2, %s22
      $region52: #{gat_forward.14} parent=39 // pred_fallthru
        _
    $region40: #{gat_forward.14} parent=5 // pred_fallthru
      _
    %p1269 = scmp.le.s32.totalorder 2, %s11
    // Predicated region
    $region53: #{gat_forward.14} parent=5 // pred_check
      %p1270 = pneg %p1269
    $region54: #{gat_forward.14} parent=5 // pred_check_branch
      %1272 = sbr.rel (%p1270) target = $region56
    $region55: #{gat_forward.14} parent=5 // pred_region
      %s1273 = ssub.s32 %s11, 2
      // Predicated region
      $region57: #{gat_forward.14} parent=55 // pred_check
        %p1274 = pneg %p199
      $region58: #{gat_forward.14} parent=55 // pred_check_branch
        %1276 = sbr.rel (%p1274) target = $region60
      $region59: #{gat_forward.14} parent=55 // pred_region
        %s1277 = smul.u32 2, %s25
        %p1278 = scmp.lt.s32.totalorder %s24, 1
        %s1279 = scalar_select %p1278, %s24, 1
        %p1280 = scmp.lt.s32.totalorder %s1277, 1
        %s1281 = scalar_select %p1280, %s1277, 1
        %s1282 = smul.addr %s1279, 2
        %s1283 = sadd.s32 %s1281, %s1282
        %s1284 = smul.addr %s1283, 8
        %s1285 = scalar_lea.vmem %s5, %s1284
      $region60: #{gat_forward.14} parent=55 // pred_fallthru
        _
    $region56: #{gat_forward.14} parent=5 // pred_fallthru
      _
  $region6: #{gat_forward.14} parent=0 // loop_footer
    %s15 = sadd.s32 1, %s11
  $region7: #{gat_forward.14} parent=0 // loop_footer_branch
    %10 = sbr.rel target = $region3
  $region8: #{gat_forward.14} parent=0 // loop_exit
    _

// kernel: gat_forward.15
$region0: #{gat_forward.15}
  #allocation0 [shape = 'u32[]', space=smem, size = 0x4, offset = 0x4, fixed_abs, tag = 'smem constant byte address 0x4 - core index']
  #allocation1 [shape = 'u32[144,128]{1,0:T(1,128)}', space=vmem, size = 0x12000, scoped, tag = 'internal scratch']
  %s0 = inlined_call_operand.vmem [shape: f32[2,16,16], index: 0, kind: input, shape index: {}]
  %s1 = inlined_call_operand.vmem [shape: f32[2,1,16], index: 1, kind: input, shape index: {}]
  %s2 = inlined_call_operand.vmem [shape: f32[2,1,16], index: 2, kind: input, shape index: {}]
  %s3 = inlined_call_operand.vmem [shape: f32[2,1,16], index: 3, kind: input, shape index: {}]
  %s4 = inlined_call_operand.vmem [shape: f32[2,16,16], index: 4, kind: output, shape index: {}]
  %s5 = sld [smem:[#allocation0]]
  $region49: #{gat_forward.15} parent=0
    _
  %s7 = ssub.s32 1, %s5
  %s8 = scalar_select 0, %s7, %s5
  loop: start=0, step=1, limit=4
  $region2: #{gat_forward.15} parent=0 // loop_pre_header
    _
  $region3: #{gat_forward.15} parent=0 // loop_header
    %s10 = sphi 0, %s14
    %p11 = scmp.ge.s32.totalorder %s10, 4
    %s20 = sphi 0, %s22
    %s23 = sphi 0, %s20
    %s24 = sphi 0, %s23
    %s40 = sphi 0, %s24
    %s46 = sphi 0, %s48
    %s49 = sphi 0, %s46
    %s50 = sphi 0, %s49
    %s66 = sphi 0, %s50
    %s72 = sphi 0, %s74
    %s75 = sphi 0, %s72
    %s76 = sphi 0, %s75
    %s92 = sphi 0, %s76
    %s98 = sphi 0, %s100
    %s101 = sphi 0, %s98
    %s102 = sphi 0, %s101
    %s118 = sphi 0, %s102
    %s124 = sphi 0, %s126
    %s127 = sphi 0, %s124
    %s128 = sphi 0, %s127
    %s144 = sphi 0, %s128
  $region4: #{gat_forward.15} parent=0 // loop_header_branch
    %13 = sbr.rel (%p11) target = $region8
  $region5: #{gat_forward.15} parent=0 // loop_body
    %s15 = ssub.s32 %s10, 1
    %s16 = ssub.s32 %s10, 2
    %s17 = sadd.s32 %s10, 1
    %s18 = ssub.s32 %s10, %s17
    %p19 = scmp.eq.s32.totalorder %s18, 0
    %s21 = sadd.s32 %s20, 1
    %s22 = scalar_select %p19, %s20, %s21
    %p25 = pneg %p19
    %p26 = scmp.eq.s32.totalorder %s10, 1
    %p27 = por %p25, %p26
    %p28 = scmp.ne.s32.totalorder %s20, %s23
    %p29 = scmp.eq.s32.totalorder %s10, 0
    %p30 = por %p28, %p29
    %p31 = scmp.ne.s32.totalorder %s20, %s23
    %p32 = scmp.eq.s32.totalorder %s15, 1
    %p33 = por %p31, %p32
    %p34 = scmp.ne.s32.totalorder %s23, %s24
    %p35 = scmp.eq.s32.totalorder %s15, 0
    %p36 = por %p34, %p35
    %p37 = scmp.ne.s32.totalorder %s23, %s24
    %p38 = scmp.eq.s32.totalorder %s16, 1
    %p39 = por %p37, %p38
    %p41 = scmp.ne.s32.totalorder %s24, %s40
    %p42 = scmp.eq.s32.totalorder %s16, 0
    %p43 = por %p41, %p42
    %s44 = ssub.s32 %s10, %s17
    %p45 = scmp.eq.s32.totalorder %s44, 0
    %s47 = sadd.s32 %s46, 1
    %s48 = scalar_select %p45, %s46, %s47
    %p51 = pneg %p45
    %p52 = scmp.eq.s32.totalorder %s10, 1
    %p53 = por %p51, %p52
    %p54 = scmp.ne.s32.totalorder %s46, %s49
    %p55 = scmp.eq.s32.totalorder %s10, 0
    %p56 = por %p54, %p55
    %p57 = scmp.ne.s32.totalorder %s46, %s49
    %p58 = scmp.eq.s32.totalorder %s15, 1
    %p59 = por %p57, %p58
    %p60 = scmp.ne.s32.totalorder %s49, %s50
    %p61 = scmp.eq.s32.totalorder %s15, 0
    %p62 = por %p60, %p61
    %p63 = scmp.ne.s32.totalorder %s49, %s50
    %p64 = scmp.eq.s32.totalorder %s16, 1
    %p65 = por %p63, %p64
    %p67 = scmp.ne.s32.totalorder %s50, %s66
    %p68 = scmp.eq.s32.totalorder %s16, 0
    %p69 = por %p67, %p68
    %s70 = ssub.s32 %s10, %s17
    %p71 = scmp.eq.s32.totalorder %s70, 0
    %s73 = sadd.s32 %s72, 1
    %s74 = scalar_select %p71, %s72, %s73
    %p77 = pneg %p71
    %p78 = scmp.eq.s32.totalorder %s10, 1
    %p79 = por %p77, %p78
    %p80 = scmp.ne.s32.totalorder %s72, %s75
    %p81 = scmp.eq.s32.totalorder %s10, 0
    %p82 = por %p80, %p81
    %p83 = scmp.ne.s32.totalorder %s72, %s75
    %p84 = scmp.eq.s32.totalorder %s15, 1
    %p85 = por %p83, %p84
    %p86 = scmp.ne.s32.totalorder %s75, %s76
    %p87 = scmp.eq.s32.totalorder %s15, 0
    %p88 = por %p86, %p87
    %p89 = scmp.ne.s32.totalorder %s75, %s76
    %p90 = scmp.eq.s32.totalorder %s16, 1
    %p91 = por %p89, %p90
    %p93 = scmp.ne.s32.totalorder %s76, %s92
    %p94 = scmp.eq.s32.totalorder %s16, 0
    %p95 = por %p93, %p94
    %s96 = ssub.s32 %s10, %s17
    %p97 = scmp.eq.s32.totalorder %s96, 0
    %s99 = sadd.s32 %s98, 1
    %s100 = scalar_select %p97, %s98, %s99
    %p103 = pneg %p97
    %p104 = scmp.eq.s32.totalorder %s10, 1
    %p105 = por %p103, %p104
    %p106 = scmp.ne.s32.totalorder %s98, %s101
    %p107 = scmp.eq.s32.totalorder %s10, 0
    %p108 = por %p106, %p107
    %p109 = scmp.ne.s32.totalorder %s98, %s101
    %p110 = scmp.eq.s32.totalorder %s15, 1
    %p111 = por %p109, %p110
    %p112 = scmp.ne.s32.totalorder %s101, %s102
    %p113 = scmp.eq.s32.totalorder %s15, 0
    %p114 = por %p112, %p113
    %p115 = scmp.ne.s32.totalorder %s101, %s102
    %p116 = scmp.eq.s32.totalorder %s16, 1
    %p117 = por %p115, %p116
    %p119 = scmp.ne.s32.totalorder %s102, %s118
    %p120 = scmp.eq.s32.totalorder %s16, 0
    %p121 = por %p119, %p120
    %s122 = ssub.s32 %s10, %s17
    %p123 = scmp.eq.s32.totalorder %s122, 0
    %s125 = sadd.s32 %s124, 1
    %s126 = scalar_select %p123, %s124, %s125
    %p129 = pneg %p123
    %p130 = scmp.eq.s32.totalorder %s10, 1
    %p131 = por %p129, %p130
    %p132 = scmp.ne.s32.totalorder %s124, %s127
    %p133 = scmp.eq.s32.totalorder %s10, 0
    %p134 = por %p132, %p133
    %p135 = scmp.ne.s32.totalorder %s124, %s127
    %p136 = scmp.eq.s32.totalorder %s15, 1
    %p137 = por %p135, %p136
    %p138 = scmp.ne.s32.totalorder %s127, %s128
    %p139 = scmp.eq.s32.totalorder %s15, 0
    %p140 = por %p138, %p139
    %p141 = scmp.ne.s32.totalorder %s127, %s128
    %p142 = scmp.eq.s32.totalorder %s16, 1
    %p143 = por %p141, %p142
    %p145 = scmp.ne.s32.totalorder %s128, %s144
    %p146 = scmp.eq.s32.totalorder %s16, 0
    %p147 = por %p145, %p146
    %p148 = scmp.le.s32.totalorder 1, %s10
    %p149 = scmp.lt.s32.totalorder %s10, 3
    %p150 = pnand %p148, %p149
    %p151 = pneg %p150
    // Predicated region
    $region9: #{gat_forward.15} parent=5 // pred_check
      _
    $region10: #{gat_forward.15} parent=5 // pred_check_branch
      %153 = sbr.rel (%p150) target = $region12
    $region11: #{gat_forward.15} parent=5 // pred_region
      %s154 = ssub.s32 %s10, 1
    $region12: #{gat_forward.15} parent=5 // pred_fallthru
      _
    %p155 = scmp.lt.s32.totalorder %s10, 2
    // Predicated region
    $region13: #{gat_forward.15} parent=5 // pred_check
      %p156 = pneg %p155
    $region14: #{gat_forward.15} parent=5 // pred_check_branch
      %158 = sbr.rel (%p156) target = $region16
    $region15: #{gat_forward.15} parent=5 // pred_region
      // Predicated region
      $region17: #{gat_forward.15} parent=15 // pred_check
        %p159 = pneg %p30
      $region18: #{gat_forward.15} parent=15 // pred_check_branch
        %161 = sbr.rel (%p159) target = $region20
      $region19: #{gat_forward.15} parent=15 // pred_region
        %p162 = scmp.lt.s32.totalorder %s10, 1
        %s163 = scalar_select %p162, %s10, 1
        %s164 = smul.addr %s163, 2
        %s165 = smul.addr %s164, 8
        %s166 = scalar_lea.vmem %s0, %s165
      $region20: #{gat_forward.15} parent=15 // pred_fallthru
        _
      // Predicated region
      $region21: #{gat_forward.15} parent=15 // pred_check
        %p167 = pneg %p56
      $region22: #{gat_forward.15} parent=15 // pred_check_branch
        %169 = sbr.rel (%p167) target = $region24
      $region23: #{gat_forward.15} parent=15 // pred_region
        %p170 = scmp.lt.s32.totalorder %s10, 1
        %s171 = scalar_select %p170, %s10, 1
        %s172 = scalar_lea.vmem %s1, %s171
      $region24: #{gat_forward.15} parent=15 // pred_fallthru
        _
      // Predicated region
      $region25: #{gat_forward.15} parent=15 // pred_check
        %p173 = pneg %p82
      $region26: #{gat_forward.15} parent=15 // pred_check_branch
        %175 = sbr.rel (%p173) target = $region28
      $region27: #{gat_forward.15} parent=15 // pred_region
        %p176 = scmp.lt.s32.totalorder %s10, 1
        %s177 = scalar_select %p176, %s10, 1
        %s178 = scalar_lea.vmem %s2, %s177
      $region28: #{gat_forward.15} parent=15 // pred_fallthru
        _
      // Predicated region
      $region29: #{gat_forward.15} parent=15 // pred_check
        %p179 = pneg %p108
      $region30: #{gat_forward.15} parent=15 // pred_check_branch
        %181 = sbr.rel (%p179) target = $region32
      $region31: #{gat_forward.15} parent=15 // pred_region
        %p182 = scmp.lt.s32.totalorder %s10, 1
        %s183 = scalar_select %p182, %s10, 1
        %s184 = scalar_lea.vmem %s3, %s183
      $region32: #{gat_forward.15} parent=15 // pred_fallthru
        _
    $region16: #{gat_forward.15} parent=5 // pred_fallthru
      _
    %p185 = scmp.le.s32.totalorder 1, %s10
    %p186 = scmp.lt.s32.totalorder %s10, 3
    %p187 = pnand %p185, %p186
    %p188 = pneg %p187
    // Predicated region
    $region33: #{gat_forward.15} parent=5 // pred_check
      _
    $region34: #{gat_forward.15} parent=5 // pred_check_branch
      %190 = sbr.rel (%p187) target = $region36
    $region35: #{gat_forward.15} parent=5 // pred_region
      %s191 = ssub.s32 %s10, 1
      %p192 = scmp.lt.s32.totalorder %s15, 1
      %s193 = scalar_select %p192, %s15, 1
      %s194 = smul.addr %s193, 2
      %s195 = smul.addr %s194, 8
      %s196 = scalar_lea.vmem %s0, %s195
      %p197 = pneg %p36
      %p198 = pneg %p33
      %p199 = scmp.lt.s32.totalorder %s15, 1
      %s200 = scalar_select %p199, %s15, 1
      %s201 = scalar_lea.vmem %s1, %s200
      %p202 = pneg %p62
      %p203 = pneg %p59
      %p204 = scmp.lt.s32.totalorder %s15, 1
      %s205 = scalar_select %p204, %s15, 1
      %s206 = scalar_lea.vmem %s2, %s205
      %p207 = pneg %p88
      %p208 = pneg %p85
      %p209 = scmp.lt.s32.totalorder %s15, 1
      %s210 = scalar_select %p209, %s15, 1
      %s211 = scalar_lea.vmem %s3, %s210
      %p212 = pneg %p114
      %p213 = pneg %p111
      %p214 = pneg %p140
      %p215 = pneg %p137
      %p216 = scmp.lt.s32.totalorder %s15, 1
      %s217 = scalar_select %p216, %s15, 1
      %s218 = smul.addr %s217, 2
      %s219 = smul.addr %s218, 8
      %s220 = scalar_lea.vmem %s4, %s219
      %p221 = scmp.lt.s32.totalorder %s15, 1
      %s222 = scalar_select %p221, %s15, 1
      %s223 = smul.addr %s222, 2
      %s224 = smul.addr %s223, 8
      %s225 = scalar_lea.vmem %s0, %s224
      %p226 = scmp.lt.s32.totalorder %s15, 1
      %s227 = scalar_select %p226, %s15, 1
      %s228 = scalar_lea.vmem %s1, %s227
      %p229 = scmp.lt.s32.totalorder %s15, 1
      %s230 = scalar_select %p229, %s15, 1
      %s231 = scalar_lea.vmem %s2, %s230
      %p232 = scmp.lt.s32.totalorder %s15, 1
      %s233 = scalar_select %p232, %s15, 1
      %s234 = scalar_lea.vmem %s3, %s233
      %p235 = scmp.lt.s32.totalorder %s15, 1
      %s236 = scalar_select %p235, %s15, 1
      %s237 = smul.addr %s236, 2
      %s238 = smul.addr %s237, 8
      %s239 = scalar_lea.vmem %s4, %s238
      %v240 = vld [vmem:[%s225] sm:$0xff]
      %v241 = vld [vmem:[%s225 + $0x8] sm:$0xff]
      %vm242 = vcmask 130048
      %v243 = vsel %vm242, %v240, 0.0
      %v244 = vsel %vm242, %v241, 0.0
      %v245 = vadd.f32 %v243, %v244
      %v246 = vrot.slane %v245, 4
      %v247 = vadd.f32 %v245, %v246
      %v248 = vrot.slane %v247, 2
      %v249 = vadd.f32 %v247, %v248
      %v250 = vrot.slane %v249, 1
      %v251 = vadd.f32 %v249, %v250
      %v252 = vrcp.pop 16.0
      %v253 = vmul.f32 %v251, %v252
      %v254 = vld [vmem:[%s234] sm:$0x1]
      %v255 = vmul.f32 %v254, %v253
      %v257 = vlaneseq
      %v258 = vshrl.u32 %v257, 7
      %v259 = vsub.s32 0, %v258
      %v260 = vrot.slane %v255, %v259
      %v262 = vsub.f32 %v240, %v260
      %v263 = vsub.f32 %v241, %v260
      %v264 = vmul.f32 %v262, %v262
      %v265 = vmul.f32 %v263, %v263
      %v266 = vsel %vm242, %v264, 0.0
      %v267 = vsel %vm242, %v265, 0.0
      %v268 = vadd.f32 %v266, %v267
      %v269 = vrot.slane %v268, 4
      %v270 = vadd.f32 %v268, %v269
      %v271 = vrot.slane %v270, 2
      %v272 = vadd.f32 %v270, %v271
      %v273 = vrot.slane %v272, 1
      %v274 = vadd.f32 %v272, %v273
      %v275 = vmul.f32 %v274, %v252
      %v276 = vadd.f32 %v275, 1e-05
      %v277 = vrsqrt.pop %v276
      %v278 = vmul.f32 %v262, %v277
      %v279 = vmul.f32 %v263, %v277
      %v280 = vld [vmem:[%s228] sm:$0x1]
      %v282 = vlaneseq
      %v283 = vshrl.u32 %v282, 7
      %v284 = vsub.s32 0, %v283
      %v285 = vrot.slane %v280, %v284
      %v287 = vmul.f32 %v278, %v285
      %v288 = vmul.f32 %v279, %v285
      %v289 = vld [vmem:[%s231] sm:$0x1]
      %v291 = vlaneseq
      %v292 = vshrl.u32 %v291, 7
      %v293 = vsub.s32 0, %v292
      %v294 = vrot.slane %v289, %v293
      %v296 = vadd.f32 %v287, %v294
      %v297 = vadd.f32 %v288, %v294
      %v298 = vmax.f32 %v296, 0.0
      %v299 = vmax.f32 %v297, 0.0
      %300 = vst.msk [vmem:[%s239] sm:$0xff] %vm242, %v298
      %301 = vst.msk [vmem:[%s239 + $0x8] sm:$0xff] %vm242, %v299
      %p302 = scmp.lt.s32.totalorder %s15, 1
      %s303 = scalar_select %p302, %s15, 1
      %s304 = smul.addr %s303, 2
      %s305 = smul.addr %s304, 8
      %s306 = scalar_lea.vmem %s4, %s305
      // Predicated region
      $region37: #{gat_forward.15} parent=35 // pred_check
        %p307 = pneg %p137
      $region38: #{gat_forward.15} parent=35 // pred_check_branch
        %309 = sbr.rel (%p307) target = $region40
      $region39: #{gat_forward.15} parent=35 // pred_region
        _
      $region40: #{gat_forward.15} parent=35 // pred_fallthru
        _
    $region36: #{gat_forward.15} parent=5 // pred_fallthru
      _
    %p310 = scmp.le.s32.totalorder 2, %s10
    // Predicated region
    $region41: #{gat_forward.15} parent=5 // pred_check
      %p311 = pneg %p310
    $region42: #{gat_forward.15} parent=5 // pred_check_branch
      %313 = sbr.rel (%p311) target = $region44
    $region43: #{gat_forward.15} parent=5 // pred_region
      %s314 = ssub.s32 %s10, 2
      // Predicated region
      $region45: #{gat_forward.15} parent=43 // pred_check
        %p315 = pneg %p143
      $region46: #{gat_forward.15} parent=43 // pred_check_branch
        %317 = sbr.rel (%p315) target = $region48
      $region47: #{gat_forward.15} parent=43 // pred_region
        %p318 = scmp.lt.s32.totalorder %s16, 1
        %s319 = scalar_select %p318, %s16, 1
        %s320 = smul.addr %s319, 2
        %s321 = smul.addr %s320, 8
        %s322 = scalar_lea.vmem %s4, %s321
      $region48: #{gat_forward.15} parent=43 // pred_fallthru
        _
    $region44: #{gat_forward.15} parent=5 // pred_fallthru
      _
  $region6: #{gat_forward.15} parent=0 // loop_footer
    %s14 = sadd.s32 1, %s10
  $region7: #{gat_forward.15} parent=0 // loop_footer_branch
    %9 = sbr.rel target = $region3
  $region8: #{gat_forward.15} parent=0 // loop_exit
    _

// kernel: gat_forward.16
$region0: #{gat_forward.16}
  #allocation0 [shape = 'u32[]', space=smem, size = 0x4, offset = 0x4, fixed_abs, tag = 'smem constant byte address 0x4 - core index']
  #allocation1 [shape = 'u32[144,128]{1,0:T(1,128)}', space=vmem, size = 0x12000, scoped, tag = 'internal scratch']
  %s0 = inlined_call_operand.vmem [shape: f32[2,16,16], index: 0, kind: input, shape index: {}]
  %s1 = inlined_call_operand.vmem [shape: f32[4,2,16,16], index: 1, kind: input, shape index: {}]
  %s2 = inlined_call_operand.vmem [shape: f32[4,1,16], index: 2, kind: input, shape index: {}]
  %s3 = inlined_call_operand.vmem [shape: f32[4,16,16], index: 3, kind: output, shape index: {}]
  %s4 = sld [smem:[#allocation0]]
  $region53: #{gat_forward.16} parent=0
    _
  %s6 = ssub.s32 1, %s4
  %s7 = scalar_select 0, %s6, %s4
  loop: start=0, step=1, limit=10
  $region2: #{gat_forward.16} parent=0 // loop_pre_header
    _
  $region3: #{gat_forward.16} parent=0 // loop_header
    %s9 = sphi 0, %s13
    %p10 = scmp.ge.s32.totalorder %s9, 10
    %s16 = sphi 0, %s35
    %s17 = sphi 0, %s31
    %s18 = sphi 0, %s27
    %s19 = sphi 0, %s16
    %s20 = sphi 0, %s17
    %s21 = sphi 0, %s18
    %s22 = sphi 0, %s19
    %s23 = sphi 0, %s20
    %s24 = sphi 0, %s21
    %s40 = sphi 0, %s42
    %s43 = sphi 0, %s40
    %s44 = sphi 0, %s43
    %s60 = sphi 0, %s44
    %s68 = sphi 0, %s70
    %s71 = sphi 0, %s68
    %s72 = sphi 0, %s71
    %s88 = sphi 0, %s72
    %s94 = sphi 0, %s96
    %s97 = sphi 0, %s94
    %s98 = sphi 0, %s97
    %s114 = sphi 0, %s98
    %s122 = sphi 0, %s124
    %s125 = sphi 0, %s122
    %s126 = sphi 0, %s125
    %s142 = sphi 0, %s126
  $region4: #{gat_forward.16} parent=0 // loop_header_branch
    %12 = sbr.rel (%p10) target = $region8
  $region5: #{gat_forward.16} parent=0 // loop_body
    %s14 = ssub.s32 %s9, 1
    %s15 = ssub.s32 %s9, 2
    %s25 = sadd.s32 1, %s18
    %p26 = scmp.ge.s32.totalorder %s25, 2
    %s27 = scalar_select %p26, 0, %s25
    %s28 = sadd.s32 1, %s17
    %s29 = scalar_select %p26, %s28, %s17
    %p30 = scmp.ge.s32.totalorder %s29, 1
    %s31 = scalar_select %p30, 0, %s29
    %s32 = sadd.s32 1, %s16
    %s33 = scalar_select %p30, %s32, %s16
    %p34 = scmp.ge.s32.totalorder %s33, 4
    %s35 = scalar_select %p34, 0, %s33
    %s36 = ssub.s32 %s18, %s27
    %s37 = ssub.s32 %s17, %s31
    %s38 = sor.u32 %s36, %s37
    %p39 = scmp.eq.s32.totalorder %s38, 0
    %s41 = sadd.s32 %s40, 1
    %s42 = scalar_select %p39, %s40, %s41
    %p45 = pneg %p39
    %p46 = scmp.eq.s32.totalorder %s9, 7
    %p47 = por %p45, %p46
    %p48 = scmp.ne.s32.totalorder %s40, %s43
    %p49 = scmp.eq.s32.totalorder %s9, 0
    %p50 = por %p48, %p49
    %p51 = scmp.ne.s32.totalorder %s40, %s43
    %p52 = scmp.eq.s32.totalorder %s14, 7
    %p53 = por %p51, %p52
    %p54 = scmp.ne.s32.totalorder %s43, %s44
    %p55 = scmp.eq.s32.totalorder %s14, 0
    %p56 = por %p54, %p55
    %p57 = scmp.ne.s32.totalorder %s43, %s44
    %p58 = scmp.eq.s32.totalorder %s15, 7
    %p59 = por %p57, %p58
    %p61 = scmp.ne.s32.totalorder %s44, %s60
    %p62 = scmp.eq.s32.totalorder %s15, 0
    %p63 = por %p61, %p62
    %s64 = ssub.s32 %s16, %s35
    %s65 = ssub.s32 %s18, %s27
    %s66 = sor.u32 %s64, %s65
    %p67 = scmp.eq.s32.totalorder %s66, 0
    %s69 = sadd.s32 %s68, 1
    %s70 = scalar_select %p67, %s68, %s69
    %p73 = pneg %p67
    %p74 = scmp.eq.s32.totalorder %s9, 7
    %p75 = por %p73, %p74
    %p76 = scmp.ne.s32.totalorder %s68, %s71
    %p77 = scmp.eq.s32.totalorder %s9, 0
    %p78 = por %p76, %p77
    %p79 = scmp.ne.s32.totalorder %s68, %s71
    %p80 = scmp.eq.s32.totalorder %s14, 7
    %p81 = por %p79, %p80
    %p82 = scmp.ne.s32.totalorder %s71, %s72
    %p83 = scmp.eq.s32.totalorder %s14, 0
    %p84 = por %p82, %p83
    %p85 = scmp.ne.s32.totalorder %s71, %s72
    %p86 = scmp.eq.s32.totalorder %s15, 7
    %p87 = por %p85, %p86
    %p89 = scmp.ne.s32.totalorder %s72, %s88
    %p90 = scmp.eq.s32.totalorder %s15, 0
    %p91 = por %p89, %p90
    %s92 = ssub.s32 %s16, %s35
    %p93 = scmp.eq.s32.totalorder %s92, 0
    %s95 = sadd.s32 %s94, 1
    %s96 = scalar_select %p93, %s94, %s95
    %p99 = pneg %p93
    %p100 = scmp.eq.s32.totalorder %s9, 7
    %p101 = por %p99, %p100
    %p102 = scmp.ne.s32.totalorder %s94, %s97
    %p103 = scmp.eq.s32.totalorder %s9, 0
    %p104 = por %p102, %p103
    %p105 = scmp.ne.s32.totalorder %s94, %s97
    %p106 = scmp.eq.s32.totalorder %s14, 7
    %p107 = por %p105, %p106
    %p108 = scmp.ne.s32.totalorder %s97, %s98
    %p109 = scmp.eq.s32.totalorder %s14, 0
    %p110 = por %p108, %p109
    %p111 = scmp.ne.s32.totalorder %s97, %s98
    %p112 = scmp.eq.s32.totalorder %s15, 7
    %p113 = por %p111, %p112
    %p115 = scmp.ne.s32.totalorder %s98, %s114
    %p116 = scmp.eq.s32.totalorder %s15, 0
    %p117 = por %p115, %p116
    %s118 = ssub.s32 %s16, %s35
    %s119 = ssub.s32 %s17, %s31
    %s120 = sor.u32 %s118, %s119
    %p121 = scmp.eq.s32.totalorder %s120, 0
    %s123 = sadd.s32 %s122, 1
    %s124 = scalar_select %p121, %s122, %s123
    %p127 = pneg %p121
    %p128 = scmp.eq.s32.totalorder %s9, 7
    %p129 = por %p127, %p128
    %p130 = scmp.ne.s32.totalorder %s122, %s125
    %p131 = scmp.eq.s32.totalorder %s9, 0
    %p132 = por %p130, %p131
    %p133 = scmp.ne.s32.totalorder %s122, %s125
    %p134 = scmp.eq.s32.totalorder %s14, 7
    %p135 = por %p133, %p134
    %p136 = scmp.ne.s32.totalorder %s125, %s126
    %p137 = scmp.eq.s32.totalorder %s14, 0
    %p138 = por %p136, %p137
    %p139 = scmp.ne.s32.totalorder %s125, %s126
    %p140 = scmp.eq.s32.totalorder %s15, 7
    %p141 = por %p139, %p140
    %p143 = scmp.ne.s32.totalorder %s126, %s142
    %p144 = scmp.eq.s32.totalorder %s15, 0
    %p145 = por %p143, %p144
    %p146 = scmp.le.s32.totalorder 1, %s9
    %p147 = scmp.lt.s32.totalorder %s9, 9
    %p148 = pnand %p146, %p147
    %p149 = pneg %p148
    // Predicated region
    $region9: #{gat_forward.16} parent=5 // pred_check
      _
    $region10: #{gat_forward.16} parent=5 // pred_check_branch
      %151 = sbr.rel (%p148) target = $region12
    $region11: #{gat_forward.16} parent=5 // pred_region
      %s152 = ssub.s32 %s9, 1
    $region12: #{gat_forward.16} parent=5 // pred_fallthru
      _
    %p153 = scmp.lt.s32.totalorder %s9, 8
    // Predicated region
    $region13: #{gat_forward.16} parent=5 // pred_check
      %p154 = pneg %p153
    $region14: #{gat_forward.16} parent=5 // pred_check_branch
      %156 = sbr.rel (%p154) target = $region16
    $region15: #{gat_forward.16} parent=5 // pred_region
      // Predicated region
      $region17: #{gat_forward.16} parent=15 // pred_check
        %p157 = pneg %p50
      $region18: #{gat_forward.16} parent=15 // pred_check_branch
        %159 = sbr.rel (%p157) target = $region20
      $region19: #{gat_forward.16} parent=15 // pred_region
        %s160 = smul.u32 2, %s17
        %p161 = scmp.lt.s32.totalorder %s18, 1
        %s162 = scalar_select %p161, %s18, 1
        %p163 = scmp.lt.s32.totalorder %s160, 1
        %s164 = scalar_select %p163, %s160, 1
        %s165 = smul.addr %s162, 2
        %s166 = sadd.s32 %s164, %s165
        %s167 = smul.addr %s166, 8
        %s168 = scalar_lea.vmem %s0, %s167
        %s169 = smul.u32 2, %s17
      $region20: #{gat_forward.16} parent=15 // pred_fallthru
        _
      // Predicated region
      $region21: #{gat_forward.16} parent=15 // pred_check
        %p170 = pneg %p78
      $region22: #{gat_forward.16} parent=15 // pred_check_branch
        %172 = sbr.rel (%p170) target = $region24
      $region23: #{gat_forward.16} parent=15 // pred_region
        %p173 = scmp.lt.s32.totalorder %s16, 3
        %s174 = scalar_select %p173, %s16, 3
        %p175 = scmp.lt.s32.totalorder %s18, 1
        %s176 = scalar_select %p175, %s18, 1
        %s177 = smul.addr %s176, 2
        %s178 = smul.addr %s174, 4
        %s179 = sadd.s32 %s177, %s178
        %s180 = smul.addr %s179, 8
        %s181 = scalar_lea.vmem %s1, %s180
      $region24: #{gat_forward.16} parent=15 // pred_fallthru
        _
      // Predicated region
      $region25: #{gat_forward.16} parent=15 // pred_check
        %p182 = pneg %p104
      $region26: #{gat_forward.16} parent=15 // pred_check_branch
        %184 = sbr.rel (%p182) target = $region28
      $region27: #{gat_forward.16} parent=15 // pred_region
        %p185 = scmp.lt.s32.totalorder %s16, 3
        %s186 = scalar_select %p185, %s16, 3
        %s187 = scalar_lea.vmem %s2, %s186
      $region28: #{gat_forward.16} parent=15 // pred_fallthru
        _
    $region16: #{gat_forward.16} parent=5 // pred_fallthru
      _
    %p188 = scmp.le.s32.totalorder 1, %s9
    %p189 = scmp.lt.s32.totalorder %s9, 9
    %p190 = pnand %p188, %p189
    %p191 = pneg %p190
    // Predicated region
    $region29: #{gat_forward.16} parent=5 // pred_check
      _
    $region30: #{gat_forward.16} parent=5 // pred_check_branch
      %193 = sbr.rel (%p190) target = $region32
    $region31: #{gat_forward.16} parent=5 // pred_region
      %s194 = ssub.s32 %s9, 1
      %s195 = smul.u32 2, %s20
      %p196 = scmp.lt.s32.totalorder %s21, 1
      %s197 = scalar_select %p196, %s21, 1
      %p198 = scmp.lt.s32.totalorder %s195, 1
      %s199 = scalar_select %p198, %s195, 1
      %s200 = smul.addr %s197, 2
      %s201 = sadd.s32 %s199, %s200
      %s202 = smul.addr %s201, 8
      %s203 = scalar_lea.vmem %s0, %s202
      %p204 = pneg %p56
      %p205 = pneg %p53
      %p206 = scmp.lt.s32.totalorder %s19, 3
      %s207 = scalar_select %p206, %s19, 3
      %p208 = scmp.lt.s32.totalorder %s21, 1
      %s209 = scalar_select %p208, %s21, 1
      %s210 = smul.addr %s209, 2
      %s211 = smul.addr %s207, 4
      %s212 = sadd.s32 %s210, %s211
      %s213 = smul.addr %s212, 8
      %s214 = scalar_lea.vmem %s1, %s213
      %p215 = pneg %p84
      %p216 = pneg %p81
      %p217 = scmp.lt.s32.totalorder %s19, 3
      %s218 = scalar_select %p217, %s19, 3
      %s219 = scalar_lea.vmem %s2, %s218
      %p220 = pneg %p110
      %p221 = pneg %p107
      %p222 = pneg %p138
      %p223 = pneg %p135
      %s224 = smul.u32 2, %s20
      %p225 = scmp.lt.s32.totalorder %s19, 3
      %s226 = scalar_select %p225, %s19, 3
      %p227 = scmp.lt.s32.totalorder %s224, 1
      %s228 = scalar_select %p227, %s224, 1
      %s229 = smul.addr %s226, 2
      %s230 = sadd.s32 %s228, %s229
      %s231 = smul.addr %s230, 8
      %s232 = scalar_lea.vmem %s3, %s231
      %s233 = smul.u32 2, %s20
      %p234 = scmp.lt.s32.totalorder %s21, 1
      %s235 = scalar_select %p234, %s21, 1
      %p236 = scmp.lt.s32.totalorder %s233, 1
      %s237 = scalar_select %p236, %s233, 1
      %s238 = smul.addr %s235, 2
      %s239 = sadd.s32 %s237, %s238
      %s240 = smul.addr %s239, 8
      %s241 = scalar_lea.vmem %s0, %s240
      %s242 = smul.u32 2, %s20
      %p243 = scmp.lt.s32.totalorder %s19, 3
      %s244 = scalar_select %p243, %s19, 3
      %p245 = scmp.lt.s32.totalorder %s21, 1
      %s246 = scalar_select %p245, %s21, 1
      %s247 = smul.addr %s246, 2
      %s248 = smul.addr %s244, 4
      %s249 = sadd.s32 %s247, %s248
      %s250 = smul.addr %s249, 8
      %s251 = scalar_lea.vmem %s1, %s250
      %p252 = scmp.lt.s32.totalorder %s19, 3
      %s253 = scalar_select %p252, %s19, 3
      %s254 = scalar_lea.vmem %s2, %s253
      %s255 = smul.u32 2, %s20
      %p256 = scmp.lt.s32.totalorder %s19, 3
      %s257 = scalar_select %p256, %s19, 3
      %p258 = scmp.lt.s32.totalorder %s255, 1
      %s259 = scalar_select %p258, %s255, 1
      %s260 = smul.addr %s257, 2
      %s261 = sadd.s32 %s259, %s260
      %s262 = smul.addr %s261, 8
      %s263 = scalar_lea.vmem %s3, %s262
      %s264 = smul.u32 2, %s20
      %v265 = vld [vmem:[%s241] sm:$0xff]
      %v266 = vld [vmem:[%s241 + $0x8] sm:$0xff]
      %v267 = vld [vmem:[%s251] sm:$0xff]
      %v268 = vld [vmem:[%s251 + $0x8] sm:$0xff]
      %vm269 = vcmask 130048
      %v271 = vsel %vm269, %v265, 0
      %v274 = vsel %vm269, %v266, 0
      %276 = vmatprep.subr.mxu0 0.0
      %277 = vmatpush1.msra.mxu0 0.0
      %278 = vmatprep.subr.mxu0 0.0
      %279 = vmatpush1.msra.mxu0 0.0
      %280 = vmatprep.subr.mxu0 0.0
      %281 = vmatpush1.msra.mxu0 0.0
      %282 = vmatprep.subr.mxu0 0.0
      %283 = vmatpush1.msra.mxu0 0.0
      %284 = vmatprep.subr.mxu0 0.0
      %285 = vmatpush1.msra.mxu0 0.0
      %286 = vmatprep.subr.mxu0 0.0
      %287 = vmatpush1.msra.mxu0 0.0
      %288 = vmatprep.subr.mxu0 0.0
      %289 = vmatpush1.msra.mxu0 0.0
      %290 = vmatprep.subr.mxu0 0.0
      %291 = vmatpush1.msra.mxu0 0.0
      %292 = vmatprep.subr.mxu0 0.0
      %293 = vmatpush1.msra.mxu0 0.0
      %294 = vmatprep.subr.mxu0 0.0
      %295 = vmatpush1.msra.mxu0 0.0
      %296 = vmatprep.subr.mxu0 0.0
      %297 = vmatpush1.msra.mxu0 0.0
      %298 = vmatprep.subr.mxu0 0.0
      %299 = vmatpush1.msra.mxu0 0.0
      %300 = vmatprep.subr.mxu0 0.0
      %301 = vmatpush1.msra.mxu0 0.0
      %302 = vmatprep.subr.mxu0 0.0
      %303 = vmatpush1.msra.mxu0 0.0
      %304 = vmatprep.subr.mxu0 0.0
      %305 = vmatpush1.msra.mxu0 %v268
      %306 = vmatprep.subr.mxu0 0.0
      %307 = vmatpush1.msra.mxu0 %v267
      %308 = vmatprep.subr.mxu0 0.0
      %309 = vmatpush2.msra.mxu0 0.0
      %310 = vmatprep.subr.mxu0 0.0
      %311 = vmatpush2.msra.mxu0 0.0
      %312 = vmatprep.subr.mxu0 0.0
      %313 = vmatpush2.msra.mxu0 0.0
      %314 = vmatprep.subr.mxu0 0.0
      %315 = vmatpush2.msra.mxu0 0.0
      %316 = vmatprep.subr.mxu0 0.0
      %317 = vmatpush2.msra.mxu0 0.0
      %318 = vmatprep.subr.mxu0 0.0
      %319 = vmatpush2.msra.mxu0 0.0
      %320 = vmatprep.subr.mxu0 0.0
      %321 = vmatpush2.msra.mxu0 0.0
      %322 = vmatprep.subr.mxu0 0.0
      %323 = vmatpush2.msra.mxu0 0.0
      %324 = vmatprep.subr.mxu0 0.0
      %325 = vmatpush2.msra.mxu0 0.0
      %326 = vmatprep.subr.mxu0 0.0
      %327 = vmatpush2.msra.mxu0 0.0
      %328 = vmatprep.subr.mxu0 0.0
      %329 = vmatpush2.msra.mxu0 0.0
      %330 = vmatprep.subr.mxu0 0.0
      %331 = vmatpush2.msra.mxu0 0.0
      %332 = vmatprep.subr.mxu0 0.0
      %333 = vmatpush2.msra.mxu0 0.0
      %334 = vmatprep.subr.mxu0 0.0
      %335 = vmatpush2.msra.mxu0 0.0
      %336 = vmatprep.subr.mxu0 0.0
      %337 = vmatpush2.msra.mxu0 0.0
      %338 = vmatprep.subr.mxu0 0.0
      %339 = vmatpush2.msra.mxu0 0.0
      %340 = vmatprep.mubr.f32.mxu0 0.0
      %341 = vmatmul.mubr.f32.gmra.mxu0 %v271
      %v342 = vpop.f32.mrf.mxu0
      %v343 = vadd.f32 0.0, %v342
      %v344 = vpop.f32.mrf.mxu0
      %345 = vmatprep.mubr.f32.mxu0 0.0
      %346 = vmatmul.mubr.f32.gmra.mxu0 %v274
      %v347 = vpop.f32.mrf.mxu0
      %v348 = vadd.f32 0.0, %v347
      %v349 = vpop.f32.mrf.mxu0
      %350 = vdwg.mxu0
      %p351 = scmp.eq.s32.totalorder %s21, 0
      // Predicated region
      $region33: #{gat_forward.16} parent=31 // pred_check
        %p352 = pneg %p351
      $region34: #{gat_forward.16} parent=31 // pred_check_branch
        %354 = sbr.rel (%p352) target = $region36
      $region35: #{gat_forward.16} parent=31 // pred_region
        %v355 = vld [vmem:[%s254] sm:$0x1]
        %v357 = vlaneseq
        %v358 = vshrl.u32 %v357, 7
        %v359 = vsub.s32 0, %v358
        %v360 = vrot.slane %v355, %v359
        %v362 = vadd.f32 %v343, %v360
        %v363 = vadd.f32 %v348, %v360
        %364 = vst.msk [vmem:[%s263] sm:$0xff] %vm269, %v362
        %365 = vst.msk [vmem:[%s263 + $0x8] sm:$0xff] %vm269, %v363
      $region36: #{gat_forward.16} parent=31 // pred_fallthru
        _
      %p366 = scmp.gt.s32.totalorder %s21, 0
      // Predicated region
      $region37: #{gat_forward.16} parent=31 // pred_check
        %p367 = pneg %p366
      $region38: #{gat_forward.16} parent=31 // pred_check_branch
        %369 = sbr.rel (%p367) target = $region40
      $region39: #{gat_forward.16} parent=31 // pred_region
        %v370 = vld [vmem:[%s263] sm:$0xff]
        %v371 = vld [vmem:[%s263 + $0x8] sm:$0xff]
        %v372 = vadd.f32 %v370, %v343
        %v373 = vadd.f32 %v371, %v348
        %374 = vst.msk [vmem:[%s263] sm:$0xff] %vm269, %v372
        %375 = vst.msk [vmem:[%s263 + $0x8] sm:$0xff] %vm269, %v373
      $region40: #{gat_forward.16} parent=31 // pred_fallthru
        _
      %s376 = smul.u32 2, %s20
      %p377 = scmp.lt.s32.totalorder %s19, 3
      %s378 = scalar_select %p377, %s19, 3
      %p379 = scmp.lt.s32.totalorder %s376, 1
      %s380 = scalar_select %p379, %s376, 1
      %s381 = smul.addr %s378, 2
      %s382 = sadd.s32 %s380, %s381
      %s383 = smul.addr %s382, 8
      %s384 = scalar_lea.vmem %s3, %s383
      // Predicated region
      $region41: #{gat_forward.16} parent=31 // pred_check
        %p385 = pneg %p135
      $region42: #{gat_forward.16} parent=31 // pred_check_branch
        %387 = sbr.rel (%p385) target = $region44
      $region43: #{gat_forward.16} parent=31 // pred_region
        %s388 = smul.u32 2, %s20
      $region44: #{gat_forward.16} parent=31 // pred_fallthru
        _
    $region32: #{gat_forward.16} parent=5 // pred_fallthru
      _
    %p389 = scmp.le.s32.totalorder 2, %s9
    // Predicated region
    $region45: #{gat_forward.16} parent=5 // pred_check
      %p390 = pneg %p389
    $region46: #{gat_forward.16} parent=5 // pred_check_branch
      %392 = sbr.rel (%p390) target = $region48
    $region47: #{gat_forward.16} parent=5 // pred_region
      %s393 = ssub.s32 %s9, 2
      // Predicated region
      $region49: #{gat_forward.16} parent=47 // pred_check
        %p394 = pneg %p141
      $region50: #{gat_forward.16} parent=47 // pred_check_branch
        %396 = sbr.rel (%p394) target = $region52
      $region51: #{gat_forward.16} parent=47 // pred_region
        %s397 = smul.u32 2, %s23
        %p398 = scmp.lt.s32.totalorder %s22, 3
        %s399 = scalar_select %p398, %s22, 3
        %p400 = scmp.lt.s32.totalorder %s397, 1
        %s401 = scalar_select %p400, %s397, 1
        %s402 = smul.addr %s399, 2
        %s403 = sadd.s32 %s401, %s402
        %s404 = smul.addr %s403, 8
        %s405 = scalar_lea.vmem %s3, %s404
      $region52: #{gat_forward.16} parent=47 // pred_fallthru
        _
    $region48: #{gat_forward.16} parent=5 // pred_fallthru
      _
  $region6: #{gat_forward.16} parent=0 // loop_footer
    %s13 = sadd.s32 1, %s9
  $region7: #{gat_forward.16} parent=0 // loop_footer_branch
    %8 = sbr.rel target = $region3
  $region8: #{gat_forward.16} parent=0 // loop_exit
    _

// kernel: gat_forward.19
$region0: #{gat_forward.19}
  #allocation0 [shape = 'u32[]', space=smem, size = 0x4, offset = 0x4, fixed_abs, tag = 'smem constant byte address 0x4 - core index']
  #allocation1 [shape = 'u32[144,128]{1,0:T(1,128)}', space=vmem, size = 0x12000, scoped, tag = 'internal scratch']
  #allocation2 [shape = 'f32[6,1]{1,0:T(8,128)}', space=vmem, size = 0x1000, scoped, tag = 'scratch operand']
  #allocation3 [shape = 'f32[1,1]{1,0:T(1,128)S(1)}', space=vmem, size = 0x200, scoped, tag = 'scoped memory for gat_forward.19']
  %s0 = inlined_call_operand.vmem [shape: f32[6,64], index: 0, kind: input, shape index: {}]
  %s1 = inlined_call_operand.vmem [shape: f32[64,1], index: 1, kind: input, shape index: {}]
  %s2 = inlined_call_operand.<no memory space> [shape: f32[1,1], index: 2, kind: input, shape index: {}]
  %s3 = inlined_call_operand.vmem [shape: f32[6,1], index: 3, kind: output, shape index: {}]
  %s4 = sld [smem:[#allocation0]]
  $region30: #{gat_forward.19} parent=0
    _
  %s6 = ssub.s32 1, %s4
  %s7 = scalar_select 0, %s6, %s4
  %v8 = vstv %s2
  %9 = vst [vmem:[#allocation3] sm:$0x1] %v8
  // Predicated region
  $region2: #{gat_forward.19} parent=0 // pred_check
    _
  $region3: #{gat_forward.19} parent=0 // pred_check_branch
    %11 = sbr.rel (0) target = $region5
  $region4: #{gat_forward.19} parent=0 // pred_region
    _
  $region5: #{gat_forward.19} parent=0 // pred_fallthru
    _
  // Predicated region
  $region6: #{gat_forward.19} parent=0 // pred_check
    _
  $region7: #{gat_forward.19} parent=0 // pred_check_branch
    %13 = sbr.rel (0) target = $region9
  $region8: #{gat_forward.19} parent=0 // pred_region
    _
  $region9: #{gat_forward.19} parent=0 // pred_fallthru
    _
  // Predicated region
  $region10: #{gat_forward.19} parent=0 // pred_check
    _
  $region11: #{gat_forward.19} parent=0 // pred_check_branch
    %15 = sbr.rel (0) target = $region13
  $region12: #{gat_forward.19} parent=0 // pred_region
    _
  $region13: #{gat_forward.19} parent=0 // pred_fallthru
    _
  %p16 = scmp.eq.s32.totalorder 0, 0
  // Predicated region
  $region14: #{gat_forward.19} parent=0 // pred_check
    %p17 = pneg %p16
  $region15: #{gat_forward.19} parent=0 // pred_check_branch
    %19 = sbr.rel (%p17) target = $region17
  $region16: #{gat_forward.19} parent=0 // pred_region
    %vm20 = vcmask 5120
    %21 = vst.msk [vmem:[#allocation2] sm:$0x3f] %vm20, 0.0
  $region17: #{gat_forward.19} parent=0 // pred_fallthru
    _
  %v22 = vld [vmem:[#allocation2] sm:$0x3f]
  %v23 = vld [vmem:[%s0] sm:$0x3f]
  %v24 = vld [vmem:[%s1] sm:$0xff]
  %v25 = vld [vmem:[%s1 + $0x8] sm:$0xff]
  %v26 = vld [vmem:[%s1 + $0x10] sm:$0xff]
  %v27 = vld [vmem:[%s1 + $0x18] sm:$0xff]
  %v28 = vld [vmem:[%s1 + $0x20] sm:$0xff]
  %v29 = vld [vmem:[%s1 + $0x28] sm:$0xff]
  %v30 = vld [vmem:[%s1 + $0x30] sm:$0xff]
  %v31 = vld [vmem:[%s1 + $0x38] sm:$0xff]
  %vm32 = vcmask 523264
  %v34 = vsel %vm32, %v23, 0
  %36 = vmatprep.subr.mxu0 0.0
  %37 = vmatpush1.msra.mxu0 0.0
  %38 = vmatprep.subr.mxu0 0.0
  %39 = vmatpush1.msra.mxu0 0.0
  %40 = vmatprep.subr.mxu0 0.0
  %41 = vmatpush1.msra.mxu0 0.0
  %42 = vmatprep.subr.mxu0 0.0
  %43 = vmatpush1.msra.mxu0 0.0
  %44 = vmatprep.subr.mxu0 0.0
  %45 = vmatpush1.msra.mxu0 0.0
  %46 = vmatprep.subr.mxu0 0.0
  %47 = vmatpush1.msra.mxu0 0.0
  %48 = vmatprep.subr.mxu0 0.0
  %49 = vmatpush1.msra.mxu0 0.0
  %50 = vmatprep.subr.mxu0 0.0
  %51 = vmatpush1.msra.mxu0 0.0
  %52 = vmatprep.subr.mxu0 0.0
  %53 = vmatpush1.msra.mxu0 %v31
  %54 = vmatprep.subr.mxu0 0.0
  %55 = vmatpush1.msra.mxu0 %v30
  %56 = vmatprep.subr.mxu0 0.0
  %57 = vmatpush1.msra.mxu0 %v29
  %58 = vmatprep.subr.mxu0 0.0
  %59 = vmatpush1.msra.mxu0 %v28
  %60 = vmatprep.subr.mxu0 0.0
  %61 = vmatpush1.msra.mxu0 %v27
  %62 = vmatprep.subr.mxu0 0.0
  %63 = vmatpush1.msra.mxu0 %v26
  %64 = vmatprep.subr.mxu0 0.0
  %65 = vmatpush1.msra.mxu0 %v25
  %66 = vmatprep.subr.mxu0 0.0
  %67 = vmatpush1.msra.mxu0 %v24
  %68 = vmatprep.subr.mxu0 0.0
  %69 = vmatpush2.msra.mxu0 0.0
  %70 = vmatprep.subr.mxu0 0.0
  %71 = vmatpush2.msra.mxu0 0.0
  %72 = vmatprep.subr.mxu0 0.0
  %73 = vmatpush2.msra.mxu0 0.0
  %74 = vmatprep.subr.mxu0 0.0
  %75 = vmatpush2.msra.mxu0 0.0
  %76 = vmatprep.subr.mxu0 0.0
  %77 = vmatpush2.msra.mxu0 0.0
  %78 = vmatprep.subr.mxu0 0.0
  %79 = vmatpush2.msra.mxu0 0.0
  %80 = vmatprep.subr.mxu0 0.0
  %81 = vmatpush2.msra.mxu0 0.0
  %82 = vmatprep.subr.mxu0 0.0
  %83 = vmatpush2.msra.mxu0 0.0
  %84 = vmatprep.subr.mxu0 0.0
  %85 = vmatpush2.msra.mxu0 0.0
  %86 = vmatprep.subr.mxu0 0.0
  %87 = vmatpush2.msra.mxu0 0.0
  %88 = vmatprep.subr.mxu0 0.0
  %89 = vmatpush2.msra.mxu0 0.0
  %90 = vmatprep.subr.mxu0 0.0
  %91 = vmatpush2.msra.mxu0 0.0
  %92 = vmatprep.subr.mxu0 0.0
  %93 = vmatpush2.msra.mxu0 0.0
  %94 = vmatprep.subr.mxu0 0.0
  %95 = vmatpush2.msra.mxu0 0.0
  %96 = vmatprep.subr.mxu0 0.0
  %97 = vmatpush2.msra.mxu0 0.0
  %98 = vmatprep.subr.mxu0 0.0
  %99 = vmatpush2.msra.mxu0 0.0
  %100 = vmatprep.mubr.f32.mxu0 0.0
  %101 = vmatmul.mubr.f32.gmra.mxu0 %v34
  %v102 = vpop.f32.mrf.mxu0
  %v103 = vadd.f32 0.0, %v102
  %v104 = vpop.f32.mrf.mxu0
  %105 = vdwg.mxu0
  %v106 = vadd.f32 %v22, %v103
  %vm107 = vcmask 5120
  %108 = vst.msk [vmem:[#allocation2] sm:$0x3f] %vm107, %v106
  // Predicated region
  $region18: #{gat_forward.19} parent=0 // pred_check
    %p109 = pneg %p16
  $region19: #{gat_forward.19} parent=0 // pred_check_branch
    %111 = sbr.rel (%p109) target = $region21
  $region20: #{gat_forward.19} parent=0 // pred_region
    %v112 = vld [vmem:[#allocation2] sm:$0x3f]
    %v113 = vld [vmem:[#allocation3] sm:$0x1]
    %v115 = vlaneseq
    %v116 = vshrl.u32 %v115, 7
    %v117 = vsub.s32 0, %v116
    %v118 = vrot.slane %v113, %v117
    %v120 = vadd.f32 %v112, %v118
    %v121 = vxor.u32 %v120, 2147483648
    %v122 = vmul.f32 %v121, 1.442695
    %v123 = vpow.pop %v122
    %v124 = vadd.f32 %v123, 1.0
    %v125 = vrcp.pop %v124
    %v126 = vmul.f32 1.0, %v125
    %127 = vst.msk [vmem:[%s3] sm:$0x3f] %vm107, %v126
  $region21: #{gat_forward.19} parent=0 // pred_fallthru
    _
  // Predicated region
  $region22: #{gat_forward.19} parent=0 // pred_check
    _
  $region23: #{gat_forward.19} parent=0 // pred_check_branch
    %129 = sbr.rel (0) target = $region25
  $region24: #{gat_forward.19} parent=0 // pred_region
    _
  $region25: #{gat_forward.19} parent=0 // pred_fallthru
    _
  // Predicated region
  $region26: #{gat_forward.19} parent=0 // pred_check
    _
  $region27: #{gat_forward.19} parent=0 // pred_check_branch
    %131 = sbr.rel (0) target = $region29
  $region28: #{gat_forward.19} parent=0 // pred_region
    _
  $region29: #{gat_forward.19} parent=0 // pred_fallthru
    _

</llo_original>
